<compile_context>
chip_gen: v5e
topology: v5e:2x2
jax: 0.10.0
libtpu: 0.0.40
codegen_flags: <defaults>
</compile_context>

<pallas_src>
import functools

import jax
import jax.numpy as jnp
import numpy as np
from jax.experimental import pallas as pl
from jax.experimental.pallas import tpu as pltpu


# ----------------------------------------------------------------------------
# Config / tiling
# ----------------------------------------------------------------------------
NUM_CLASSES = 3
PDIM = 1 + NUM_CLASSES + 1 + 4          # = 9, matches KFcosHead default
PDIM_PAD = 128                          # lane-dense head output width
FPN_DIM = 16                            # FPN_out_v4 output channels (all levels)
BACKBONE_DIMS = (16, 32, 64)            # C3, C4, C5 channels (small synthetic)
NUM_LEVELS = 5                          # o_ceng = 5  (P3..P7)

CONV_TILE_M = 512                       # im2col rows per grid step (conv kernels)
HEAD_TILE_M = 256                       # im2col rows per grid step (fused head)
VMEM_LIMIT = 64 * 1024 * 1024


def _round_up(x, m):
    return (x + m - 1) // m * m


def _pad_rows(x, mult):
    pad = (-x.shape[0]) % mult
    if pad:
        x = jnp.pad(x, ((0, pad), (0, 0)))
    return x


# ----------------------------------------------------------------------------
# Pallas kernels
# ----------------------------------------------------------------------------
def _matmul_bias_act_kernel(x_ref, w_ref, b_ref, o_ref, *, relu, relu_in):
    """o = act((relu_in ? relu(x) : x) @ w + b); bf16 dot inputs, f32 accumulate."""
    x = x_ref[...]
    if relu_in:
        x = jnp.maximum(x, 0.0)
    acc = jnp.dot(x, w_ref[...], preferred_element_type=jnp.float32)
    acc = acc + b_ref[...]
    if relu:
        acc = jnp.maximum(acc, 0.0)
    o_ref[...] = acc.astype(o_ref.dtype)


def _head_fused_kernel(lvl_ref, x_ref, w1_ref, b1_ref, w2_ref, b2_ref, o_ref):
    """Fused KFcosHead tile: relu(patches @ W1 + b1) @ W2 + b2 (lane-dense out).

    lvl_ref is the scalar-prefetched tile->level table; it is consumed by the
    BlockSpec index maps (selects this tile's W1/b1/W2/b2 blocks), not here.
    """
    del lvl_ref
    h = jnp.dot(x_ref[...], w1_ref[0], preferred_element_type=jnp.float32)
    h = jnp.maximum(h + b1_ref[0], 0.0)               # (HEAD_TILE_M, 2C) stays small
    o = jnp.dot(h.astype(jnp.bfloat16), w2_ref[0], preferred_element_type=jnp.float32)
    o_ref[...] = (o + b2_ref[0]).astype(o_ref.dtype)


# ----------------------------------------------------------------------------
# Pallas wrappers
# ----------------------------------------------------------------------------
def matmul_bias_act(x, w, b, relu=False, relu_in=False, tile_m=CONV_TILE_M):
    """(M,K) @ (K,N) + (N,) with optional input/output ReLU, M-tiled on the MXU."""
    M, K = x.shape
    N = w.shape[1]
    x = x.astype(jnp.bfloat16)
    w = w.astype(jnp.bfloat16)
    b = b.astype(jnp.float32).reshape(1, N)

    tm = min(tile_m, _round_up(M, 8))
    x_p = _pad_rows(x, tm)
    Mp = x_p.shape[0]

    out = pl.pallas_call(
        functools.partial(_matmul_bias_act_kernel, relu=relu, relu_in=relu_in),
        out_shape=jax.ShapeDtypeStruct((Mp, N), jnp.float32),
        grid=(Mp // tm,),
        in_specs=[
            pl.BlockSpec((tm, K), lambda i: (i, 0)),
            pl.BlockSpec((K, N), lambda i: (0, 0)),
            pl.BlockSpec((1, N), lambda i: (0, 0)),
        ],
        out_specs=pl.BlockSpec((tm, N), lambda i: (i, 0)),
        compiler_params=pltpu.CompilerParams(
            dimension_semantics=("parallel",),
            vmem_limit_bytes=VMEM_LIMIT),
    )(x_p, w, b)
    return out[:M] if Mp != M else out


def im2col(x, k, stride, pad):
    """x: (N,H,W,C) -> (N*Ho*Wo, k*k*C); patch order is (kh, kw, c)."""
    N, H, W, C = x.shape
    if pad:
        x = jnp.pad(x, ((0, 0), (pad, pad), (pad, pad), (0, 0)))
    Ho = (H + 2 * pad - k) // stride + 1
    Wo = (W + 2 * pad - k) // stride + 1
    taps = []
    for kh in range(k):
        for kw in range(k):
            taps.append(x[:, kh:kh + stride * Ho:stride, kw:kw + stride * Wo:stride, :])
    patches = jnp.stack(taps, axis=3)                   # (N, Ho, Wo, k*k, C)
    return patches.reshape(N * Ho * Wo, k * k * C), (N, Ho, Wo)


def conv2d(x, w_hwio, b, stride=1, pad=0, relu=False, relu_in=False):
    """NHWC conv via im2col + tiled Pallas matmul kernel."""
    # TODO(synk): im2col still materializes the patch matrix in HBM between XLA
    # and the Pallas call; fusing the 9-tap extraction into the kernel (manual
    # DMA of haloed row slabs via memory_space=pl.ANY) would remove the k*k
    # read amplification on these memory-bound convs.
    k, _, cin, cout = w_hwio.shape
    cols, (N, Ho, Wo) = im2col(x, k, stride, pad)
    y = matmul_bias_act(cols, w_hwio.reshape(k * k * cin, cout), b,
                        relu=relu, relu_in=relu_in)
    return y.reshape(N, Ho, Wo, cout)


def upsample2x(x):
    # TODO(synk): nearest-2x upsample + lateral add remain plain JAX (XLA fuses
    # them into the consumer conv's im2col) rather than a dedicated Pallas pass.
    return jnp.repeat(jnp.repeat(x, 2, axis=1), 2, axis=2)


def fused_head(levels, head_params):
    """All KFcosHead branches in ONE pallas_call.

    Per-level im2col rows are padded to HEAD_TILE_M and concatenated along M.
    A scalar-prefetched tile->level table drives the weight/bias index maps so
    each row tile multiplies against its own level's (W1, b1, W2, b2).
    Output is lane-dense: pdim padded to 128, sliced back outside.
    """
    C = levels[0].shape[-1]
    K = 9 * C
    Ch = head_params[0][0].shape[1]                     # 2*C
    P = head_params[0][2].shape[1]                      # pdim

    cols_list, seg = [], []
    for feat in levels:
        N, H, W, _ = feat.shape
        cols, _ = im2col(feat, 3, 1, 1)                 # (N*H*W, 9C)
        cols = _pad_rows(cols.astype(jnp.bfloat16), HEAD_TILE_M)
        cols_list.append(cols)
        seg.append((N, H * W, N * H * W, cols.shape[0]))
    cols_all = jnp.concatenate(cols_list, axis=0)
    Mp = cols_all.shape[0]
    num_tiles = Mp // HEAD_TILE_M

    level_ids = jnp.asarray(np.concatenate(
        [np.full(s[3] // HEAD_TILE_M, l, np.int32) for l, s in enumerate(seg)]))

    w1s = jnp.stack([w1 for (w1, _, _, _) in head_params]).astype(jnp.bfloat16)   # (L,K,Ch)
    b1s = jnp.stack([b1.reshape(1, Ch) for (_, b1, _, _) in head_params])          # (L,1,Ch) f32
    w2s = jnp.stack([jnp.pad(w2, ((0, 0), (0, PDIM_PAD - P)))
                     for (_, _, w2, _) in head_params]).astype(jnp.bfloat16)       # (L,Ch,128)
    b2s = jnp.stack([jnp.pad(b2, (0, PDIM_PAD - P)).reshape(1, PDIM_PAD)
                     for (_, _, _, b2) in head_params])                            # (L,1,128) f32

    grid_spec = pltpu.PrefetchScalarGridSpec(
        num_scalar_prefetch=1,
        grid=(num_tiles,),
        in_specs=[
            pl.BlockSpec((HEAD_TILE_M, K), lambda i, lvl: (i, 0)),
            pl.BlockSpec((1, K, Ch), lambda i, lvl: (lvl[i], 0, 0)),
            pl.BlockSpec((1, 1, Ch), lambda i, lvl: (lvl[i], 0, 0)),
            pl.BlockSpec((1, Ch, PDIM_PAD), lambda i, lvl: (lvl[i], 0, 0)),
            pl.BlockSpec((1, 1, PDIM_PAD), lambda i, lvl: (lvl[i], 0, 0)),
        ],
        out_specs=pl.BlockSpec((HEAD_TILE_M, PDIM_PAD), lambda i, lvl: (i, 0)),
    )
    out_all = pl.pallas_call(
        _head_fused_kernel,
        out_shape=jax.ShapeDtypeStruct((Mp, PDIM_PAD), jnp.float32),
        grid_spec=grid_spec,
        compiler_params=pltpu.CompilerParams(
            dimension_semantics=("parallel",),
            vmem_limit_bytes=VMEM_LIMIT),
    )(level_ids, cols_all, w1s, b1s, w2s, b2s)

    outs, off = [], 0
    for (N, HW, m, mp) in seg:
        outs.append(out_all[off:off + m, :P].reshape(N, HW, P))
        off += mp
    return jnp.concatenate(outs, axis=1)                # (N, sum HW, pdim)


# ----------------------------------------------------------------------------
# Deterministic parameter construction (synthetic, no checkpoint)
# ----------------------------------------------------------------------------
def make_params(key):
    keys = list(jax.random.split(key, 128))
    it = iter(keys)

    def conv_p(cin, cout, k):
        w = jax.random.normal(next(it), (k, k, cin, cout), jnp.float32)
        w = w * (1.0 / np.sqrt(k * k * cin))
        b = 0.01 * jax.random.normal(next(it), (cout,), jnp.float32)
        return w, b

    p = {}
    # synthetic backbone: stem + three stride-2 stages
    p["stem"] = conv_p(3, 8, 3)
    p["c3"] = conv_p(8, BACKBONE_DIMS[0], 3)
    p["c4"] = conv_p(BACKBONE_DIMS[0], BACKBONE_DIMS[1], 3)
    p["c5"] = conv_p(BACKBONE_DIMS[1], BACKBONE_DIMS[2], 3)
    # FPN_out_v4 stand-in: laterals, smoothers, P6/P7 extra levels
    p["lat3"] = conv_p(BACKBONE_DIMS[0], FPN_DIM, 1)
    p["lat4"] = conv_p(BACKBONE_DIMS[1], FPN_DIM, 1)
    p["lat5"] = conv_p(BACKBONE_DIMS[2], FPN_DIM, 1)
    p["sm3"] = conv_p(FPN_DIM, FPN_DIM, 3)
    p["sm4"] = conv_p(FPN_DIM, FPN_DIM, 3)
    p["sm5"] = conv_p(FPN_DIM, FPN_DIM, 3)
    p["p6"] = conv_p(FPN_DIM, FPN_DIM, 3)
    p["p7"] = conv_p(FPN_DIM, FPN_DIM, 3)
    # KFcosHead: per level, FConv2d(c, 2c, k=3) + Conv2d(2c, pdim, 1)
    head = []
    for _ in range(NUM_LEVELS):
        c = FPN_DIM
        w1, b1 = conv_p(c, 2 * c, 3)
        w2, b2 = conv_p(2 * c, PDIM, 1)
        head.append((w1.reshape(9 * c, 2 * c), b1, w2.reshape(2 * c, PDIM), b2))
    p["head"] = head
    return p


# ----------------------------------------------------------------------------
# KFcosNet forward
# ----------------------------------------------------------------------------
def kfcos_net(params, x_nchw):
    x = jnp.transpose(x_nchw, (0, 2, 3, 1))                       # NCHW -> NHWC

    # --- backbone (synthetic) ---
    s = conv2d(x, *params["stem"], stride=2, pad=1, relu=True)    # /2
    c3 = conv2d(s, *params["c3"], stride=2, pad=1, relu=True)     # /4
    c4 = conv2d(c3, *params["c4"], stride=2, pad=1, relu=True)    # /8
    c5 = conv2d(c4, *params["c5"], stride=2, pad=1, relu=True)    # /16

    # --- FPN_out_v4 stand-in: 5 output levels, all FPN_DIM channels ---
    l5 = conv2d(c5, *params["lat5"], stride=1, pad=0)
    l4 = conv2d(c4, *params["lat4"], stride=1, pad=0) + upsample2x(l5)
    l3 = conv2d(c3, *params["lat3"], stride=1, pad=0) + upsample2x(l4)
    p3 = conv2d(l3, *params["sm3"], stride=1, pad=1)
    p4 = conv2d(l4, *params["sm4"], stride=1, pad=1)
    p5 = conv2d(l5, *params["sm5"], stride=1, pad=1)
    p6 = conv2d(p5, *params["p6"], stride=2, pad=1)
    # p6 ReLU folded into the p7 conv kernel's input path (no extra HBM pass).
    p7 = conv2d(p6, *params["p7"], stride=2, pad=1, relu_in=True)
    levels = [p3, p4, p5, p6, p7]

    # --- KFcosHead: all 5 levels fused into a single Pallas call ---
    return fused_head(levels, params["head"])                     # (N, sum HW, pdim)


if __name__ == "__main__":
    key = jax.random.PRNGKey(0)
    kp, kx = jax.random.split(key)
    params = make_params(kp)
    x = jax.random.normal(kx, (2, 3, 64, 64), jnp.float32)        # NCHW like PyTorch

    out = jax.jit(kfcos_net)(params, x)
    out = jax.block_until_ready(out)

    # 64x64 input -> P3..P7 spatial: 16,8,4,2,1 -> 256+64+16+4+1 = 341 locations
    assert out.shape == (2, 341, PDIM), out.shape
    assert out.dtype == jnp.float32
    print("KERNEL_OK")
</pallas_src>

<mosaic_0001>
module attributes {stable_mosaic.version = 11 : i64} {
  func.func @_matmul_bias_act_kernel(%arg0: i32, %arg1: memref<512x27xbf16, #tpu.memory_space<vmem>>, %arg2: memref<27x8xbf16, #tpu.memory_space<vmem>>, %arg3: memref<1x8xf32, #tpu.memory_space<vmem>>, %arg4: memref<512x8xf32, #tpu.memory_space<vmem>>) attributes {dimension_semantics = [#tpu.dimension_semantics<parallel>], iteration_bounds = array<i64: 4>, scalar_prefetch = 0 : i64, scratch_operands = 0 : i64, tpu.core_type = #tpu.core_type<tc>, window_params = [{transform_indices = @transform_0, window_bounds = array<i64: 512, 27>}, {pipeline_mode = #tpu.pipeline_mode<synchronous>, transform_indices = @transform_1, window_bounds = array<i64: 27, 8>}, {pipeline_mode = #tpu.pipeline_mode<synchronous>, transform_indices = @transform_2, window_bounds = array<i64: 1, 8>}, {transform_indices = @transform_3, window_bounds = array<i64: 512, 8>}]} {
    %c0 = arith.constant 0 : index
    %c0_0 = arith.constant 0 : index
    %0 = vector.load %arg1[%c0, %c0_0] : memref<512x27xbf16, #tpu.memory_space<vmem>>, vector<512x27xbf16>
    %c0_1 = arith.constant 0 : index
    %c0_2 = arith.constant 0 : index
    %1 = vector.load %arg2[%c0_1, %c0_2] : memref<27x8xbf16, #tpu.memory_space<vmem>>, vector<27x8xbf16>
    %cst = arith.constant dense<0.000000e+00> : vector<512x8xf32>
    %2 = tpu.matmul %0, %1, %cst {dimension_numbers = #tpu.dot_dimension_numbers<[1], [0], [0], [1], [0, 0, 1, 1], [], []>} : vector<512x27xbf16>, vector<27x8xbf16>, vector<512x8xf32> -> vector<512x8xf32>
    %c0_3 = arith.constant 0 : index
    %c0_4 = arith.constant 0 : index
    %3 = vector.load %arg3[%c0_3, %c0_4] : memref<1x8xf32, #tpu.memory_space<vmem>>, vector<1x8xf32>
    %4 = vector.broadcast %3 : vector<1x8xf32> to vector<512x8xf32>
    %5 = arith.addf %2, %4 : vector<512x8xf32>
    %cst_5 = arith.constant 0.000000e+00 : f32
    %6 = vector.broadcast %cst_5 : f32 to vector<512x8xf32>
    %7 = arith.maximumf %5, %6 : vector<512x8xf32>
    %c0_6 = arith.constant 0 : index
    %c0_7 = arith.constant 0 : index
    %8 = vector.load %arg4[%c0_6, %c0_7] : memref<512x8xf32, #tpu.memory_space<vmem>>, vector<512x8xf32>
    tpu.vector_store %arg4[%c0_6, %c0_7], %7 {strides = array<i32>} : memref<512x8xf32, #tpu.memory_space<vmem>>, vector<512x8xf32>,
    return
  }
  func.func @transform_0(%arg0: i32) -> (i32, i32) {
    %c0_i32 = arith.constant 0 : i32
    %c0_i32_0 = arith.constant 0 : i32
    return %arg0, %c0_i32 : i32, i32
  }
  func.func @transform_1(%arg0: i32) -> (i32, i32) {
    %c0_i32 = arith.constant 0 : i32
    %c0_i32_0 = arith.constant 0 : i32
    %c0_i32_1 = arith.constant 0 : i32
    return %c0_i32, %c0_i32_0 : i32, i32
  }
  func.func @transform_2(%arg0: i32) -> (i32, i32) {
    %c0_i32 = arith.constant 0 : i32
    %c0_i32_0 = arith.constant 0 : i32
    %c0_i32_1 = arith.constant 0 : i32
    return %c0_i32, %c0_i32_0 : i32, i32
  }
  func.func @transform_3(%arg0: i32) -> (i32, i32) {
    %c0_i32 = arith.constant 0 : i32
    %c0_i32_0 = arith.constant 0 : i32
    return %arg0, %c0_i32 : i32, i32
  }
}

module attributes {stable_mosaic.version = 11 : i64} {
  func.func @_matmul_bias_act_kernel(%arg0: i32, %arg1: memref<512x72xbf16, #tpu.memory_space<vmem>>, %arg2: memref<72x16xbf16, #tpu.memory_space<vmem>>, %arg3: memref<1x16xf32, #tpu.memory_space<vmem>>, %arg4: memref<512x16xf32, #tpu.memory_space<vmem>>) attributes {dimension_semantics = [#tpu.dimension_semantics<parallel>], iteration_bounds = array<i64: 1>, scalar_prefetch = 0 : i64, scratch_operands = 0 : i64, tpu.core_type = #tpu.core_type<tc>, window_params = [{transform_indices = @transform_0, window_bounds = array<i64: 512, 72>}, {pipeline_mode = #tpu.pipeline_mode<synchronous>, transform_indices = @transform_1, window_bounds = array<i64: 72, 16>}, {pipeline_mode = #tpu.pipeline_mode<synchronous>, transform_indices = @transform_2, window_bounds = array<i64: 1, 16>}, {transform_indices = @transform_3, window_bounds = array<i64: 512, 16>}]} {
    %c0 = arith.constant 0 : index
    %c0_0 = arith.constant 0 : index
    %0 = vector.load %arg1[%c0, %c0_0] : memref<512x72xbf16, #tpu.memory_space<vmem>>, vector<512x72xbf16>
    %c0_1 = arith.constant 0 : index
    %c0_2 = arith.constant 0 : index
    %1 = vector.load %arg2[%c0_1, %c0_2] : memref<72x16xbf16, #tpu.memory_space<vmem>>, vector<72x16xbf16>
    %cst = arith.constant dense<0.000000e+00> : vector<512x16xf32>
    %2 = tpu.matmul %0, %1, %cst {dimension_numbers = #tpu.dot_dimension_numbers<[1], [0], [0], [1], [0, 0, 1, 1], [], []>} : vector<512x72xbf16>, vector<72x16xbf16>, vector<512x16xf32> -> vector<512x16xf32>
    %c0_3 = arith.constant 0 : index
    %c0_4 = arith.constant 0 : index
    %3 = vector.load %arg3[%c0_3, %c0_4] : memref<1x16xf32, #tpu.memory_space<vmem>>, vector<1x16xf32>
    %4 = vector.broadcast %3 : vector<1x16xf32> to vector<512x16xf32>
    %5 = arith.addf %2, %4 : vector<512x16xf32>
    %cst_5 = arith.constant 0.000000e+00 : f32
    %6 = vector.broadcast %cst_5 : f32 to vector<512x16xf32>
    %7 = arith.maximumf %5, %6 : vector<512x16xf32>
    %c0_6 = arith.constant 0 : index
    %c0_7 = arith.constant 0 : index
    %8 = vector.load %arg4[%c0_6, %c0_7] : memref<512x16xf32, #tpu.memory_space<vmem>>, vector<512x16xf32>
    tpu.vector_store %arg4[%c0_6, %c0_7], %7 {strides = array<i32>} : memref<512x16xf32, #tpu.memory_space<vmem>>, vector<512x16xf32>,
    return
  }
  func.func @transform_0(%arg0: i32) -> (i32, i32) {
    %c0_i32 = arith.constant 0 : i32
    %c0_i32_0 = arith.constant 0 : i32
    return %arg0, %c0_i32 : i32, i32
  }
  func.func @transform_1(%arg0: i32) -> (i32, i32) {
    %c0_i32 = arith.constant 0 : i32
    %c0_i32_0 = arith.constant 0 : i32
    %c0_i32_1 = arith.constant 0 : i32
    return %c0_i32, %c0_i32_0 : i32, i32
  }
  func.func @transform_2(%arg0: i32) -> (i32, i32) {
    %c0_i32 = arith.constant 0 : i32
    %c0_i32_0 = arith.constant 0 : i32
    %c0_i32_1 = arith.constant 0 : i32
    return %c0_i32, %c0_i32_0 : i32, i32
  }
  func.func @transform_3(%arg0: i32) -> (i32, i32) {
    %c0_i32 = arith.constant 0 : i32
    %c0_i32_0 = arith.constant 0 : i32
    return %arg0, %c0_i32 : i32, i32
  }
}

module attributes {stable_mosaic.version = 11 : i64} {
  func.func @_matmul_bias_act_kernel(%arg0: i32, %arg1: memref<128x144xbf16, #tpu.memory_space<vmem>>, %arg2: memref<144x32xbf16, #tpu.memory_space<vmem>>, %arg3: memref<1x32xf32, #tpu.memory_space<vmem>>, %arg4: memref<128x32xf32, #tpu.memory_space<vmem>>) attributes {dimension_semantics = [#tpu.dimension_semantics<parallel>], iteration_bounds = array<i64: 1>, scalar_prefetch = 0 : i64, scratch_operands = 0 : i64, tpu.core_type = #tpu.core_type<tc>, window_params = [{transform_indices = @transform_0, window_bounds = array<i64: 128, 144>}, {pipeline_mode = #tpu.pipeline_mode<synchronous>, transform_indices = @transform_1, window_bounds = array<i64: 144, 32>}, {pipeline_mode = #tpu.pipeline_mode<synchronous>, transform_indices = @transform_2, window_bounds = array<i64: 1, 32>}, {transform_indices = @transform_3, window_bounds = array<i64: 128, 32>}]} {
    %c0 = arith.constant 0 : index
    %c0_0 = arith.constant 0 : index
    %0 = vector.load %arg1[%c0, %c0_0] : memref<128x144xbf16, #tpu.memory_space<vmem>>, vector<128x144xbf16>
    %c0_1 = arith.constant 0 : index
    %c0_2 = arith.constant 0 : index
    %1 = vector.load %arg2[%c0_1, %c0_2] : memref<144x32xbf16, #tpu.memory_space<vmem>>, vector<144x32xbf16>
    %cst = arith.constant dense<0.000000e+00> : vector<128x32xf32>
    %2 = tpu.matmul %0, %1, %cst {dimension_numbers = #tpu.dot_dimension_numbers<[1], [0], [0], [1], [0, 0, 1, 1], [], []>} : vector<128x144xbf16>, vector<144x32xbf16>, vector<128x32xf32> -> vector<128x32xf32>
    %c0_3 = arith.constant 0 : index
    %c0_4 = arith.constant 0 : index
    %3 = vector.load %arg3[%c0_3, %c0_4] : memref<1x32xf32, #tpu.memory_space<vmem>>, vector<1x32xf32>
    %4 = vector.broadcast %3 : vector<1x32xf32> to vector<128x32xf32>
    %5 = arith.addf %2, %4 : vector<128x32xf32>
    %cst_5 = arith.constant 0.000000e+00 : f32
    %6 = vector.broadcast %cst_5 : f32 to vector<128x32xf32>
    %7 = arith.maximumf %5, %6 : vector<128x32xf32>
    %c0_6 = arith.constant 0 : index
    %c0_7 = arith.constant 0 : index
    %8 = vector.load %arg4[%c0_6, %c0_7] : memref<128x32xf32, #tpu.memory_space<vmem>>, vector<128x32xf32>
    tpu.vector_store %arg4[%c0_6, %c0_7], %7 {strides = array<i32>} : memref<128x32xf32, #tpu.memory_space<vmem>>, vector<128x32xf32>,
    return
  }
  func.func @transform_0(%arg0: i32) -> (i32, i32) {
    %c0_i32 = arith.constant 0 : i32
    %c0_i32_0 = arith.constant 0 : i32
    return %arg0, %c0_i32 : i32, i32
  }
  func.func @transform_1(%arg0: i32) -> (i32, i32) {
    %c0_i32 = arith.constant 0 : i32
    %c0_i32_0 = arith.constant 0 : i32
    %c0_i32_1 = arith.constant 0 : i32
    return %c0_i32, %c0_i32_0 : i32, i32
  }
  func.func @transform_2(%arg0: i32) -> (i32, i32) {
    %c0_i32 = arith.constant 0 : i32
    %c0_i32_0 = arith.constant 0 : i32
    %c0_i32_1 = arith.constant 0 : i32
    return %c0_i32, %c0_i32_0 : i32, i32
  }
  func.func @transform_3(%arg0: i32) -> (i32, i32) {
    %c0_i32 = arith.constant 0 : i32
    %c0_i32_0 = arith.constant 0 : i32
    return %arg0, %c0_i32 : i32, i32
  }
}

module attributes {stable_mosaic.version = 11 : i64} {
  func.func @_matmul_bias_act_kernel(%arg0: i32, %arg1: memref<32x288xbf16, #tpu.memory_space<vmem>>, %arg2: memref<288x64xbf16, #tpu.memory_space<vmem>>, %arg3: memref<1x64xf32, #tpu.memory_space<vmem>>, %arg4: memref<32x64xf32, #tpu.memory_space<vmem>>) attributes {dimension_semantics = [#tpu.dimension_semantics<parallel>], iteration_bounds = array<i64: 1>, scalar_prefetch = 0 : i64, scratch_operands = 0 : i64, tpu.core_type = #tpu.core_type<tc>, window_params = [{transform_indices = @transform_0, window_bounds = array<i64: 32, 288>}, {pipeline_mode = #tpu.pipeline_mode<synchronous>, transform_indices = @transform_1, window_bounds = array<i64: 288, 64>}, {pipeline_mode = #tpu.pipeline_mode<synchronous>, transform_indices = @transform_2, window_bounds = array<i64: 1, 64>}, {transform_indices = @transform_3, window_bounds = array<i64: 32, 64>}]} {
    %c0 = arith.constant 0 : index
    %c0_0 = arith.constant 0 : index
    %0 = vector.load %arg1[%c0, %c0_0] : memref<32x288xbf16, #tpu.memory_space<vmem>>, vector<32x288xbf16>
    %c0_1 = arith.constant 0 : index
    %c0_2 = arith.constant 0 : index
    %1 = vector.load %arg2[%c0_1, %c0_2] : memref<288x64xbf16, #tpu.memory_space<vmem>>, vector<288x64xbf16>
    %cst = arith.constant dense<0.000000e+00> : vector<32x64xf32>
    %2 = tpu.matmul %0, %1, %cst {dimension_numbers = #tpu.dot_dimension_numbers<[1], [0], [0], [1], [0, 0, 1, 1], [], []>} : vector<32x288xbf16>, vector<288x64xbf16>, vector<32x64xf32> -> vector<32x64xf32>
    %c0_3 = arith.constant 0 : index
    %c0_4 = arith.constant 0 : index
    %3 = vector.load %arg3[%c0_3, %c0_4] : memref<1x64xf32, #tpu.memory_space<vmem>>, vector<1x64xf32>
    %4 = vector.broadcast %3 : vector<1x64xf32> to vector<32x64xf32>
    %5 = arith.addf %2, %4 : vector<32x64xf32>
    %cst_5 = arith.constant 0.000000e+00 : f32
    %6 = vector.broadcast %cst_5 : f32 to vector<32x64xf32>
    %7 = arith.maximumf %5, %6 : vector<32x64xf32>
    %c0_6 = arith.constant 0 : index
    %c0_7 = arith.constant 0 : index
    %8 = vector.load %arg4[%c0_6, %c0_7] : memref<32x64xf32, #tpu.memory_space<vmem>>, vector<32x64xf32>
    tpu.vector_store %arg4[%c0_6, %c0_7], %7 {strides = array<i32>} : memref<32x64xf32, #tpu.memory_space<vmem>>, vector<32x64xf32>,
    return
  }
  func.func @transform_0(%arg0: i32) -> (i32, i32) {
    %c0_i32 = arith.constant 0 : i32
    %c0_i32_0 = arith.constant 0 : i32
    return %arg0, %c0_i32 : i32, i32
  }
  func.func @transform_1(%arg0: i32) -> (i32, i32) {
    %c0_i32 = arith.constant 0 : i32
    %c0_i32_0 = arith.constant 0 : i32
    %c0_i32_1 = arith.constant 0 : i32
    return %c0_i32, %c0_i32_0 : i32, i32
  }
  func.func @transform_2(%arg0: i32) -> (i32, i32) {
    %c0_i32 = arith.constant 0 : i32
    %c0_i32_0 = arith.constant 0 : i32
    %c0_i32_1 = arith.constant 0 : i32
    return %c0_i32, %c0_i32_0 : i32, i32
  }
  func.func @transform_3(%arg0: i32) -> (i32, i32) {
    %c0_i32 = arith.constant 0 : i32
    %c0_i32_0 = arith.constant 0 : i32
    return %arg0, %c0_i32 : i32, i32
  }
}

module attributes {stable_mosaic.version = 11 : i64} {
  func.func @_matmul_bias_act_kernel(%arg0: i32, %arg1: memref<32x64xbf16, #tpu.memory_space<vmem>>, %arg2: memref<64x16xbf16, #tpu.memory_space<vmem>>, %arg3: memref<1x16xf32, #tpu.memory_space<vmem>>, %arg4: memref<32x16xf32, #tpu.memory_space<vmem>>) attributes {dimension_semantics = [#tpu.dimension_semantics<parallel>], iteration_bounds = array<i64: 1>, scalar_prefetch = 0 : i64, scratch_operands = 0 : i64, tpu.core_type = #tpu.core_type<tc>, window_params = [{transform_indices = @transform_0, window_bounds = array<i64: 32, 64>}, {pipeline_mode = #tpu.pipeline_mode<synchronous>, transform_indices = @transform_1, window_bounds = array<i64: 64, 16>}, {pipeline_mode = #tpu.pipeline_mode<synchronous>, transform_indices = @transform_2, window_bounds = array<i64: 1, 16>}, {transform_indices = @transform_3, window_bounds = array<i64: 32, 16>}]} {
    %c0 = arith.constant 0 : index
    %c0_0 = arith.constant 0 : index
    %0 = vector.load %arg1[%c0, %c0_0] : memref<32x64xbf16, #tpu.memory_space<vmem>>, vector<32x64xbf16>
    %c0_1 = arith.constant 0 : index
    %c0_2 = arith.constant 0 : index
    %1 = vector.load %arg2[%c0_1, %c0_2] : memref<64x16xbf16, #tpu.memory_space<vmem>>, vector<64x16xbf16>
    %cst = arith.constant dense<0.000000e+00> : vector<32x16xf32>
    %2 = tpu.matmul %0, %1, %cst {dimension_numbers = #tpu.dot_dimension_numbers<[1], [0], [0], [1], [0, 0, 1, 1], [], []>} : vector<32x64xbf16>, vector<64x16xbf16>, vector<32x16xf32> -> vector<32x16xf32>
    %c0_3 = arith.constant 0 : index
    %c0_4 = arith.constant 0 : index
    %3 = vector.load %arg3[%c0_3, %c0_4] : memref<1x16xf32, #tpu.memory_space<vmem>>, vector<1x16xf32>
    %4 = vector.broadcast %3 : vector<1x16xf32> to vector<32x16xf32>
    %5 = arith.addf %2, %4 : vector<32x16xf32>
    %c0_5 = arith.constant 0 : index
    %c0_6 = arith.constant 0 : index
    %6 = vector.load %arg4[%c0_5, %c0_6] : memref<32x16xf32, #tpu.memory_space<vmem>>, vector<32x16xf32>
    tpu.vector_store %arg4[%c0_5, %c0_6], %5 {strides = array<i32>} : memref<32x16xf32, #tpu.memory_space<vmem>>, vector<32x16xf32>,
    return
  }
  func.func @transform_0(%arg0: i32) -> (i32, i32) {
    %c0_i32 = arith.constant 0 : i32
    %c0_i32_0 = arith.constant 0 : i32
    return %arg0, %c0_i32 : i32, i32
  }
  func.func @transform_1(%arg0: i32) -> (i32, i32) {
    %c0_i32 = arith.constant 0 : i32
    %c0_i32_0 = arith.constant 0 : i32
    %c0_i32_1 = arith.constant 0 : i32
    return %c0_i32, %c0_i32_0 : i32, i32
  }
  func.func @transform_2(%arg0: i32) -> (i32, i32) {
    %c0_i32 = arith.constant 0 : i32
    %c0_i32_0 = arith.constant 0 : i32
    %c0_i32_1 = arith.constant 0 : i32
    return %c0_i32, %c0_i32_0 : i32, i32
  }
  func.func @transform_3(%arg0: i32) -> (i32, i32) {
    %c0_i32 = arith.constant 0 : i32
    %c0_i32_0 = arith.constant 0 : i32
    return %arg0, %c0_i32 : i32, i32
  }
}

module attributes {stable_mosaic.version = 11 : i64} {
  func.func @_matmul_bias_act_kernel(%arg0: i32, %arg1: memref<32x144xbf16, #tpu.memory_space<vmem>>, %arg2: memref<144x16xbf16, #tpu.memory_space<vmem>>, %arg3: memref<1x16xf32, #tpu.memory_space<vmem>>, %arg4: memref<32x16xf32, #tpu.memory_space<vmem>>) attributes {dimension_semantics = [#tpu.dimension_semantics<parallel>], iteration_bounds = array<i64: 1>, scalar_prefetch = 0 : i64, scratch_operands = 0 : i64, tpu.core_type = #tpu.core_type<tc>, window_params = [{transform_indices = @transform_0, window_bounds = array<i64: 32, 144>}, {pipeline_mode = #tpu.pipeline_mode<synchronous>, transform_indices = @transform_1, window_bounds = array<i64: 144, 16>}, {pipeline_mode = #tpu.pipeline_mode<synchronous>, transform_indices = @transform_2, window_bounds = array<i64: 1, 16>}, {transform_indices = @transform_3, window_bounds = array<i64: 32, 16>}]} {
    %c0 = arith.constant 0 : index
    %c0_0 = arith.constant 0 : index
    %0 = vector.load %arg1[%c0, %c0_0] : memref<32x144xbf16, #tpu.memory_space<vmem>>, vector<32x144xbf16>
    %c0_1 = arith.constant 0 : index
    %c0_2 = arith.constant 0 : index
    %1 = vector.load %arg2[%c0_1, %c0_2] : memref<144x16xbf16, #tpu.memory_space<vmem>>, vector<144x16xbf16>
    %cst = arith.constant dense<0.000000e+00> : vector<32x16xf32>
    %2 = tpu.matmul %0, %1, %cst {dimension_numbers = #tpu.dot_dimension_numbers<[1], [0], [0], [1], [0, 0, 1, 1], [], []>} : vector<32x144xbf16>, vector<144x16xbf16>, vector<32x16xf32> -> vector<32x16xf32>
    %c0_3 = arith.constant 0 : index
    %c0_4 = arith.constant 0 : index
    %3 = vector.load %arg3[%c0_3, %c0_4] : memref<1x16xf32, #tpu.memory_space<vmem>>, vector<1x16xf32>
    %4 = vector.broadcast %3 : vector<1x16xf32> to vector<32x16xf32>
    %5 = arith.addf %2, %4 : vector<32x16xf32>
    %c0_5 = arith.constant 0 : index
    %c0_6 = arith.constant 0 : index
    %6 = vector.load %arg4[%c0_5, %c0_6] : memref<32x16xf32, #tpu.memory_space<vmem>>, vector<32x16xf32>
    tpu.vector_store %arg4[%c0_5, %c0_6], %5 {strides = array<i32>} : memref<32x16xf32, #tpu.memory_space<vmem>>, vector<32x16xf32>,
    return
  }
  func.func @transform_0(%arg0: i32) -> (i32, i32) {
    %c0_i32 = arith.constant 0 : i32
    %c0_i32_0 = arith.constant 0 : i32
    return %arg0, %c0_i32 : i32, i32
  }
  func.func @transform_1(%arg0: i32) -> (i32, i32) {
    %c0_i32 = arith.constant 0 : i32
    %c0_i32_0 = arith.constant 0 : i32
    %c0_i32_1 = arith.constant 0 : i32
    return %c0_i32, %c0_i32_0 : i32, i32
  }
  func.func @transform_2(%arg0: i32) -> (i32, i32) {
    %c0_i32 = arith.constant 0 : i32
    %c0_i32_0 = arith.constant 0 : i32
    %c0_i32_1 = arith.constant 0 : i32
    return %c0_i32, %c0_i32_0 : i32, i32
  }
  func.func @transform_3(%arg0: i32) -> (i32, i32) {
    %c0_i32 = arith.constant 0 : i32
    %c0_i32_0 = arith.constant 0 : i32
    return %arg0, %c0_i32 : i32, i32
  }
}

module attributes {stable_mosaic.version = 11 : i64} {
  func.func @_matmul_bias_act_kernel(%arg0: i32, %arg1: memref<8x144xbf16, #tpu.memory_space<vmem>>, %arg2: memref<144x16xbf16, #tpu.memory_space<vmem>>, %arg3: memref<1x16xf32, #tpu.memory_space<vmem>>, %arg4: memref<8x16xf32, #tpu.memory_space<vmem>>) attributes {dimension_semantics = [#tpu.dimension_semantics<parallel>], iteration_bounds = array<i64: 1>, scalar_prefetch = 0 : i64, scratch_operands = 0 : i64, tpu.core_type = #tpu.core_type<tc>, window_params = [{transform_indices = @transform_0, window_bounds = array<i64: 8, 144>}, {pipeline_mode = #tpu.pipeline_mode<synchronous>, transform_indices = @transform_1, window_bounds = array<i64: 144, 16>}, {pipeline_mode = #tpu.pipeline_mode<synchronous>, transform_indices = @transform_2, window_bounds = array<i64: 1, 16>}, {transform_indices = @transform_3, window_bounds = array<i64: 8, 16>}]} {
    %c0 = arith.constant 0 : index
    %c0_0 = arith.constant 0 : index
    %0 = vector.load %arg1[%c0, %c0_0] : memref<8x144xbf16, #tpu.memory_space<vmem>>, vector<8x144xbf16>
    %c0_1 = arith.constant 0 : index
    %c0_2 = arith.constant 0 : index
    %1 = vector.load %arg2[%c0_1, %c0_2] : memref<144x16xbf16, #tpu.memory_space<vmem>>, vector<144x16xbf16>
    %cst = arith.constant dense<0.000000e+00> : vector<8x16xf32>
    %2 = tpu.matmul %0, %1, %cst {dimension_numbers = #tpu.dot_dimension_numbers<[1], [0], [0], [1], [0, 0, 1, 1], [], []>} : vector<8x144xbf16>, vector<144x16xbf16>, vector<8x16xf32> -> vector<8x16xf32>
    %c0_3 = arith.constant 0 : index
    %c0_4 = arith.constant 0 : index
    %3 = vector.load %arg3[%c0_3, %c0_4] : memref<1x16xf32, #tpu.memory_space<vmem>>, vector<1x16xf32>
    %4 = vector.broadcast %3 : vector<1x16xf32> to vector<8x16xf32>
    %5 = arith.addf %2, %4 : vector<8x16xf32>
    %c0_5 = arith.constant 0 : index
    %c0_6 = arith.constant 0 : index
    %6 = vector.load %arg4[%c0_5, %c0_6] : memref<8x16xf32, #tpu.memory_space<vmem>>, vector<8x16xf32>
    tpu.vector_store %arg4[%c0_5, %c0_6], %5 {strides = array<i32>} : memref<8x16xf32, #tpu.memory_space<vmem>>, vector<8x16xf32>,
    return
  }
  func.func @transform_0(%arg0: i32) -> (i32, i32) {
    %c0_i32 = arith.constant 0 : i32
    %c0_i32_0 = arith.constant 0 : i32
    return %arg0, %c0_i32 : i32, i32
  }
  func.func @transform_1(%arg0: i32) -> (i32, i32) {
    %c0_i32 = arith.constant 0 : i32
    %c0_i32_0 = arith.constant 0 : i32
    %c0_i32_1 = arith.constant 0 : i32
    return %c0_i32, %c0_i32_0 : i32, i32
  }
  func.func @transform_2(%arg0: i32) -> (i32, i32) {
    %c0_i32 = arith.constant 0 : i32
    %c0_i32_0 = arith.constant 0 : i32
    %c0_i32_1 = arith.constant 0 : i32
    return %c0_i32, %c0_i32_0 : i32, i32
  }
  func.func @transform_3(%arg0: i32) -> (i32, i32) {
    %c0_i32 = arith.constant 0 : i32
    %c0_i32_0 = arith.constant 0 : i32
    return %arg0, %c0_i32 : i32, i32
  }
}

module attributes {stable_mosaic.version = 11 : i64} {
  func.func @_matmul_bias_act_kernel(%arg0: i32, %arg1: memref<128x32xbf16, #tpu.memory_space<vmem>>, %arg2: memref<32x16xbf16, #tpu.memory_space<vmem>>, %arg3: memref<1x16xf32, #tpu.memory_space<vmem>>, %arg4: memref<128x16xf32, #tpu.memory_space<vmem>>) attributes {dimension_semantics = [#tpu.dimension_semantics<parallel>], iteration_bounds = array<i64: 1>, scalar_prefetch = 0 : i64, scratch_operands = 0 : i64, tpu.core_type = #tpu.core_type<tc>, window_params = [{transform_indices = @transform_0, window_bounds = array<i64: 128, 32>}, {pipeline_mode = #tpu.pipeline_mode<synchronous>, transform_indices = @transform_1, window_bounds = array<i64: 32, 16>}, {pipeline_mode = #tpu.pipeline_mode<synchronous>, transform_indices = @transform_2, window_bounds = array<i64: 1, 16>}, {transform_indices = @transform_3, window_bounds = array<i64: 128, 16>}]} {
    %c0 = arith.constant 0 : index
    %c0_0 = arith.constant 0 : index
    %0 = vector.load %arg1[%c0, %c0_0] : memref<128x32xbf16, #tpu.memory_space<vmem>>, vector<128x32xbf16>
    %c0_1 = arith.constant 0 : index
    %c0_2 = arith.constant 0 : index
    %1 = vector.load %arg2[%c0_1, %c0_2] : memref<32x16xbf16, #tpu.memory_space<vmem>>, vector<32x16xbf16>
    %cst = arith.constant dense<0.000000e+00> : vector<128x16xf32>
    %2 = tpu.matmul %0, %1, %cst {dimension_numbers = #tpu.dot_dimension_numbers<[1], [0], [0], [1], [0, 0, 1, 1], [], []>} : vector<128x32xbf16>, vector<32x16xbf16>, vector<128x16xf32> -> vector<128x16xf32>
    %c0_3 = arith.constant 0 : index
    %c0_4 = arith.constant 0 : index
    %3 = vector.load %arg3[%c0_3, %c0_4] : memref<1x16xf32, #tpu.memory_space<vmem>>, vector<1x16xf32>
    %4 = vector.broadcast %3 : vector<1x16xf32> to vector<128x16xf32>
    %5 = arith.addf %2, %4 : vector<128x16xf32>
    %c0_5 = arith.constant 0 : index
    %c0_6 = arith.constant 0 : index
    %6 = vector.load %arg4[%c0_5, %c0_6] : memref<128x16xf32, #tpu.memory_space<vmem>>, vector<128x16xf32>
    tpu.vector_store %arg4[%c0_5, %c0_6], %5 {strides = array<i32>} : memref<128x16xf32, #tpu.memory_space<vmem>>, vector<128x16xf32>,
    return
  }
  func.func @transform_0(%arg0: i32) -> (i32, i32) {
    %c0_i32 = arith.constant 0 : i32
    %c0_i32_0 = arith.constant 0 : i32
    return %arg0, %c0_i32 : i32, i32
  }
  func.func @transform_1(%arg0: i32) -> (i32, i32) {
    %c0_i32 = arith.constant 0 : i32
    %c0_i32_0 = arith.constant 0 : i32
    %c0_i32_1 = arith.constant 0 : i32
    return %c0_i32, %c0_i32_0 : i32, i32
  }
  func.func @transform_2(%arg0: i32) -> (i32, i32) {
    %c0_i32 = arith.constant 0 : i32
    %c0_i32_0 = arith.constant 0 : i32
    %c0_i32_1 = arith.constant 0 : i32
    return %c0_i32, %c0_i32_0 : i32, i32
  }
  func.func @transform_3(%arg0: i32) -> (i32, i32) {
    %c0_i32 = arith.constant 0 : i32
    %c0_i32_0 = arith.constant 0 : i32
    return %arg0, %c0_i32 : i32, i32
  }
}

module attributes {stable_mosaic.version = 11 : i64} {
  func.func @_matmul_bias_act_kernel(%arg0: i32, %arg1: memref<128x144xbf16, #tpu.memory_space<vmem>>, %arg2: memref<144x16xbf16, #tpu.memory_space<vmem>>, %arg3: memref<1x16xf32, #tpu.memory_space<vmem>>, %arg4: memref<128x16xf32, #tpu.memory_space<vmem>>) attributes {dimension_semantics = [#tpu.dimension_semantics<parallel>], iteration_bounds = array<i64: 1>, scalar_prefetch = 0 : i64, scratch_operands = 0 : i64, tpu.core_type = #tpu.core_type<tc>, window_params = [{transform_indices = @transform_0, window_bounds = array<i64: 128, 144>}, {pipeline_mode = #tpu.pipeline_mode<synchronous>, transform_indices = @transform_1, window_bounds = array<i64: 144, 16>}, {pipeline_mode = #tpu.pipeline_mode<synchronous>, transform_indices = @transform_2, window_bounds = array<i64: 1, 16>}, {transform_indices = @transform_3, window_bounds = array<i64: 128, 16>}]} {
    %c0 = arith.constant 0 : index
    %c0_0 = arith.constant 0 : index
    %0 = vector.load %arg1[%c0, %c0_0] : memref<128x144xbf16, #tpu.memory_space<vmem>>, vector<128x144xbf16>
    %c0_1 = arith.constant 0 : index
    %c0_2 = arith.constant 0 : index
    %1 = vector.load %arg2[%c0_1, %c0_2] : memref<144x16xbf16, #tpu.memory_space<vmem>>, vector<144x16xbf16>
    %cst = arith.constant dense<0.000000e+00> : vector<128x16xf32>
    %2 = tpu.matmul %0, %1, %cst {dimension_numbers = #tpu.dot_dimension_numbers<[1], [0], [0], [1], [0, 0, 1, 1], [], []>} : vector<128x144xbf16>, vector<144x16xbf16>, vector<128x16xf32> -> vector<128x16xf32>
    %c0_3 = arith.constant 0 : index
    %c0_4 = arith.constant 0 : index
    %3 = vector.load %arg3[%c0_3, %c0_4] : memref<1x16xf32, #tpu.memory_space<vmem>>, vector<1x16xf32>
    %4 = vector.broadcast %3 : vector<1x16xf32> to vector<128x16xf32>
    %5 = arith.addf %2, %4 : vector<128x16xf32>
    %c0_5 = arith.constant 0 : index
    %c0_6 = arith.constant 0 : index
    %6 = vector.load %arg4[%c0_5, %c0_6] : memref<128x16xf32, #tpu.memory_space<vmem>>, vector<128x16xf32>
    tpu.vector_store %arg4[%c0_5, %c0_6], %5 {strides = array<i32>} : memref<128x16xf32, #tpu.memory_space<vmem>>, vector<128x16xf32>,
    return
  }
  func.func @transform_0(%arg0: i32) -> (i32, i32) {
    %c0_i32 = arith.constant 0 : i32
    %c0_i32_0 = arith.constant 0 : i32
    return %arg0, %c0_i32 : i32, i32
  }
  func.func @transform_1(%arg0: i32) -> (i32, i32) {
    %c0_i32 = arith.constant 0 : i32
    %c0_i32_0 = arith.constant 0 : i32
    %c0_i32_1 = arith.constant 0 : i32
    return %c0_i32, %c0_i32_0 : i32, i32
  }
  func.func @transform_2(%arg0: i32) -> (i32, i32) {
    %c0_i32 = arith.constant 0 : i32
    %c0_i32_0 = arith.constant 0 : i32
    %c0_i32_1 = arith.constant 0 : i32
    return %c0_i32, %c0_i32_0 : i32, i32
  }
  func.func @transform_3(%arg0: i32) -> (i32, i32) {
    %c0_i32 = arith.constant 0 : i32
    %c0_i32_0 = arith.constant 0 : i32
    return %arg0, %c0_i32 : i32, i32
  }
}

module attributes {stable_mosaic.version = 11 : i64} {
  func.func @_matmul_bias_act_kernel(%arg0: i32, %arg1: memref<8x144xbf16, #tpu.memory_space<vmem>>, %arg2: memref<144x16xbf16, #tpu.memory_space<vmem>>, %arg3: memref<1x16xf32, #tpu.memory_space<vmem>>, %arg4: memref<8x16xf32, #tpu.memory_space<vmem>>) attributes {dimension_semantics = [#tpu.dimension_semantics<parallel>], iteration_bounds = array<i64: 1>, scalar_prefetch = 0 : i64, scratch_operands = 0 : i64, tpu.core_type = #tpu.core_type<tc>, window_params = [{transform_indices = @transform_0, window_bounds = array<i64: 8, 144>}, {pipeline_mode = #tpu.pipeline_mode<synchronous>, transform_indices = @transform_1, window_bounds = array<i64: 144, 16>}, {pipeline_mode = #tpu.pipeline_mode<synchronous>, transform_indices = @transform_2, window_bounds = array<i64: 1, 16>}, {transform_indices = @transform_3, window_bounds = array<i64: 8, 16>}]} {
    %c0 = arith.constant 0 : index
    %c0_0 = arith.constant 0 : index
    %0 = vector.load %arg1[%c0, %c0_0] : memref<8x144xbf16, #tpu.memory_space<vmem>>, vector<8x144xbf16>
    %cst = arith.constant 0.000000e+00 : bf16
    %1 = vector.broadcast %cst : bf16 to vector<8x144xbf16>
    %2 = arith.maximumf %0, %1 : vector<8x144xbf16>
    %c0_1 = arith.constant 0 : index
    %c0_2 = arith.constant 0 : index
    %3 = vector.load %arg2[%c0_1, %c0_2] : memref<144x16xbf16, #tpu.memory_space<vmem>>, vector<144x16xbf16>
    %cst_3 = arith.constant dense<0.000000e+00> : vector<8x16xf32>
    %4 = tpu.matmul %2, %3, %cst_3 {dimension_numbers = #tpu.dot_dimension_numbers<[1], [0], [0], [1], [0, 0, 1, 1], [], []>} : vector<8x144xbf16>, vector<144x16xbf16>, vector<8x16xf32> -> vector<8x16xf32>
    %c0_4 = arith.constant 0 : index
    %c0_5 = arith.constant 0 : index
    %5 = vector.load %arg3[%c0_4, %c0_5] : memref<1x16xf32, #tpu.memory_space<vmem>>, vector<1x16xf32>
    %6 = vector.broadcast %5 : vector<1x16xf32> to vector<8x16xf32>
    %7 = arith.addf %4, %6 : vector<8x16xf32>
    %c0_6 = arith.constant 0 : index
    %c0_7 = arith.constant 0 : index
    %8 = vector.load %arg4[%c0_6, %c0_7] : memref<8x16xf32, #tpu.memory_space<vmem>>, vector<8x16xf32>
    tpu.vector_store %arg4[%c0_6, %c0_7], %7 {strides = array<i32>} : memref<8x16xf32, #tpu.memory_space<vmem>>, vector<8x16xf32>,
    return
  }
  func.func @transform_0(%arg0: i32) -> (i32, i32) {
    %c0_i32 = arith.constant 0 : i32
    %c0_i32_0 = arith.constant 0 : i32
    return %arg0, %c0_i32 : i32, i32
  }
  func.func @transform_1(%arg0: i32) -> (i32, i32) {
    %c0_i32 = arith.constant 0 : i32
    %c0_i32_0 = arith.constant 0 : i32
    %c0_i32_1 = arith.constant 0 : i32
    return %c0_i32, %c0_i32_0 : i32, i32
  }
  func.func @transform_2(%arg0: i32) -> (i32, i32) {
    %c0_i32 = arith.constant 0 : i32
    %c0_i32_0 = arith.constant 0 : i32
    %c0_i32_1 = arith.constant 0 : i32
    return %c0_i32, %c0_i32_0 : i32, i32
  }
  func.func @transform_3(%arg0: i32) -> (i32, i32) {
    %c0_i32 = arith.constant 0 : i32
    %c0_i32_0 = arith.constant 0 : i32
    return %arg0, %c0_i32 : i32, i32
  }
}

module attributes {stable_mosaic.version = 11 : i64} {
  func.func @_matmul_bias_act_kernel(%arg0: i32, %arg1: memref<512x16xbf16, #tpu.memory_space<vmem>>, %arg2: memref<16x16xbf16, #tpu.memory_space<vmem>>, %arg3: memref<1x16xf32, #tpu.memory_space<vmem>>, %arg4: memref<512x16xf32, #tpu.memory_space<vmem>>) attributes {dimension_semantics = [#tpu.dimension_semantics<parallel>], iteration_bounds = array<i64: 1>, scalar_prefetch = 0 : i64, scratch_operands = 0 : i64, tpu.core_type = #tpu.core_type<tc>, window_params = [{transform_indices = @transform_0, window_bounds = array<i64: 512, 16>}, {pipeline_mode = #tpu.pipeline_mode<synchronous>, transform_indices = @transform_1, window_bounds = array<i64: 16, 16>}, {pipeline_mode = #tpu.pipeline_mode<synchronous>, transform_indices = @transform_2, window_bounds = array<i64: 1, 16>}, {transform_indices = @transform_3, window_bounds = array<i64: 512, 16>}]} {
    %c0 = arith.constant 0 : index
    %c0_0 = arith.constant 0 : index
    %0 = vector.load %arg1[%c0, %c0_0] : memref<512x16xbf16, #tpu.memory_space<vmem>>, vector<512x16xbf16>
    %c0_1 = arith.constant 0 : index
    %c0_2 = arith.constant 0 : index
    %1 = vector.load %arg2[%c0_1, %c0_2] : memref<16x16xbf16, #tpu.memory_space<vmem>>, vector<16x16xbf16>
    %cst = arith.constant dense<0.000000e+00> : vector<512x16xf32>
    %2 = tpu.matmul %0, %1, %cst {dimension_numbers = #tpu.dot_dimension_numbers<[1], [0], [0], [1], [0, 0, 1, 1], [], []>} : vector<512x16xbf16>, vector<16x16xbf16>, vector<512x16xf32> -> vector<512x16xf32>
    %c0_3 = arith.constant 0 : index
    %c0_4 = arith.constant 0 : index
    %3 = vector.load %arg3[%c0_3, %c0_4] : memref<1x16xf32, #tpu.memory_space<vmem>>, vector<1x16xf32>
    %4 = vector.broadcast %3 : vector<1x16xf32> to vector<512x16xf32>
    %5 = arith.addf %2, %4 : vector<512x16xf32>
    %c0_5 = arith.constant 0 : index
    %c0_6 = arith.constant 0 : index
    %6 = vector.load %arg4[%c0_5, %c0_6] : memref<512x16xf32, #tpu.memory_space<vmem>>, vector<512x16xf32>
    tpu.vector_store %arg4[%c0_5, %c0_6], %5 {strides = array<i32>} : memref<512x16xf32, #tpu.memory_space<vmem>>, vector<512x16xf32>,
    return
  }
  func.func @transform_0(%arg0: i32) -> (i32, i32) {
    %c0_i32 = arith.constant 0 : i32
    %c0_i32_0 = arith.constant 0 : i32
    return %arg0, %c0_i32 : i32, i32
  }
  func.func @transform_1(%arg0: i32) -> (i32, i32) {
    %c0_i32 = arith.constant 0 : i32
    %c0_i32_0 = arith.constant 0 : i32
    %c0_i32_1 = arith.constant 0 : i32
    return %c0_i32, %c0_i32_0 : i32, i32
  }
  func.func @transform_2(%arg0: i32) -> (i32, i32) {
    %c0_i32 = arith.constant 0 : i32
    %c0_i32_0 = arith.constant 0 : i32
    %c0_i32_1 = arith.constant 0 : i32
    return %c0_i32, %c0_i32_0 : i32, i32
  }
  func.func @transform_3(%arg0: i32) -> (i32, i32) {
    %c0_i32 = arith.constant 0 : i32
    %c0_i32_0 = arith.constant 0 : i32
    return %arg0, %c0_i32 : i32, i32
  }
}

module attributes {stable_mosaic.version = 11 : i64} {
  func.func @_matmul_bias_act_kernel(%arg0: i32, %arg1: memref<512x144xbf16, #tpu.memory_space<vmem>>, %arg2: memref<144x16xbf16, #tpu.memory_space<vmem>>, %arg3: memref<1x16xf32, #tpu.memory_space<vmem>>, %arg4: memref<512x16xf32, #tpu.memory_space<vmem>>) attributes {dimension_semantics = [#tpu.dimension_semantics<parallel>], iteration_bounds = array<i64: 1>, scalar_prefetch = 0 : i64, scratch_operands = 0 : i64, tpu.core_type = #tpu.core_type<tc>, window_params = [{transform_indices = @transform_0, window_bounds = array<i64: 512, 144>}, {pipeline_mode = #tpu.pipeline_mode<synchronous>, transform_indices = @transform_1, window_bounds = array<i64: 144, 16>}, {pipeline_mode = #tpu.pipeline_mode<synchronous>, transform_indices = @transform_2, window_bounds = array<i64: 1, 16>}, {transform_indices = @transform_3, window_bounds = array<i64: 512, 16>}]} {
    %c0 = arith.constant 0 : index
    %c0_0 = arith.constant 0 : index
    %0 = vector.load %arg1[%c0, %c0_0] : memref<512x144xbf16, #tpu.memory_space<vmem>>, vector<512x144xbf16>
    %c0_1 = arith.constant 0 : index
    %c0_2 = arith.constant 0 : index
    %1 = vector.load %arg2[%c0_1, %c0_2] : memref<144x16xbf16, #tpu.memory_space<vmem>>, vector<144x16xbf16>
    %cst = arith.constant dense<0.000000e+00> : vector<512x16xf32>
    %2 = tpu.matmul %0, %1, %cst {dimension_numbers = #tpu.dot_dimension_numbers<[1], [0], [0], [1], [0, 0, 1, 1], [], []>} : vector<512x144xbf16>, vector<144x16xbf16>, vector<512x16xf32> -> vector<512x16xf32>
    %c0_3 = arith.constant 0 : index
    %c0_4 = arith.constant 0 : index
    %3 = vector.load %arg3[%c0_3, %c0_4] : memref<1x16xf32, #tpu.memory_space<vmem>>, vector<1x16xf32>
    %4 = vector.broadcast %3 : vector<1x16xf32> to vector<512x16xf32>
    %5 = arith.addf %2, %4 : vector<512x16xf32>
    %c0_5 = arith.constant 0 : index
    %c0_6 = arith.constant 0 : index
    %6 = vector.load %arg4[%c0_5, %c0_6] : memref<512x16xf32, #tpu.memory_space<vmem>>, vector<512x16xf32>
    tpu.vector_store %arg4[%c0_5, %c0_6], %5 {strides = array<i32>} : memref<512x16xf32, #tpu.memory_space<vmem>>, vector<512x16xf32>,
    return
  }
  func.func @transform_0(%arg0: i32) -> (i32, i32) {
    %c0_i32 = arith.constant 0 : i32
    %c0_i32_0 = arith.constant 0 : i32
    return %arg0, %c0_i32 : i32, i32
  }
  func.func @transform_1(%arg0: i32) -> (i32, i32) {
    %c0_i32 = arith.constant 0 : i32
    %c0_i32_0 = arith.constant 0 : i32
    %c0_i32_1 = arith.constant 0 : i32
    return %c0_i32, %c0_i32_0 : i32, i32
  }
  func.func @transform_2(%arg0: i32) -> (i32, i32) {
    %c0_i32 = arith.constant 0 : i32
    %c0_i32_0 = arith.constant 0 : i32
    %c0_i32_1 = arith.constant 0 : i32
    return %c0_i32, %c0_i32_0 : i32, i32
  }
  func.func @transform_3(%arg0: i32) -> (i32, i32) {
    %c0_i32 = arith.constant 0 : i32
    %c0_i32_0 = arith.constant 0 : i32
    return %arg0, %c0_i32 : i32, i32
  }
}

module attributes {stable_mosaic.version = 11 : i64} {
  func.func @_head_fused_kernel(%arg0: i32, %arg1: memref<6xi32, #tpu.memory_space<smem>>, %arg2: memref<256x144xbf16, #tpu.memory_space<vmem>>, %arg3: memref<1x144x32xbf16, #tpu.memory_space<vmem>>, %arg4: memref<1x1x32xf32, #tpu.memory_space<vmem>>, %arg5: memref<1x32x128xbf16, #tpu.memory_space<vmem>>, %arg6: memref<1x1x128xf32, #tpu.memory_space<vmem>>, %arg7: memref<256x128xf32, #tpu.memory_space<vmem>>) attributes {dimension_semantics = [#tpu.dimension_semantics<parallel>], iteration_bounds = array<i64: 6>, scalar_prefetch = 1 : i64, scratch_operands = 0 : i64, tpu.core_type = #tpu.core_type<tc>, window_params = [{transform_indices = @transform_0, window_bounds = array<i64: 256, 144>}, {transform_indices = @transform_1, window_bounds = array<i64: 1, 144, 32>}, {transform_indices = @transform_2, window_bounds = array<i64: 1, 1, 32>}, {transform_indices = @transform_3, window_bounds = array<i64: 1, 32, 128>}, {transform_indices = @transform_4, window_bounds = array<i64: 1, 1, 128>}, {transform_indices = @transform_5, window_bounds = array<i64: 256, 128>}]} {
    %c0 = arith.constant 0 : index
    %c0_0 = arith.constant 0 : index
    %0 = vector.load %arg2[%c0, %c0_0] : memref<256x144xbf16, #tpu.memory_space<vmem>>, vector<256x144xbf16>
    %c0_1 = arith.constant 0 : index
    %c0_2 = arith.constant 0 : index
    %c0_3 = arith.constant 0 : index
    %1 = vector.load %arg3[%c0_1, %c0_2, %c0_3] : memref<1x144x32xbf16, #tpu.memory_space<vmem>>, vector<1x144x32xbf16>
    %2 = vector.shape_cast %1 : vector<1x144x32xbf16> to vector<144x32xbf16>
    %cst = arith.constant dense<0.000000e+00> : vector<256x32xf32>
    %3 = tpu.matmul %0, %2, %cst {dimension_numbers = #tpu.dot_dimension_numbers<[1], [0], [0], [1], [0, 0, 1, 1], [], []>} : vector<256x144xbf16>, vector<144x32xbf16>, vector<256x32xf32> -> vector<256x32xf32>
    %c0_4 = arith.constant 0 : index
    %c0_5 = arith.constant 0 : index
    %c0_6 = arith.constant 0 : index
    %4 = vector.load %arg4[%c0_4, %c0_5, %c0_6] : memref<1x1x32xf32, #tpu.memory_space<vmem>>, vector<1x1x32xf32>
    %5 = vector.shape_cast %4 : vector<1x1x32xf32> to vector<1x32xf32>
    %6 = vector.broadcast %5 : vector<1x32xf32> to vector<256x32xf32>
    %7 = arith.addf %3, %6 : vector<256x32xf32>
    %cst_7 = arith.constant 0.000000e+00 : f32
    %8 = vector.broadcast %cst_7 : f32 to vector<256x32xf32>
    %9 = arith.maximumf %7, %8 : vector<256x32xf32>
    %10 = arith.truncf %9 : vector<256x32xf32> to vector<256x32xbf16>
    %c0_8 = arith.constant 0 : index
    %c0_9 = arith.constant 0 : index
    %c0_10 = arith.constant 0 : index
    %11 = vector.load %arg5[%c0_8, %c0_9, %c0_10] : memref<1x32x128xbf16, #tpu.memory_space<vmem>>, vector<1x32x128xbf16>
    %12 = vector.shape_cast %11 : vector<1x32x128xbf16> to vector<32x128xbf16>
    %cst_11 = arith.constant dense<0.000000e+00> : vector<256x128xf32>
    %13 = tpu.matmul %10, %12, %cst_11 {dimension_numbers = #tpu.dot_dimension_numbers<[1], [0], [0], [1], [0, 0, 1, 1], [], []>} : vector<256x32xbf16>, vector<32x128xbf16>, vector<256x128xf32> -> vector<256x128xf32>
    %c0_12 = arith.constant 0 : index
    %c0_13 = arith.constant 0 : index
    %c0_14 = arith.constant 0 : index
    %14 = vector.load %arg6[%c0_12, %c0_13, %c0_14] : memref<1x1x128xf32, #tpu.memory_space<vmem>>, vector<1x1x128xf32>
    %15 = vector.shape_cast %14 : vector<1x1x128xf32> to vector<1x128xf32>
    %16 = vector.broadcast %15 : vector<1x128xf32> to vector<256x128xf32>
    %17 = arith.addf %13, %16 : vector<256x128xf32>
    %c0_15 = arith.constant 0 : index
    %c0_16 = arith.constant 0 : index
    %18 = vector.load %arg7[%c0_15, %c0_16] : memref<256x128xf32, #tpu.memory_space<vmem>>, vector<256x128xf32>
    tpu.vector_store %arg7[%c0_15, %c0_16], %17 {strides = array<i32>} : memref<256x128xf32, #tpu.memory_space<vmem>>, vector<256x128xf32>,
    return
  }
  func.func @transform_0(%arg0: i32, %arg1: memref<6xi32, #tpu.memory_space<smem>>) -> (i32, i32) {
    %c0_i32 = arith.constant 0 : i32
    %c0_i32_0 = arith.constant 0 : i32
    return %arg0, %c0_i32 : i32, i32
  }
  func.func @transform_1(%arg0: i32, %arg1: memref<6xi32, #tpu.memory_space<smem>>) -> (i32, i32, i32) {
    %0 = arith.index_cast %arg0 : i32 to index
    %1 = memref.load %arg1[%0] : memref<6xi32, #tpu.memory_space<smem>>
    %c0_i32 = arith.constant 0 : i32
    %c0_i32_0 = arith.constant 0 : i32
    %c0_i32_1 = arith.constant 0 : i32
    return %1, %c0_i32, %c0_i32_0 : i32, i32, i32
  }
  func.func @transform_2(%arg0: i32, %arg1: memref<6xi32, #tpu.memory_space<smem>>) -> (i32, i32, i32) {
    %0 = arith.index_cast %arg0 : i32 to index
    %1 = memref.load %arg1[%0] : memref<6xi32, #tpu.memory_space<smem>>
    %c0_i32 = arith.constant 0 : i32
    %c0_i32_0 = arith.constant 0 : i32
    %c0_i32_1 = arith.constant 0 : i32
    return %1, %c0_i32, %c0_i32_0 : i32, i32, i32
  }
  func.func @transform_3(%arg0: i32, %arg1: memref<6xi32, #tpu.memory_space<smem>>) -> (i32, i32, i32) {
    %0 = arith.index_cast %arg0 : i32 to index
    %1 = memref.load %arg1[%0] : memref<6xi32, #tpu.memory_space<smem>>
    %c0_i32 = arith.constant 0 : i32
    %c0_i32_0 = arith.constant 0 : i32
    %c0_i32_1 = arith.constant 0 : i32
    return %1, %c0_i32, %c0_i32_0 : i32, i32, i32
  }
  func.func @transform_4(%arg0: i32, %arg1: memref<6xi32, #tpu.memory_space<smem>>) -> (i32, i32, i32) {
    %0 = arith.index_cast %arg0 : i32 to index
    %1 = memref.load %arg1[%0] : memref<6xi32, #tpu.memory_space<smem>>
    %c0_i32 = arith.constant 0 : i32
    %c0_i32_0 = arith.constant 0 : i32
    %c0_i32_1 = arith.constant 0 : i32
    return %1, %c0_i32, %c0_i32_0 : i32, i32, i32
  }
  func.func @transform_5(%arg0: i32, %arg1: memref<6xi32, #tpu.memory_space<smem>>) -> (i32, i32) {
    %c0_i32 = arith.constant 0 : i32
    %c0_i32_0 = arith.constant 0 : i32
    return %arg0, %c0_i32 : i32, i32
  }
}

</mosaic_0001>

<llo_original>
// kernel: kfcos_net.13
$region0: #{kfcos_net.13}
  #allocation0 [shape = 'u32[]', space=smem, size = 0x4, offset = 0x4, fixed_abs, tag = 'smem constant byte address 0x4 - core index']
  #allocation1 [shape = 'u32[72,128]{1,0:T(1,128)}', space=vmem, size = 0x9000, scoped, tag = 'internal scratch']
  %s0 = inlined_call_operand.vmem [shape: bf16[2048,27], index: 0, kind: input, shape index: {}]
  %s1 = inlined_call_operand.vmem [shape: bf16[27,8], index: 1, kind: input, shape index: {}]
  %s2 = inlined_call_operand.vmem [shape: f32[1,8], index: 2, kind: input, shape index: {}]
  %s3 = inlined_call_operand.vmem [shape: f32[2048,8], index: 3, kind: output, shape index: {}]
  %s4 = sld [smem:[#allocation0]]
  $region45: #{kfcos_net.13} parent=0
    _
  %s6 = ssub.s32 1, %s4
  %s7 = scalar_select 0, %s6, %s4
  loop: start=0, step=1, limit=6
  $region2: #{kfcos_net.13} parent=0 // loop_pre_header
    _
  $region3: #{kfcos_net.13} parent=0 // loop_header
    %s9 = sphi 0, %s13
    %p10 = scmp.ge.s32.totalorder %s9, 6
    %s19 = sphi 0, %s21
    %s22 = sphi 0, %s19
    %s23 = sphi 0, %s22
    %s39 = sphi 0, %s23
    %s43 = sphi 0, %s43
    %s45 = sphi 0, %s43
    %s46 = sphi 0, %s45
    %s60 = sphi 0, %s46
    %s64 = sphi 0, %s64
    %s66 = sphi 0, %s64
    %s67 = sphi 0, %s66
    %s81 = sphi 0, %s67
    %s87 = sphi 0, %s89
    %s90 = sphi 0, %s87
    %s91 = sphi 0, %s90
    %s107 = sphi 0, %s91
  $region4: #{kfcos_net.13} parent=0 // loop_header_branch
    %12 = sbr.rel (%p10) target = $region8
  $region5: #{kfcos_net.13} parent=0 // loop_body
    %s14 = ssub.s32 %s9, 1
    %s15 = ssub.s32 %s9, 2
    %s16 = sadd.s32 %s9, 1
    %s17 = ssub.s32 %s9, %s16
    %p18 = scmp.eq.s32.totalorder %s17, 0
    %s20 = sadd.s32 %s19, 1
    %s21 = scalar_select %p18, %s19, %s20
    %p24 = pneg %p18
    %p25 = scmp.eq.s32.totalorder %s9, 3
    %p26 = por %p24, %p25
    %p27 = scmp.ne.s32.totalorder %s19, %s22
    %p28 = scmp.eq.s32.totalorder %s9, 0
    %p29 = por %p27, %p28
    %p30 = scmp.ne.s32.totalorder %s19, %s22
    %p31 = scmp.eq.s32.totalorder %s14, 3
    %p32 = por %p30, %p31
    %p33 = scmp.ne.s32.totalorder %s22, %s23
    %p34 = scmp.eq.s32.totalorder %s14, 0
    %p35 = por %p33, %p34
    %p36 = scmp.ne.s32.totalorder %s22, %s23
    %p37 = scmp.eq.s32.totalorder %s15, 3
    %p38 = por %p36, %p37
    %p40 = scmp.ne.s32.totalorder %s23, %s39
    %p41 = scmp.eq.s32.totalorder %s15, 0
    %p42 = por %p40, %p41
    %s44 = sadd.s32 %s43, 1
    %p47 = scmp.eq.s32.totalorder %s9, 3
    %p48 = scmp.ne.s32.totalorder %s43, %s45
    %p49 = scmp.eq.s32.totalorder %s9, 0
    %p50 = por %p48, %p49
    %p51 = scmp.ne.s32.totalorder %s43, %s45
    %p52 = scmp.eq.s32.totalorder %s14, 3
    %p53 = por %p51, %p52
    %p54 = scmp.ne.s32.totalorder %s45, %s46
    %p55 = scmp.eq.s32.totalorder %s14, 0
    %p56 = por %p54, %p55
    %p57 = scmp.ne.s32.totalorder %s45, %s46
    %p58 = scmp.eq.s32.totalorder %s15, 3
    %p59 = por %p57, %p58
    %p61 = scmp.ne.s32.totalorder %s46, %s60
    %p62 = scmp.eq.s32.totalorder %s15, 0
    %p63 = por %p61, %p62
    %s65 = sadd.s32 %s64, 1
    %p68 = scmp.eq.s32.totalorder %s9, 3
    %p69 = scmp.ne.s32.totalorder %s64, %s66
    %p70 = scmp.eq.s32.totalorder %s9, 0
    %p71 = por %p69, %p70
    %p72 = scmp.ne.s32.totalorder %s64, %s66
    %p73 = scmp.eq.s32.totalorder %s14, 3
    %p74 = por %p72, %p73
    %p75 = scmp.ne.s32.totalorder %s66, %s67
    %p76 = scmp.eq.s32.totalorder %s14, 0
    %p77 = por %p75, %p76
    %p78 = scmp.ne.s32.totalorder %s66, %s67
    %p79 = scmp.eq.s32.totalorder %s15, 3
    %p80 = por %p78, %p79
    %p82 = scmp.ne.s32.totalorder %s67, %s81
    %p83 = scmp.eq.s32.totalorder %s15, 0
    %p84 = por %p82, %p83
    %s85 = ssub.s32 %s9, %s16
    %p86 = scmp.eq.s32.totalorder %s85, 0
    %s88 = sadd.s32 %s87, 1
    %s89 = scalar_select %p86, %s87, %s88
    %p92 = pneg %p86
    %p93 = scmp.eq.s32.totalorder %s9, 3
    %p94 = por %p92, %p93
    %p95 = scmp.ne.s32.totalorder %s87, %s90
    %p96 = scmp.eq.s32.totalorder %s9, 0
    %p97 = por %p95, %p96
    %p98 = scmp.ne.s32.totalorder %s87, %s90
    %p99 = scmp.eq.s32.totalorder %s14, 3
    %p100 = por %p98, %p99
    %p101 = scmp.ne.s32.totalorder %s90, %s91
    %p102 = scmp.eq.s32.totalorder %s14, 0
    %p103 = por %p101, %p102
    %p104 = scmp.ne.s32.totalorder %s90, %s91
    %p105 = scmp.eq.s32.totalorder %s15, 3
    %p106 = por %p104, %p105
    %p108 = scmp.ne.s32.totalorder %s91, %s107
    %p109 = scmp.eq.s32.totalorder %s15, 0
    %p110 = por %p108, %p109
    %p111 = scmp.le.s32.totalorder 1, %s9
    %p112 = scmp.lt.s32.totalorder %s9, 5
    %p113 = pnand %p111, %p112
    %p114 = pneg %p113
    // Predicated region
    $region9: #{kfcos_net.13} parent=5 // pred_check
      _
    $region10: #{kfcos_net.13} parent=5 // pred_check_branch
      %116 = sbr.rel (%p113) target = $region12
    $region11: #{kfcos_net.13} parent=5 // pred_region
      %s117 = ssub.s32 %s9, 1
      // Predicated region
      $region13: #{kfcos_net.13} parent=11 // pred_check
        %p118 = pneg %p56
      $region14: #{kfcos_net.13} parent=11 // pred_check_branch
        %120 = sbr.rel (%p118) target = $region16
      $region15: #{kfcos_net.13} parent=11 // pred_region
        _
      $region16: #{kfcos_net.13} parent=11 // pred_fallthru
        _
      // Predicated region
      $region17: #{kfcos_net.13} parent=11 // pred_check
        %p121 = pneg %p77
      $region18: #{kfcos_net.13} parent=11 // pred_check_branch
        %123 = sbr.rel (%p121) target = $region20
      $region19: #{kfcos_net.13} parent=11 // pred_region
        _
      $region20: #{kfcos_net.13} parent=11 // pred_fallthru
        _
    $region12: #{kfcos_net.13} parent=5 // pred_fallthru
      _
    %p124 = scmp.lt.s32.totalorder %s9, 4
    // Predicated region
    $region21: #{kfcos_net.13} parent=5 // pred_check
      %p125 = pneg %p124
    $region22: #{kfcos_net.13} parent=5 // pred_check_branch
      %127 = sbr.rel (%p125) target = $region24
    $region23: #{kfcos_net.13} parent=5 // pred_region
      // Predicated region
      $region25: #{kfcos_net.13} parent=23 // pred_check
        %p128 = pneg %p29
      $region26: #{kfcos_net.13} parent=23 // pred_check_branch
        %130 = sbr.rel (%p128) target = $region28
      $region27: #{kfcos_net.13} parent=23 // pred_region
        %s131 = smul.u32 64, %s9
        %p132 = scmp.lt.s32.totalorder %s131, 255
        %s133 = scalar_select %p132, %s131, 255
        %s134 = smul.addr %s133, 4
        %s135 = scalar_lea.vmem %s0, %s134
        %s136 = smul.u32 64, %s9
      $region28: #{kfcos_net.13} parent=23 // pred_fallthru
        _
    $region24: #{kfcos_net.13} parent=5 // pred_fallthru
      _
    %p137 = scmp.le.s32.totalorder 1, %s9
    %p138 = scmp.lt.s32.totalorder %s9, 5
    %p139 = pnand %p137, %p138
    %p140 = pneg %p139
    // Predicated region
    $region29: #{kfcos_net.13} parent=5 // pred_check
      _
    $region30: #{kfcos_net.13} parent=5 // pred_check_branch
      %142 = sbr.rel (%p139) target = $region32
    $region31: #{kfcos_net.13} parent=5 // pred_region
      %s143 = ssub.s32 %s9, 1
      %s144 = smul.u32 64, %s14
      %p145 = scmp.lt.s32.totalorder %s144, 255
      %s146 = scalar_select %p145, %s144, 255
      %s147 = smul.addr %s146, 4
      %s148 = scalar_lea.vmem %s0, %s147
      %p149 = pneg %p35
      %p150 = pneg %p32
      %p151 = pneg %p56
      %p152 = pneg %p53
      %p153 = pneg %p77
      %p154 = pneg %p74
      %p155 = pneg %p103
      %p156 = pneg %p100
      %s157 = smul.u32 64, %s14
      %p158 = scmp.lt.s32.totalorder %s157, 255
      %s159 = scalar_select %p158, %s157, 255
      %s160 = smul.addr %s159, 8
      %s161 = scalar_lea.vmem %s3, %s160
      %s162 = smul.u32 64, %s14
      %p163 = scmp.lt.s32.totalorder %s162, 255
      %s164 = scalar_select %p163, %s162, 255
      %s165 = smul.addr %s164, 4
      %s166 = scalar_lea.vmem %s0, %s165
      %s167 = smul.u32 64, %s14
      %s168 = smul.u32 64, %s14
      %p169 = scmp.lt.s32.totalorder %s168, 255
      %s170 = scalar_select %p169, %s168, 255
      %s171 = smul.addr %s170, 8
      %s172 = scalar_lea.vmem %s3, %s171
      %s173 = smul.u32 64, %s14
      %v175 = vld [vmem:[%s166] sm:$0xf]
      %v176 = vld [vmem:[%s166 + $0x4] sm:$0xf]
      %v177 = vld [vmem:[%s166 + $0x8] sm:$0xf]
      %v178 = vld [vmem:[%s166 + $0xc] sm:$0xf]
      %v179 = vld [vmem:[%s166 + $0x10] sm:$0xf]
      %v180 = vld [vmem:[%s166 + $0x14] sm:$0xf]
      %v181 = vld [vmem:[%s166 + $0x18] sm:$0xf]
      %v182 = vld [vmem:[%s166 + $0x1c] sm:$0xf]
      %v183 = vld [vmem:[%s166 + $0x20] sm:$0xf]
      %v184 = vld [vmem:[%s166 + $0x24] sm:$0xf]
      %v185 = vld [vmem:[%s166 + $0x28] sm:$0xf]
      %v186 = vld [vmem:[%s166 + $0x2c] sm:$0xf]
      %v187 = vld [vmem:[%s166 + $0x30] sm:$0xf]
      %v188 = vld [vmem:[%s166 + $0x34] sm:$0xf]
      %v189 = vld [vmem:[%s166 + $0x38] sm:$0xf]
      %v190 = vld [vmem:[%s166 + $0x3c] sm:$0xf]
      %v191 = vld [vmem:[%s166 + $0x40] sm:$0xf]
      %v192 = vld [vmem:[%s166 + $0x44] sm:$0xf]
      %v193 = vld [vmem:[%s166 + $0x48] sm:$0xf]
      %v194 = vld [vmem:[%s166 + $0x4c] sm:$0xf]
      %v195 = vld [vmem:[%s166 + $0x50] sm:$0xf]
      %v196 = vld [vmem:[%s166 + $0x54] sm:$0xf]
      %v197 = vld [vmem:[%s166 + $0x58] sm:$0xf]
      %v198 = vld [vmem:[%s166 + $0x5c] sm:$0xf]
      %v199 = vld [vmem:[%s166 + $0x60] sm:$0xf]
      %v200 = vld [vmem:[%s166 + $0x64] sm:$0xf]
      %v201 = vld [vmem:[%s166 + $0x68] sm:$0xf]
      %v202 = vld [vmem:[%s166 + $0x6c] sm:$0xf]
      %v203 = vld [vmem:[%s166 + $0x70] sm:$0xf]
      %v204 = vld [vmem:[%s166 + $0x74] sm:$0xf]
      %v205 = vld [vmem:[%s166 + $0x78] sm:$0xf]
      %v206 = vld [vmem:[%s166 + $0x7c] sm:$0xf]
      %v207 = vld [vmem:[%s166 + $0x80] sm:$0xf]
      %v208 = vld [vmem:[%s166 + $0x84] sm:$0xf]
      %v209 = vld [vmem:[%s166 + $0x88] sm:$0xf]
      %v210 = vld [vmem:[%s166 + $0x8c] sm:$0xf]
      %v211 = vld [vmem:[%s166 + $0x90] sm:$0xf]
      %v212 = vld [vmem:[%s166 + $0x94] sm:$0xf]
      %v213 = vld [vmem:[%s166 + $0x98] sm:$0xf]
      %v214 = vld [vmem:[%s166 + $0x9c] sm:$0xf]
      %v215 = vld [vmem:[%s166 + $0xa0] sm:$0xf]
      %v216 = vld [vmem:[%s166 + $0xa4] sm:$0xf]
      %v217 = vld [vmem:[%s166 + $0xa8] sm:$0xf]
      %v218 = vld [vmem:[%s166 + $0xac] sm:$0xf]
      %v219 = vld [vmem:[%s166 + $0xb0] sm:$0xf]
      %v220 = vld [vmem:[%s166 + $0xb4] sm:$0xf]
      %v221 = vld [vmem:[%s166 + $0xb8] sm:$0xf]
      %v222 = vld [vmem:[%s166 + $0xbc] sm:$0xf]
      %v223 = vld [vmem:[%s166 + $0xc0] sm:$0xf]
      %v224 = vld [vmem:[%s166 + $0xc4] sm:$0xf]
      %v225 = vld [vmem:[%s166 + $0xc8] sm:$0xf]
      %v226 = vld [vmem:[%s166 + $0xcc] sm:$0xf]
      %v227 = vld [vmem:[%s166 + $0xd0] sm:$0xf]
      %v228 = vld [vmem:[%s166 + $0xd4] sm:$0xf]
      %v229 = vld [vmem:[%s166 + $0xd8] sm:$0xf]
      %v230 = vld [vmem:[%s166 + $0xdc] sm:$0xf]
      %v231 = vld [vmem:[%s166 + $0xe0] sm:$0xf]
      %v232 = vld [vmem:[%s166 + $0xe4] sm:$0xf]
      %v233 = vld [vmem:[%s166 + $0xe8] sm:$0xf]
      %v234 = vld [vmem:[%s166 + $0xec] sm:$0xf]
      %v235 = vld [vmem:[%s166 + $0xf0] sm:$0xf]
      %v236 = vld [vmem:[%s166 + $0xf4] sm:$0xf]
      %v237 = vld [vmem:[%s166 + $0xf8] sm:$0xf]
      %v238 = vld [vmem:[%s166 + $0xfc] sm:$0xf]
      %v239 = vld [vmem:[%s1] sm:$0xf]
      %v240 = vld [vmem:[%s1 + $0x4] sm:$0xf]
      %v241 = vld [vmem:[%s1 + $0x8] sm:$0xf]
      %v242 = vld [vmem:[%s1 + $0xc] sm:$0x3]
      %v243 = vld [vmem:[%s2] sm:$0x1]
      %v245 = vperm.slane %v243, 0
      %v311 = vunpack.c.l.b16 %v175
      %v312 = vunpack.c.l.b16 %v176
      %v313 = vunpack.c.l.b16 %v177
      %v314 = vunpack.c.l.b16 %v178
      %v315 = vunpack.c.l.b16 %v179
      %v316 = vunpack.c.l.b16 %v180
      %v317 = vunpack.c.l.b16 %v181
      %v318 = vunpack.c.l.b16 %v182
      %v319 = vunpack.c.l.b16 %v183
      %v320 = vunpack.c.l.b16 %v184
      %v321 = vunpack.c.l.b16 %v185
      %v322 = vunpack.c.l.b16 %v186
      %v323 = vunpack.c.l.b16 %v187
      %v324 = vunpack.c.l.b16 %v188
      %v325 = vunpack.c.l.b16 %v189
      %v326 = vunpack.c.l.b16 %v190
      %v327 = vunpack.c.l.b16 %v191
      %v328 = vunpack.c.l.b16 %v192
      %v329 = vunpack.c.l.b16 %v193
      %v330 = vunpack.c.l.b16 %v194
      %v331 = vunpack.c.l.b16 %v195
      %v332 = vunpack.c.l.b16 %v196
      %v333 = vunpack.c.l.b16 %v197
      %v334 = vunpack.c.l.b16 %v198
      %v335 = vunpack.c.l.b16 %v199
      %v336 = vunpack.c.l.b16 %v200
      %v337 = vunpack.c.l.b16 %v201
      %v338 = vunpack.c.l.b16 %v202
      %v339 = vunpack.c.l.b16 %v203
      %v340 = vunpack.c.l.b16 %v204
      %v341 = vunpack.c.l.b16 %v205
      %v342 = vunpack.c.l.b16 %v206
      %v343 = vunpack.c.l.b16 %v207
      %v344 = vunpack.c.l.b16 %v208
      %v345 = vunpack.c.l.b16 %v209
      %v346 = vunpack.c.l.b16 %v210
      %v347 = vunpack.c.l.b16 %v211
      %v348 = vunpack.c.l.b16 %v212
      %v349 = vunpack.c.l.b16 %v213
      %v350 = vunpack.c.l.b16 %v214
      %v351 = vunpack.c.l.b16 %v215
      %v352 = vunpack.c.l.b16 %v216
      %v353 = vunpack.c.l.b16 %v217
      %v354 = vunpack.c.l.b16 %v218
      %v355 = vunpack.c.l.b16 %v219
      %v356 = vunpack.c.l.b16 %v220
      %v357 = vunpack.c.l.b16 %v221
      %v358 = vunpack.c.l.b16 %v222
      %v359 = vunpack.c.l.b16 %v223
      %v360 = vunpack.c.l.b16 %v224
      %v361 = vunpack.c.l.b16 %v225
      %v362 = vunpack.c.l.b16 %v226
      %v363 = vunpack.c.l.b16 %v227
      %v364 = vunpack.c.l.b16 %v228
      %v365 = vunpack.c.l.b16 %v229
      %v366 = vunpack.c.l.b16 %v230
      %v367 = vunpack.c.l.b16 %v231
      %v368 = vunpack.c.l.b16 %v232
      %v369 = vunpack.c.l.b16 %v233
      %v370 = vunpack.c.l.b16 %v234
      %v371 = vunpack.c.l.b16 %v235
      %v372 = vunpack.c.l.b16 %v236
      %v373 = vunpack.c.l.b16 %v237
      %v374 = vunpack.c.l.b16 %v238
      %v375 = vpack.c.b16 %v312, %v311
      %v376 = vpack.c.b16 %v314, %v313
      %v377 = vpack.c.b16 %v316, %v315
      %v378 = vpack.c.b16 %v318, %v317
      %v379 = vpack.c.b16 %v320, %v319
      %v380 = vpack.c.b16 %v322, %v321
      %v381 = vpack.c.b16 %v324, %v323
      %v382 = vpack.c.b16 %v326, %v325
      %v383 = vpack.c.b16 %v328, %v327
      %v384 = vpack.c.b16 %v330, %v329
      %v385 = vpack.c.b16 %v332, %v331
      %v386 = vpack.c.b16 %v334, %v333
      %v387 = vpack.c.b16 %v336, %v335
      %v388 = vpack.c.b16 %v338, %v337
      %v389 = vpack.c.b16 %v340, %v339
      %v390 = vpack.c.b16 %v342, %v341
      %v391 = vpack.c.b16 %v344, %v343
      %v392 = vpack.c.b16 %v346, %v345
      %v393 = vpack.c.b16 %v348, %v347
      %v394 = vpack.c.b16 %v350, %v349
      %v395 = vpack.c.b16 %v352, %v351
      %v396 = vpack.c.b16 %v354, %v353
      %v397 = vpack.c.b16 %v356, %v355
      %v398 = vpack.c.b16 %v358, %v357
      %v399 = vpack.c.b16 %v360, %v359
      %v400 = vpack.c.b16 %v362, %v361
      %v401 = vpack.c.b16 %v364, %v363
      %v402 = vpack.c.b16 %v366, %v365
      %v403 = vpack.c.b16 %v368, %v367
      %v404 = vpack.c.b16 %v370, %v369
      %v405 = vpack.c.b16 %v372, %v371
      %v406 = vpack.c.b16 %v374, %v373
      %v411 = vunpack.c.l.b16 %v239
      %v412 = vunpack.c.l.b16 %v240
      %v413 = vunpack.c.l.b16 %v241
      %v414 = vunpack.c.l.b16 %v242
      %v415 = vpack.c.b16 %v412, %v411
      %v416 = vpack.c.b16 %v414, %v413
      %vm418 = vcmask 220160
      %v420 = vsel %vm418, %v375, 0
      %v423 = vsel %vm418, %v376, 0
      %v426 = vsel %vm418, %v377, 0
      %v429 = vsel %vm418, %v378, 0
      %v432 = vsel %vm418, %v379, 0
      %v435 = vsel %vm418, %v380, 0
      %v438 = vsel %vm418, %v381, 0
      %v441 = vsel %vm418, %v382, 0
      %v444 = vsel %vm418, %v383, 0
      %v447 = vsel %vm418, %v384, 0
      %v450 = vsel %vm418, %v385, 0
      %v453 = vsel %vm418, %v386, 0
      %v456 = vsel %vm418, %v387, 0
      %v459 = vsel %vm418, %v388, 0
      %v462 = vsel %vm418, %v389, 0
      %v465 = vsel %vm418, %v390, 0
      %v468 = vsel %vm418, %v391, 0
      %v471 = vsel %vm418, %v392, 0
      %v474 = vsel %vm418, %v393, 0
      %v477 = vsel %vm418, %v394, 0
      %v480 = vsel %vm418, %v395, 0
      %v483 = vsel %vm418, %v396, 0
      %v486 = vsel %vm418, %v397, 0
      %v489 = vsel %vm418, %v398, 0
      %v492 = vsel %vm418, %v399, 0
      %v495 = vsel %vm418, %v400, 0
      %v498 = vsel %vm418, %v401, 0
      %v501 = vsel %vm418, %v402, 0
      %v504 = vsel %vm418, %v403, 0
      %v507 = vsel %vm418, %v404, 0
      %v510 = vsel %vm418, %v405, 0
      %v513 = vsel %vm418, %v406, 0
      %vm515 = vcmask 1044480
      %vm516 = vcmask 1045504
      %v517 = vsel %vm515, 4294967295, 65535
      %v518 = vsel %vm516, %v517, 0
      %v520 = vand.u32 %v416, %v518
      %522 = vmatpush.bf16.msra.mxu0 0
      %523 = vmatpush.bf16.msra.mxu0 0
      %524 = vmatpush.bf16.msra.mxu0 0
      %525 = vmatpush.bf16.msra.mxu0 0
      %526 = vmatpush.bf16.msra.mxu0 0
      %527 = vmatpush.bf16.msra.mxu0 0
      %528 = vmatpush.bf16.msra.mxu0 %v520
      %529 = vmatpush.bf16.msra.mxu0 %v415
      %530 = vmatmul.bf16.gmra.mxu0 %v420
      %v531 = vpop.f32.mrf.mxu0
      %v532 = vadd.f32 %v245, %v531
      %v533 = vpop.f32.mrf.mxu0
      %v534 = vadd.f32 %v245, %v533
      %535 = vmatmul.bf16.gmra.mxu0 %v423
      %v536 = vpop.f32.mrf.mxu0
      %v537 = vadd.f32 %v245, %v536
      %v538 = vpop.f32.mrf.mxu0
      %v539 = vadd.f32 %v245, %v538
      %540 = vmatmul.bf16.gmra.mxu0 %v426
      %v541 = vpop.f32.mrf.mxu0
      %v542 = vadd.f32 %v245, %v541
      %v543 = vpop.f32.mrf.mxu0
      %v544 = vadd.f32 %v245, %v543
      %545 = vmatmul.bf16.gmra.mxu0 %v429
      %v546 = vpop.f32.mrf.mxu0
      %v547 = vadd.f32 %v245, %v546
      %v548 = vpop.f32.mrf.mxu0
      %v549 = vadd.f32 %v245, %v548
      %550 = vmatmul.bf16.gmra.mxu0 %v432
      %v551 = vpop.f32.mrf.mxu0
      %v552 = vadd.f32 %v245, %v551
      %v553 = vpop.f32.mrf.mxu0
      %v554 = vadd.f32 %v245, %v553
      %555 = vmatmul.bf16.gmra.mxu0 %v435
      %v556 = vpop.f32.mrf.mxu0
      %v557 = vadd.f32 %v245, %v556
      %v558 = vpop.f32.mrf.mxu0
      %v559 = vadd.f32 %v245, %v558
      %560 = vmatmul.bf16.gmra.mxu0 %v438
      %v561 = vpop.f32.mrf.mxu0
      %v562 = vadd.f32 %v245, %v561
      %v563 = vpop.f32.mrf.mxu0
      %v564 = vadd.f32 %v245, %v563
      %565 = vmatmul.bf16.gmra.mxu0 %v441
      %v566 = vpop.f32.mrf.mxu0
      %v567 = vadd.f32 %v245, %v566
      %v568 = vpop.f32.mrf.mxu0
      %v569 = vadd.f32 %v245, %v568
      %570 = vmatmul.bf16.gmra.mxu0 %v444
      %v571 = vpop.f32.mrf.mxu0
      %v572 = vadd.f32 %v245, %v571
      %v573 = vpop.f32.mrf.mxu0
      %v574 = vadd.f32 %v245, %v573
      %575 = vmatmul.bf16.gmra.mxu0 %v447
      %v576 = vpop.f32.mrf.mxu0
      %v577 = vadd.f32 %v245, %v576
      %v578 = vpop.f32.mrf.mxu0
      %v579 = vadd.f32 %v245, %v578
      %580 = vmatmul.bf16.gmra.mxu0 %v450
      %v581 = vpop.f32.mrf.mxu0
      %v582 = vadd.f32 %v245, %v581
      %v583 = vpop.f32.mrf.mxu0
      %v584 = vadd.f32 %v245, %v583
      %585 = vmatmul.bf16.gmra.mxu0 %v453
      %v586 = vpop.f32.mrf.mxu0
      %v587 = vadd.f32 %v245, %v586
      %v588 = vpop.f32.mrf.mxu0
      %v589 = vadd.f32 %v245, %v588
      %590 = vmatmul.bf16.gmra.mxu0 %v456
      %v591 = vpop.f32.mrf.mxu0
      %v592 = vadd.f32 %v245, %v591
      %v593 = vpop.f32.mrf.mxu0
      %v594 = vadd.f32 %v245, %v593
      %595 = vmatmul.bf16.gmra.mxu0 %v459
      %v596 = vpop.f32.mrf.mxu0
      %v597 = vadd.f32 %v245, %v596
      %v598 = vpop.f32.mrf.mxu0
      %v599 = vadd.f32 %v245, %v598
      %600 = vmatmul.bf16.gmra.mxu0 %v462
      %v601 = vpop.f32.mrf.mxu0
      %v602 = vadd.f32 %v245, %v601
      %v603 = vpop.f32.mrf.mxu0
      %v604 = vadd.f32 %v245, %v603
      %605 = vmatmul.bf16.gmra.mxu0 %v465
      %v606 = vpop.f32.mrf.mxu0
      %v607 = vadd.f32 %v245, %v606
      %v608 = vpop.f32.mrf.mxu0
      %v609 = vadd.f32 %v245, %v608
      %610 = vmatmul.bf16.gmra.mxu0 %v468
      %v611 = vpop.f32.mrf.mxu0
      %v612 = vadd.f32 %v245, %v611
      %v613 = vpop.f32.mrf.mxu0
      %v614 = vadd.f32 %v245, %v613
      %615 = vmatmul.bf16.gmra.mxu0 %v471
      %v616 = vpop.f32.mrf.mxu0
      %v617 = vadd.f32 %v245, %v616
      %v618 = vpop.f32.mrf.mxu0
      %v619 = vadd.f32 %v245, %v618
      %620 = vmatmul.bf16.gmra.mxu0 %v474
      %v621 = vpop.f32.mrf.mxu0
      %v622 = vadd.f32 %v245, %v621
      %v623 = vpop.f32.mrf.mxu0
      %v624 = vadd.f32 %v245, %v623
      %625 = vmatmul.bf16.gmra.mxu0 %v477
      %v626 = vpop.f32.mrf.mxu0
      %v627 = vadd.f32 %v245, %v626
      %v628 = vpop.f32.mrf.mxu0
      %v629 = vadd.f32 %v245, %v628
      %630 = vmatmul.bf16.gmra.mxu0 %v480
      %v631 = vpop.f32.mrf.mxu0
      %v632 = vadd.f32 %v245, %v631
      %v633 = vpop.f32.mrf.mxu0
      %v634 = vadd.f32 %v245, %v633
      %635 = vmatmul.bf16.gmra.mxu0 %v483
      %v636 = vpop.f32.mrf.mxu0
      %v637 = vadd.f32 %v245, %v636
      %v638 = vpop.f32.mrf.mxu0
      %v639 = vadd.f32 %v245, %v638
      %640 = vmatmul.bf16.gmra.mxu0 %v486
      %v641 = vpop.f32.mrf.mxu0
      %v642 = vadd.f32 %v245, %v641
      %v643 = vpop.f32.mrf.mxu0
      %v644 = vadd.f32 %v245, %v643
      %645 = vmatmul.bf16.gmra.mxu0 %v489
      %v646 = vpop.f32.mrf.mxu0
      %v647 = vadd.f32 %v245, %v646
      %v648 = vpop.f32.mrf.mxu0
      %v649 = vadd.f32 %v245, %v648
      %650 = vmatmul.bf16.gmra.mxu0 %v492
      %v651 = vpop.f32.mrf.mxu0
      %v652 = vadd.f32 %v245, %v651
      %v653 = vpop.f32.mrf.mxu0
      %v654 = vadd.f32 %v245, %v653
      %655 = vmatmul.bf16.gmra.mxu0 %v495
      %v656 = vpop.f32.mrf.mxu0
      %v657 = vadd.f32 %v245, %v656
      %v658 = vpop.f32.mrf.mxu0
      %v659 = vadd.f32 %v245, %v658
      %660 = vmatmul.bf16.gmra.mxu0 %v498
      %v661 = vpop.f32.mrf.mxu0
      %v662 = vadd.f32 %v245, %v661
      %v663 = vpop.f32.mrf.mxu0
      %v664 = vadd.f32 %v245, %v663
      %665 = vmatmul.bf16.gmra.mxu0 %v501
      %v666 = vpop.f32.mrf.mxu0
      %v667 = vadd.f32 %v245, %v666
      %v668 = vpop.f32.mrf.mxu0
      %v669 = vadd.f32 %v245, %v668
      %670 = vmatmul.bf16.gmra.mxu0 %v504
      %v671 = vpop.f32.mrf.mxu0
      %v672 = vadd.f32 %v245, %v671
      %v673 = vpop.f32.mrf.mxu0
      %v674 = vadd.f32 %v245, %v673
      %675 = vmatmul.bf16.gmra.mxu0 %v507
      %v676 = vpop.f32.mrf.mxu0
      %v677 = vadd.f32 %v245, %v676
      %v678 = vpop.f32.mrf.mxu0
      %v679 = vadd.f32 %v245, %v678
      %680 = vmatmul.bf16.gmra.mxu0 %v510
      %v681 = vpop.f32.mrf.mxu0
      %v682 = vadd.f32 %v245, %v681
      %v683 = vpop.f32.mrf.mxu0
      %v684 = vadd.f32 %v245, %v683
      %685 = vmatmul.bf16.gmra.mxu0 %v513
      %v686 = vpop.f32.mrf.mxu0
      %v687 = vadd.f32 %v245, %v686
      %v688 = vpop.f32.mrf.mxu0
      %v689 = vadd.f32 %v245, %v688
      %690 = vdwg.mxu0
      %v691 = vmax.f32 %v532, 0.0
      %v692 = vmax.f32 %v534, 0.0
      %v693 = vmax.f32 %v537, 0.0
      %v694 = vmax.f32 %v539, 0.0
      %v695 = vmax.f32 %v542, 0.0
      %v696 = vmax.f32 %v544, 0.0
      %v697 = vmax.f32 %v547, 0.0
      %v698 = vmax.f32 %v549, 0.0
      %v699 = vmax.f32 %v552, 0.0
      %v700 = vmax.f32 %v554, 0.0
      %v701 = vmax.f32 %v557, 0.0
      %v702 = vmax.f32 %v559, 0.0
      %v703 = vmax.f32 %v562, 0.0
      %v704 = vmax.f32 %v564, 0.0
      %v705 = vmax.f32 %v567, 0.0
      %v706 = vmax.f32 %v569, 0.0
      %v707 = vmax.f32 %v572, 0.0
      %v708 = vmax.f32 %v574, 0.0
      %v709 = vmax.f32 %v577, 0.0
      %v710 = vmax.f32 %v579, 0.0
      %v711 = vmax.f32 %v582, 0.0
      %v712 = vmax.f32 %v584, 0.0
      %v713 = vmax.f32 %v587, 0.0
      %v714 = vmax.f32 %v589, 0.0
      %v715 = vmax.f32 %v592, 0.0
      %v716 = vmax.f32 %v594, 0.0
      %v717 = vmax.f32 %v597, 0.0
      %v718 = vmax.f32 %v599, 0.0
      %v719 = vmax.f32 %v602, 0.0
      %v720 = vmax.f32 %v604, 0.0
      %v721 = vmax.f32 %v607, 0.0
      %v722 = vmax.f32 %v609, 0.0
      %v723 = vmax.f32 %v612, 0.0
      %v724 = vmax.f32 %v614, 0.0
      %v725 = vmax.f32 %v617, 0.0
      %v726 = vmax.f32 %v619, 0.0
      %v727 = vmax.f32 %v622, 0.0
      %v728 = vmax.f32 %v624, 0.0
      %v729 = vmax.f32 %v627, 0.0
      %v730 = vmax.f32 %v629, 0.0
      %v731 = vmax.f32 %v632, 0.0
      %v732 = vmax.f32 %v634, 0.0
      %v733 = vmax.f32 %v637, 0.0
      %v734 = vmax.f32 %v639, 0.0
      %v735 = vmax.f32 %v642, 0.0
      %v736 = vmax.f32 %v644, 0.0
      %v737 = vmax.f32 %v647, 0.0
      %v738 = vmax.f32 %v649, 0.0
      %v739 = vmax.f32 %v652, 0.0
      %v740 = vmax.f32 %v654, 0.0
      %v741 = vmax.f32 %v657, 0.0
      %v742 = vmax.f32 %v659, 0.0
      %v743 = vmax.f32 %v662, 0.0
      %v744 = vmax.f32 %v664, 0.0
      %v745 = vmax.f32 %v667, 0.0
      %v746 = vmax.f32 %v669, 0.0
      %v747 = vmax.f32 %v672, 0.0
      %v748 = vmax.f32 %v674, 0.0
      %v749 = vmax.f32 %v677, 0.0
      %v750 = vmax.f32 %v679, 0.0
      %v751 = vmax.f32 %v682, 0.0
      %v752 = vmax.f32 %v684, 0.0
      %v753 = vmax.f32 %v687, 0.0
      %v754 = vmax.f32 %v689, 0.0
      %vm755 = vcmask 64512
      %756 = vst.msk [vmem:[%s172] sm:$0xff] %vm755, %v691
      %757 = vst.msk [vmem:[%s172 + $0x8] sm:$0xff] %vm755, %v692
      %758 = vst.msk [vmem:[%s172 + $0x10] sm:$0xff] %vm755, %v693
      %759 = vst.msk [vmem:[%s172 + $0x18] sm:$0xff] %vm755, %v694
      %760 = vst.msk [vmem:[%s172 + $0x20] sm:$0xff] %vm755, %v695
      %761 = vst.msk [vmem:[%s172 + $0x28] sm:$0xff] %vm755, %v696
      %762 = vst.msk [vmem:[%s172 + $0x30] sm:$0xff] %vm755, %v697
      %763 = vst.msk [vmem:[%s172 + $0x38] sm:$0xff] %vm755, %v698
      %764 = vst.msk [vmem:[%s172 + $0x40] sm:$0xff] %vm755, %v699
      %765 = vst.msk [vmem:[%s172 + $0x48] sm:$0xff] %vm755, %v700
      %766 = vst.msk [vmem:[%s172 + $0x50] sm:$0xff] %vm755, %v701
      %767 = vst.msk [vmem:[%s172 + $0x58] sm:$0xff] %vm755, %v702
      %768 = vst.msk [vmem:[%s172 + $0x60] sm:$0xff] %vm755, %v703
      %769 = vst.msk [vmem:[%s172 + $0x68] sm:$0xff] %vm755, %v704
      %770 = vst.msk [vmem:[%s172 + $0x70] sm:$0xff] %vm755, %v705
      %771 = vst.msk [vmem:[%s172 + $0x78] sm:$0xff] %vm755, %v706
      %772 = vst.msk [vmem:[%s172 + $0x80] sm:$0xff] %vm755, %v707
      %773 = vst.msk [vmem:[%s172 + $0x88] sm:$0xff] %vm755, %v708
      %774 = vst.msk [vmem:[%s172 + $0x90] sm:$0xff] %vm755, %v709
      %775 = vst.msk [vmem:[%s172 + $0x98] sm:$0xff] %vm755, %v710
      %776 = vst.msk [vmem:[%s172 + $0xa0] sm:$0xff] %vm755, %v711
      %777 = vst.msk [vmem:[%s172 + $0xa8] sm:$0xff] %vm755, %v712
      %778 = vst.msk [vmem:[%s172 + $0xb0] sm:$0xff] %vm755, %v713
      %779 = vst.msk [vmem:[%s172 + $0xb8] sm:$0xff] %vm755, %v714
      %780 = vst.msk [vmem:[%s172 + $0xc0] sm:$0xff] %vm755, %v715
      %781 = vst.msk [vmem:[%s172 + $0xc8] sm:$0xff] %vm755, %v716
      %782 = vst.msk [vmem:[%s172 + $0xd0] sm:$0xff] %vm755, %v717
      %783 = vst.msk [vmem:[%s172 + $0xd8] sm:$0xff] %vm755, %v718
      %784 = vst.msk [vmem:[%s172 + $0xe0] sm:$0xff] %vm755, %v719
      %785 = vst.msk [vmem:[%s172 + $0xe8] sm:$0xff] %vm755, %v720
      %786 = vst.msk [vmem:[%s172 + $0xf0] sm:$0xff] %vm755, %v721
      %787 = vst.msk [vmem:[%s172 + $0xf8] sm:$0xff] %vm755, %v722
      %788 = vst.msk [vmem:[%s172 + $0x100] sm:$0xff] %vm755, %v723
      %789 = vst.msk [vmem:[%s172 + $0x108] sm:$0xff] %vm755, %v724
      %790 = vst.msk [vmem:[%s172 + $0x110] sm:$0xff] %vm755, %v725
      %791 = vst.msk [vmem:[%s172 + $0x118] sm:$0xff] %vm755, %v726
      %792 = vst.msk [vmem:[%s172 + $0x120] sm:$0xff] %vm755, %v727
      %793 = vst.msk [vmem:[%s172 + $0x128] sm:$0xff] %vm755, %v728
      %794 = vst.msk [vmem:[%s172 + $0x130] sm:$0xff] %vm755, %v729
      %795 = vst.msk [vmem:[%s172 + $0x138] sm:$0xff] %vm755, %v730
      %796 = vst.msk [vmem:[%s172 + $0x140] sm:$0xff] %vm755, %v731
      %797 = vst.msk [vmem:[%s172 + $0x148] sm:$0xff] %vm755, %v732
      %798 = vst.msk [vmem:[%s172 + $0x150] sm:$0xff] %vm755, %v733
      %799 = vst.msk [vmem:[%s172 + $0x158] sm:$0xff] %vm755, %v734
      %800 = vst.msk [vmem:[%s172 + $0x160] sm:$0xff] %vm755, %v735
      %801 = vst.msk [vmem:[%s172 + $0x168] sm:$0xff] %vm755, %v736
      %802 = vst.msk [vmem:[%s172 + $0x170] sm:$0xff] %vm755, %v737
      %803 = vst.msk [vmem:[%s172 + $0x178] sm:$0xff] %vm755, %v738
      %804 = vst.msk [vmem:[%s172 + $0x180] sm:$0xff] %vm755, %v739
      %805 = vst.msk [vmem:[%s172 + $0x188] sm:$0xff] %vm755, %v740
      %806 = vst.msk [vmem:[%s172 + $0x190] sm:$0xff] %vm755, %v741
      %807 = vst.msk [vmem:[%s172 + $0x198] sm:$0xff] %vm755, %v742
      %808 = vst.msk [vmem:[%s172 + $0x1a0] sm:$0xff] %vm755, %v743
      %809 = vst.msk [vmem:[%s172 + $0x1a8] sm:$0xff] %vm755, %v744
      %810 = vst.msk [vmem:[%s172 + $0x1b0] sm:$0xff] %vm755, %v745
      %811 = vst.msk [vmem:[%s172 + $0x1b8] sm:$0xff] %vm755, %v746
      %812 = vst.msk [vmem:[%s172 + $0x1c0] sm:$0xff] %vm755, %v747
      %813 = vst.msk [vmem:[%s172 + $0x1c8] sm:$0xff] %vm755, %v748
      %814 = vst.msk [vmem:[%s172 + $0x1d0] sm:$0xff] %vm755, %v749
      %815 = vst.msk [vmem:[%s172 + $0x1d8] sm:$0xff] %vm755, %v750
      %816 = vst.msk [vmem:[%s172 + $0x1e0] sm:$0xff] %vm755, %v751
      %817 = vst.msk [vmem:[%s172 + $0x1e8] sm:$0xff] %vm755, %v752
      %818 = vst.msk [vmem:[%s172 + $0x1f0] sm:$0xff] %vm755, %v753
      %819 = vst.msk [vmem:[%s172 + $0x1f8] sm:$0xff] %vm755, %v754
      %s820 = smul.u32 64, %s14
      %p821 = scmp.lt.s32.totalorder %s820, 255
      %s822 = scalar_select %p821, %s820, 255
      %s823 = smul.addr %s822, 8
      %s824 = scalar_lea.vmem %s3, %s823
      // Predicated region
      $region33: #{kfcos_net.13} parent=31 // pred_check
        %p825 = pneg %p100
      $region34: #{kfcos_net.13} parent=31 // pred_check_branch
        %827 = sbr.rel (%p825) target = $region36
      $region35: #{kfcos_net.13} parent=31 // pred_region
        %s828 = smul.u32 64, %s14
      $region36: #{kfcos_net.13} parent=31 // pred_fallthru
        _
    $region32: #{kfcos_net.13} parent=5 // pred_fallthru
      _
    %p829 = scmp.le.s32.totalorder 2, %s9
    // Predicated region
    $region37: #{kfcos_net.13} parent=5 // pred_check
      %p830 = pneg %p829
    $region38: #{kfcos_net.13} parent=5 // pred_check_branch
      %832 = sbr.rel (%p830) target = $region40
    $region39: #{kfcos_net.13} parent=5 // pred_region
      %s833 = ssub.s32 %s9, 2
      // Predicated region
      $region41: #{kfcos_net.13} parent=39 // pred_check
        %p834 = pneg %p106
      $region42: #{kfcos_net.13} parent=39 // pred_check_branch
        %836 = sbr.rel (%p834) target = $region44
      $region43: #{kfcos_net.13} parent=39 // pred_region
        %s837 = smul.u32 64, %s15
        %p838 = scmp.lt.s32.totalorder %s837, 255
        %s839 = scalar_select %p838, %s837, 255
        %s840 = smul.addr %s839, 8
        %s841 = scalar_lea.vmem %s3, %s840
      $region44: #{kfcos_net.13} parent=39 // pred_fallthru
        _
    $region40: #{kfcos_net.13} parent=5 // pred_fallthru
      _
  $region6: #{kfcos_net.13} parent=0 // loop_footer
    %s13 = sadd.s32 1, %s9
  $region7: #{kfcos_net.13} parent=0 // loop_footer_branch
    %8 = sbr.rel target = $region3
  $region8: #{kfcos_net.13} parent=0 // loop_exit
    _

// kernel: kfcos_net.14
$region0: #{kfcos_net.14}
  #allocation0 [shape = 'u32[]', space=smem, size = 0x4, offset = 0x4, fixed_abs, tag = 'smem constant byte address 0x4 - core index']
  #allocation1 [shape = 'u32[72,128]{1,0:T(1,128)}', space=vmem, size = 0x9000, scoped, tag = 'internal scratch']
  %s0 = inlined_call_operand.vmem [shape: bf16[512,72], index: 0, kind: input, shape index: {}]
  %s1 = inlined_call_operand.vmem [shape: bf16[72,16], index: 1, kind: input, shape index: {}]
  %s2 = inlined_call_operand.vmem [shape: f32[1,16], index: 2, kind: input, shape index: {}]
  %s3 = inlined_call_operand.vmem [shape: f32[512,16], index: 3, kind: output, shape index: {}]
  %s4 = sld [smem:[#allocation0]]
  $region22: #{kfcos_net.14} parent=0
    _
  %s6 = ssub.s32 1, %s4
  %s7 = scalar_select 0, %s6, %s4
  // Predicated region
  $region2: #{kfcos_net.14} parent=0 // pred_check
    _
  $region3: #{kfcos_net.14} parent=0 // pred_check_branch
    %9 = sbr.rel (0) target = $region5
  $region4: #{kfcos_net.14} parent=0 // pred_region
    _
  $region5: #{kfcos_net.14} parent=0 // pred_fallthru
    _
  // Predicated region
  $region6: #{kfcos_net.14} parent=0 // pred_check
    _
  $region7: #{kfcos_net.14} parent=0 // pred_check_branch
    %11 = sbr.rel (0) target = $region9
  $region8: #{kfcos_net.14} parent=0 // pred_region
    _
  $region9: #{kfcos_net.14} parent=0 // pred_fallthru
    _
  // Predicated region
  $region10: #{kfcos_net.14} parent=0 // pred_check
    _
  $region11: #{kfcos_net.14} parent=0 // pred_check_branch
    %13 = sbr.rel (0) target = $region13
  $region12: #{kfcos_net.14} parent=0 // pred_region
    _
  $region13: #{kfcos_net.14} parent=0 // pred_fallthru
    _
  %v15 = vld [vmem:[%s0] sm:$0xf]
  %v16 = vld [vmem:[%s0 + $0x4] sm:$0xf]
  %v17 = vld [vmem:[%s0 + $0x8] sm:$0xf]
  %v18 = vld [vmem:[%s0 + $0xc] sm:$0xf]
  %v19 = vld [vmem:[%s0 + $0x10] sm:$0xf]
  %v20 = vld [vmem:[%s0 + $0x14] sm:$0xf]
  %v21 = vld [vmem:[%s0 + $0x18] sm:$0xf]
  %v22 = vld [vmem:[%s0 + $0x1c] sm:$0xf]
  %v23 = vld [vmem:[%s0 + $0x20] sm:$0xf]
  %v24 = vld [vmem:[%s0 + $0x24] sm:$0xf]
  %v25 = vld [vmem:[%s0 + $0x28] sm:$0xf]
  %v26 = vld [vmem:[%s0 + $0x2c] sm:$0xf]
  %v27 = vld [vmem:[%s0 + $0x30] sm:$0xf]
  %v28 = vld [vmem:[%s0 + $0x34] sm:$0xf]
  %v29 = vld [vmem:[%s0 + $0x38] sm:$0xf]
  %v30 = vld [vmem:[%s0 + $0x3c] sm:$0xf]
  %v31 = vld [vmem:[%s0 + $0x40] sm:$0xf]
  %v32 = vld [vmem:[%s0 + $0x44] sm:$0xf]
  %v33 = vld [vmem:[%s0 + $0x48] sm:$0xf]
  %v34 = vld [vmem:[%s0 + $0x4c] sm:$0xf]
  %v35 = vld [vmem:[%s0 + $0x50] sm:$0xf]
  %v36 = vld [vmem:[%s0 + $0x54] sm:$0xf]
  %v37 = vld [vmem:[%s0 + $0x58] sm:$0xf]
  %v38 = vld [vmem:[%s0 + $0x5c] sm:$0xf]
  %v39 = vld [vmem:[%s0 + $0x60] sm:$0xf]
  %v40 = vld [vmem:[%s0 + $0x64] sm:$0xf]
  %v41 = vld [vmem:[%s0 + $0x68] sm:$0xf]
  %v42 = vld [vmem:[%s0 + $0x6c] sm:$0xf]
  %v43 = vld [vmem:[%s0 + $0x70] sm:$0xf]
  %v44 = vld [vmem:[%s0 + $0x74] sm:$0xf]
  %v45 = vld [vmem:[%s0 + $0x78] sm:$0xf]
  %v46 = vld [vmem:[%s0 + $0x7c] sm:$0xf]
  %v47 = vld [vmem:[%s0 + $0x80] sm:$0xf]
  %v48 = vld [vmem:[%s0 + $0x84] sm:$0xf]
  %v49 = vld [vmem:[%s0 + $0x88] sm:$0xf]
  %v50 = vld [vmem:[%s0 + $0x8c] sm:$0xf]
  %v51 = vld [vmem:[%s0 + $0x90] sm:$0xf]
  %v52 = vld [vmem:[%s0 + $0x94] sm:$0xf]
  %v53 = vld [vmem:[%s0 + $0x98] sm:$0xf]
  %v54 = vld [vmem:[%s0 + $0x9c] sm:$0xf]
  %v55 = vld [vmem:[%s0 + $0xa0] sm:$0xf]
  %v56 = vld [vmem:[%s0 + $0xa4] sm:$0xf]
  %v57 = vld [vmem:[%s0 + $0xa8] sm:$0xf]
  %v58 = vld [vmem:[%s0 + $0xac] sm:$0xf]
  %v59 = vld [vmem:[%s0 + $0xb0] sm:$0xf]
  %v60 = vld [vmem:[%s0 + $0xb4] sm:$0xf]
  %v61 = vld [vmem:[%s0 + $0xb8] sm:$0xf]
  %v62 = vld [vmem:[%s0 + $0xbc] sm:$0xf]
  %v63 = vld [vmem:[%s0 + $0xc0] sm:$0xf]
  %v64 = vld [vmem:[%s0 + $0xc4] sm:$0xf]
  %v65 = vld [vmem:[%s0 + $0xc8] sm:$0xf]
  %v66 = vld [vmem:[%s0 + $0xcc] sm:$0xf]
  %v67 = vld [vmem:[%s0 + $0xd0] sm:$0xf]
  %v68 = vld [vmem:[%s0 + $0xd4] sm:$0xf]
  %v69 = vld [vmem:[%s0 + $0xd8] sm:$0xf]
  %v70 = vld [vmem:[%s0 + $0xdc] sm:$0xf]
  %v71 = vld [vmem:[%s0 + $0xe0] sm:$0xf]
  %v72 = vld [vmem:[%s0 + $0xe4] sm:$0xf]
  %v73 = vld [vmem:[%s0 + $0xe8] sm:$0xf]
  %v74 = vld [vmem:[%s0 + $0xec] sm:$0xf]
  %v75 = vld [vmem:[%s0 + $0xf0] sm:$0xf]
  %v76 = vld [vmem:[%s0 + $0xf4] sm:$0xf]
  %v77 = vld [vmem:[%s0 + $0xf8] sm:$0xf]
  %v78 = vld [vmem:[%s0 + $0xfc] sm:$0xf]
  %v79 = vld [vmem:[%s1] sm:$0xf]
  %v80 = vld [vmem:[%s1 + $0x4] sm:$0xf]
  %v81 = vld [vmem:[%s1 + $0x8] sm:$0xf]
  %v82 = vld [vmem:[%s1 + $0xc] sm:$0xf]
  %v83 = vld [vmem:[%s1 + $0x10] sm:$0xf]
  %v84 = vld [vmem:[%s1 + $0x14] sm:$0xf]
  %v85 = vld [vmem:[%s1 + $0x18] sm:$0xf]
  %v86 = vld [vmem:[%s1 + $0x1c] sm:$0xf]
  %v87 = vld [vmem:[%s1 + $0x20] sm:$0xf]
  %v88 = vld [vmem:[%s2] sm:$0x1]
  %v90 = vperm.slane %v88, 0
  %v156 = vunpack.c.l.b16 %v15
  %v157 = vunpack.c.l.b16 %v16
  %v158 = vunpack.c.l.b16 %v17
  %v159 = vunpack.c.l.b16 %v18
  %v160 = vunpack.c.l.b16 %v19
  %v161 = vunpack.c.l.b16 %v20
  %v162 = vunpack.c.l.b16 %v21
  %v163 = vunpack.c.l.b16 %v22
  %v164 = vunpack.c.l.b16 %v23
  %v165 = vunpack.c.l.b16 %v24
  %v166 = vunpack.c.l.b16 %v25
  %v167 = vunpack.c.l.b16 %v26
  %v168 = vunpack.c.l.b16 %v27
  %v169 = vunpack.c.l.b16 %v28
  %v170 = vunpack.c.l.b16 %v29
  %v171 = vunpack.c.l.b16 %v30
  %v172 = vunpack.c.l.b16 %v31
  %v173 = vunpack.c.l.b16 %v32
  %v174 = vunpack.c.l.b16 %v33
  %v175 = vunpack.c.l.b16 %v34
  %v176 = vunpack.c.l.b16 %v35
  %v177 = vunpack.c.l.b16 %v36
  %v178 = vunpack.c.l.b16 %v37
  %v179 = vunpack.c.l.b16 %v38
  %v180 = vunpack.c.l.b16 %v39
  %v181 = vunpack.c.l.b16 %v40
  %v182 = vunpack.c.l.b16 %v41
  %v183 = vunpack.c.l.b16 %v42
  %v184 = vunpack.c.l.b16 %v43
  %v185 = vunpack.c.l.b16 %v44
  %v186 = vunpack.c.l.b16 %v45
  %v187 = vunpack.c.l.b16 %v46
  %v188 = vunpack.c.l.b16 %v47
  %v189 = vunpack.c.l.b16 %v48
  %v190 = vunpack.c.l.b16 %v49
  %v191 = vunpack.c.l.b16 %v50
  %v192 = vunpack.c.l.b16 %v51
  %v193 = vunpack.c.l.b16 %v52
  %v194 = vunpack.c.l.b16 %v53
  %v195 = vunpack.c.l.b16 %v54
  %v196 = vunpack.c.l.b16 %v55
  %v197 = vunpack.c.l.b16 %v56
  %v198 = vunpack.c.l.b16 %v57
  %v199 = vunpack.c.l.b16 %v58
  %v200 = vunpack.c.l.b16 %v59
  %v201 = vunpack.c.l.b16 %v60
  %v202 = vunpack.c.l.b16 %v61
  %v203 = vunpack.c.l.b16 %v62
  %v204 = vunpack.c.l.b16 %v63
  %v205 = vunpack.c.l.b16 %v64
  %v206 = vunpack.c.l.b16 %v65
  %v207 = vunpack.c.l.b16 %v66
  %v208 = vunpack.c.l.b16 %v67
  %v209 = vunpack.c.l.b16 %v68
  %v210 = vunpack.c.l.b16 %v69
  %v211 = vunpack.c.l.b16 %v70
  %v212 = vunpack.c.l.b16 %v71
  %v213 = vunpack.c.l.b16 %v72
  %v214 = vunpack.c.l.b16 %v73
  %v215 = vunpack.c.l.b16 %v74
  %v216 = vunpack.c.l.b16 %v75
  %v217 = vunpack.c.l.b16 %v76
  %v218 = vunpack.c.l.b16 %v77
  %v219 = vunpack.c.l.b16 %v78
  %v220 = vpack.c.b16 %v157, %v156
  %v221 = vpack.c.b16 %v159, %v158
  %v222 = vpack.c.b16 %v161, %v160
  %v223 = vpack.c.b16 %v163, %v162
  %v224 = vpack.c.b16 %v165, %v164
  %v225 = vpack.c.b16 %v167, %v166
  %v226 = vpack.c.b16 %v169, %v168
  %v227 = vpack.c.b16 %v171, %v170
  %v228 = vpack.c.b16 %v173, %v172
  %v229 = vpack.c.b16 %v175, %v174
  %v230 = vpack.c.b16 %v177, %v176
  %v231 = vpack.c.b16 %v179, %v178
  %v232 = vpack.c.b16 %v181, %v180
  %v233 = vpack.c.b16 %v183, %v182
  %v234 = vpack.c.b16 %v185, %v184
  %v235 = vpack.c.b16 %v187, %v186
  %v236 = vpack.c.b16 %v189, %v188
  %v237 = vpack.c.b16 %v191, %v190
  %v238 = vpack.c.b16 %v193, %v192
  %v239 = vpack.c.b16 %v195, %v194
  %v240 = vpack.c.b16 %v197, %v196
  %v241 = vpack.c.b16 %v199, %v198
  %v242 = vpack.c.b16 %v201, %v200
  %v243 = vpack.c.b16 %v203, %v202
  %v244 = vpack.c.b16 %v205, %v204
  %v245 = vpack.c.b16 %v207, %v206
  %v246 = vpack.c.b16 %v209, %v208
  %v247 = vpack.c.b16 %v211, %v210
  %v248 = vpack.c.b16 %v213, %v212
  %v249 = vpack.c.b16 %v215, %v214
  %v250 = vpack.c.b16 %v217, %v216
  %v251 = vpack.c.b16 %v219, %v218
  %v261 = vunpack.c.l.b16 %v79
  %v262 = vunpack.c.l.b16 %v80
  %v263 = vunpack.c.l.b16 %v81
  %v264 = vunpack.c.l.b16 %v82
  %v265 = vunpack.c.l.b16 %v83
  %v266 = vunpack.c.l.b16 %v84
  %v267 = vunpack.c.l.b16 %v85
  %v268 = vunpack.c.l.b16 %v86
  %v269 = vunpack.c.l.b16 %v87
  %v270 = vpack.c.b16 %v262, %v261
  %v271 = vpack.c.b16 %v264, %v263
  %v272 = vpack.c.b16 %v266, %v265
  %v273 = vpack.c.b16 %v268, %v267
  %v274 = vpack.c.b16 %v269, %v269
  %vm279 = vcmask 588800
  %v281 = vsel %vm279, %v220, 0
  %v284 = vsel %vm279, %v221, 0
  %v287 = vsel %vm279, %v222, 0
  %v290 = vsel %vm279, %v223, 0
  %v293 = vsel %vm279, %v224, 0
  %v296 = vsel %vm279, %v225, 0
  %v299 = vsel %vm279, %v226, 0
  %v302 = vsel %vm279, %v227, 0
  %v305 = vsel %vm279, %v228, 0
  %v308 = vsel %vm279, %v229, 0
  %v311 = vsel %vm279, %v230, 0
  %v314 = vsel %vm279, %v231, 0
  %v317 = vsel %vm279, %v232, 0
  %v320 = vsel %vm279, %v233, 0
  %v323 = vsel %vm279, %v234, 0
  %v326 = vsel %vm279, %v235, 0
  %v329 = vsel %vm279, %v236, 0
  %v332 = vsel %vm279, %v237, 0
  %v335 = vsel %vm279, %v238, 0
  %v338 = vsel %vm279, %v239, 0
  %v341 = vsel %vm279, %v240, 0
  %v344 = vsel %vm279, %v241, 0
  %v347 = vsel %vm279, %v242, 0
  %v350 = vsel %vm279, %v243, 0
  %v353 = vsel %vm279, %v244, 0
  %v356 = vsel %vm279, %v245, 0
  %v359 = vsel %vm279, %v246, 0
  %v362 = vsel %vm279, %v247, 0
  %v365 = vsel %vm279, %v248, 0
  %v368 = vsel %vm279, %v249, 0
  %v371 = vsel %vm279, %v250, 0
  %v374 = vsel %vm279, %v251, 0
  %vm376 = vcmask 1043456
  %v378 = vsel %vm376, %v274, 0
  %380 = vmatpush.bf16.msra.mxu0 0
  %381 = vmatpush.bf16.msra.mxu0 0
  %382 = vmatpush.bf16.msra.mxu0 0
  %383 = vmatpush.bf16.msra.mxu0 %v378
  %384 = vmatpush.bf16.msra.mxu0 %v273
  %385 = vmatpush.bf16.msra.mxu0 %v272
  %386 = vmatpush.bf16.msra.mxu0 %v271
  %387 = vmatpush.bf16.msra.mxu0 %v270
  %388 = vmatmul.bf16.gmra.mxu0 %v281
  %v389 = vpop.f32.mrf.mxu0
  %v390 = vadd.f32 %v90, %v389
  %v391 = vpop.f32.mrf.mxu0
  %v392 = vadd.f32 %v90, %v391
  %393 = vmatmul.bf16.gmra.mxu0 %v284
  %v394 = vpop.f32.mrf.mxu0
  %v395 = vadd.f32 %v90, %v394
  %v396 = vpop.f32.mrf.mxu0
  %v397 = vadd.f32 %v90, %v396
  %398 = vmatmul.bf16.gmra.mxu0 %v287
  %v399 = vpop.f32.mrf.mxu0
  %v400 = vadd.f32 %v90, %v399
  %v401 = vpop.f32.mrf.mxu0
  %v402 = vadd.f32 %v90, %v401
  %403 = vmatmul.bf16.gmra.mxu0 %v290
  %v404 = vpop.f32.mrf.mxu0
  %v405 = vadd.f32 %v90, %v404
  %v406 = vpop.f32.mrf.mxu0
  %v407 = vadd.f32 %v90, %v406
  %408 = vmatmul.bf16.gmra.mxu0 %v293
  %v409 = vpop.f32.mrf.mxu0
  %v410 = vadd.f32 %v90, %v409
  %v411 = vpop.f32.mrf.mxu0
  %v412 = vadd.f32 %v90, %v411
  %413 = vmatmul.bf16.gmra.mxu0 %v296
  %v414 = vpop.f32.mrf.mxu0
  %v415 = vadd.f32 %v90, %v414
  %v416 = vpop.f32.mrf.mxu0
  %v417 = vadd.f32 %v90, %v416
  %418 = vmatmul.bf16.gmra.mxu0 %v299
  %v419 = vpop.f32.mrf.mxu0
  %v420 = vadd.f32 %v90, %v419
  %v421 = vpop.f32.mrf.mxu0
  %v422 = vadd.f32 %v90, %v421
  %423 = vmatmul.bf16.gmra.mxu0 %v302
  %v424 = vpop.f32.mrf.mxu0
  %v425 = vadd.f32 %v90, %v424
  %v426 = vpop.f32.mrf.mxu0
  %v427 = vadd.f32 %v90, %v426
  %428 = vmatmul.bf16.gmra.mxu0 %v305
  %v429 = vpop.f32.mrf.mxu0
  %v430 = vadd.f32 %v90, %v429
  %v431 = vpop.f32.mrf.mxu0
  %v432 = vadd.f32 %v90, %v431
  %433 = vmatmul.bf16.gmra.mxu0 %v308
  %v434 = vpop.f32.mrf.mxu0
  %v435 = vadd.f32 %v90, %v434
  %v436 = vpop.f32.mrf.mxu0
  %v437 = vadd.f32 %v90, %v436
  %438 = vmatmul.bf16.gmra.mxu0 %v311
  %v439 = vpop.f32.mrf.mxu0
  %v440 = vadd.f32 %v90, %v439
  %v441 = vpop.f32.mrf.mxu0
  %v442 = vadd.f32 %v90, %v441
  %443 = vmatmul.bf16.gmra.mxu0 %v314
  %v444 = vpop.f32.mrf.mxu0
  %v445 = vadd.f32 %v90, %v444
  %v446 = vpop.f32.mrf.mxu0
  %v447 = vadd.f32 %v90, %v446
  %448 = vmatmul.bf16.gmra.mxu0 %v317
  %v449 = vpop.f32.mrf.mxu0
  %v450 = vadd.f32 %v90, %v449
  %v451 = vpop.f32.mrf.mxu0
  %v452 = vadd.f32 %v90, %v451
  %453 = vmatmul.bf16.gmra.mxu0 %v320
  %v454 = vpop.f32.mrf.mxu0
  %v455 = vadd.f32 %v90, %v454
  %v456 = vpop.f32.mrf.mxu0
  %v457 = vadd.f32 %v90, %v456
  %458 = vmatmul.bf16.gmra.mxu0 %v323
  %v459 = vpop.f32.mrf.mxu0
  %v460 = vadd.f32 %v90, %v459
  %v461 = vpop.f32.mrf.mxu0
  %v462 = vadd.f32 %v90, %v461
  %463 = vmatmul.bf16.gmra.mxu0 %v326
  %v464 = vpop.f32.mrf.mxu0
  %v465 = vadd.f32 %v90, %v464
  %v466 = vpop.f32.mrf.mxu0
  %v467 = vadd.f32 %v90, %v466
  %468 = vmatmul.bf16.gmra.mxu0 %v329
  %v469 = vpop.f32.mrf.mxu0
  %v470 = vadd.f32 %v90, %v469
  %v471 = vpop.f32.mrf.mxu0
  %v472 = vadd.f32 %v90, %v471
  %473 = vmatmul.bf16.gmra.mxu0 %v332
  %v474 = vpop.f32.mrf.mxu0
  %v475 = vadd.f32 %v90, %v474
  %v476 = vpop.f32.mrf.mxu0
  %v477 = vadd.f32 %v90, %v476
  %478 = vmatmul.bf16.gmra.mxu0 %v335
  %v479 = vpop.f32.mrf.mxu0
  %v480 = vadd.f32 %v90, %v479
  %v481 = vpop.f32.mrf.mxu0
  %v482 = vadd.f32 %v90, %v481
  %483 = vmatmul.bf16.gmra.mxu0 %v338
  %v484 = vpop.f32.mrf.mxu0
  %v485 = vadd.f32 %v90, %v484
  %v486 = vpop.f32.mrf.mxu0
  %v487 = vadd.f32 %v90, %v486
  %488 = vmatmul.bf16.gmra.mxu0 %v341
  %v489 = vpop.f32.mrf.mxu0
  %v490 = vadd.f32 %v90, %v489
  %v491 = vpop.f32.mrf.mxu0
  %v492 = vadd.f32 %v90, %v491
  %493 = vmatmul.bf16.gmra.mxu0 %v344
  %v494 = vpop.f32.mrf.mxu0
  %v495 = vadd.f32 %v90, %v494
  %v496 = vpop.f32.mrf.mxu0
  %v497 = vadd.f32 %v90, %v496
  %498 = vmatmul.bf16.gmra.mxu0 %v347
  %v499 = vpop.f32.mrf.mxu0
  %v500 = vadd.f32 %v90, %v499
  %v501 = vpop.f32.mrf.mxu0
  %v502 = vadd.f32 %v90, %v501
  %503 = vmatmul.bf16.gmra.mxu0 %v350
  %v504 = vpop.f32.mrf.mxu0
  %v505 = vadd.f32 %v90, %v504
  %v506 = vpop.f32.mrf.mxu0
  %v507 = vadd.f32 %v90, %v506
  %508 = vmatmul.bf16.gmra.mxu0 %v353
  %v509 = vpop.f32.mrf.mxu0
  %v510 = vadd.f32 %v90, %v509
  %v511 = vpop.f32.mrf.mxu0
  %v512 = vadd.f32 %v90, %v511
  %513 = vmatmul.bf16.gmra.mxu0 %v356
  %v514 = vpop.f32.mrf.mxu0
  %v515 = vadd.f32 %v90, %v514
  %v516 = vpop.f32.mrf.mxu0
  %v517 = vadd.f32 %v90, %v516
  %518 = vmatmul.bf16.gmra.mxu0 %v359
  %v519 = vpop.f32.mrf.mxu0
  %v520 = vadd.f32 %v90, %v519
  %v521 = vpop.f32.mrf.mxu0
  %v522 = vadd.f32 %v90, %v521
  %523 = vmatmul.bf16.gmra.mxu0 %v362
  %v524 = vpop.f32.mrf.mxu0
  %v525 = vadd.f32 %v90, %v524
  %v526 = vpop.f32.mrf.mxu0
  %v527 = vadd.f32 %v90, %v526
  %528 = vmatmul.bf16.gmra.mxu0 %v365
  %v529 = vpop.f32.mrf.mxu0
  %v530 = vadd.f32 %v90, %v529
  %v531 = vpop.f32.mrf.mxu0
  %v532 = vadd.f32 %v90, %v531
  %533 = vmatmul.bf16.gmra.mxu0 %v368
  %v534 = vpop.f32.mrf.mxu0
  %v535 = vadd.f32 %v90, %v534
  %v536 = vpop.f32.mrf.mxu0
  %v537 = vadd.f32 %v90, %v536
  %538 = vmatmul.bf16.gmra.mxu0 %v371
  %v539 = vpop.f32.mrf.mxu0
  %v540 = vadd.f32 %v90, %v539
  %v541 = vpop.f32.mrf.mxu0
  %v542 = vadd.f32 %v90, %v541
  %543 = vmatmul.bf16.gmra.mxu0 %v374
  %v544 = vpop.f32.mrf.mxu0
  %v545 = vadd.f32 %v90, %v544
  %v546 = vpop.f32.mrf.mxu0
  %v547 = vadd.f32 %v90, %v546
  %548 = vdwg.mxu0
  %v549 = vmax.f32 %v390, 0.0
  %v550 = vmax.f32 %v392, 0.0
  %v551 = vmax.f32 %v395, 0.0
  %v552 = vmax.f32 %v397, 0.0
  %v553 = vmax.f32 %v400, 0.0
  %v554 = vmax.f32 %v402, 0.0
  %v555 = vmax.f32 %v405, 0.0
  %v556 = vmax.f32 %v407, 0.0
  %v557 = vmax.f32 %v410, 0.0
  %v558 = vmax.f32 %v412, 0.0
  %v559 = vmax.f32 %v415, 0.0
  %v560 = vmax.f32 %v417, 0.0
  %v561 = vmax.f32 %v420, 0.0
  %v562 = vmax.f32 %v422, 0.0
  %v563 = vmax.f32 %v425, 0.0
  %v564 = vmax.f32 %v427, 0.0
  %v565 = vmax.f32 %v430, 0.0
  %v566 = vmax.f32 %v432, 0.0
  %v567 = vmax.f32 %v435, 0.0
  %v568 = vmax.f32 %v437, 0.0
  %v569 = vmax.f32 %v440, 0.0
  %v570 = vmax.f32 %v442, 0.0
  %v571 = vmax.f32 %v445, 0.0
  %v572 = vmax.f32 %v447, 0.0
  %v573 = vmax.f32 %v450, 0.0
  %v574 = vmax.f32 %v452, 0.0
  %v575 = vmax.f32 %v455, 0.0
  %v576 = vmax.f32 %v457, 0.0
  %v577 = vmax.f32 %v460, 0.0
  %v578 = vmax.f32 %v462, 0.0
  %v579 = vmax.f32 %v465, 0.0
  %v580 = vmax.f32 %v467, 0.0
  %v581 = vmax.f32 %v470, 0.0
  %v582 = vmax.f32 %v472, 0.0
  %v583 = vmax.f32 %v475, 0.0
  %v584 = vmax.f32 %v477, 0.0
  %v585 = vmax.f32 %v480, 0.0
  %v586 = vmax.f32 %v482, 0.0
  %v587 = vmax.f32 %v485, 0.0
  %v588 = vmax.f32 %v487, 0.0
  %v589 = vmax.f32 %v490, 0.0
  %v590 = vmax.f32 %v492, 0.0
  %v591 = vmax.f32 %v495, 0.0
  %v592 = vmax.f32 %v497, 0.0
  %v593 = vmax.f32 %v500, 0.0
  %v594 = vmax.f32 %v502, 0.0
  %v595 = vmax.f32 %v505, 0.0
  %v596 = vmax.f32 %v507, 0.0
  %v597 = vmax.f32 %v510, 0.0
  %v598 = vmax.f32 %v512, 0.0
  %v599 = vmax.f32 %v515, 0.0
  %v600 = vmax.f32 %v517, 0.0
  %v601 = vmax.f32 %v520, 0.0
  %v602 = vmax.f32 %v522, 0.0
  %v603 = vmax.f32 %v525, 0.0
  %v604 = vmax.f32 %v527, 0.0
  %v605 = vmax.f32 %v530, 0.0
  %v606 = vmax.f32 %v532, 0.0
  %v607 = vmax.f32 %v535, 0.0
  %v608 = vmax.f32 %v537, 0.0
  %v609 = vmax.f32 %v540, 0.0
  %v610 = vmax.f32 %v542, 0.0
  %v611 = vmax.f32 %v545, 0.0
  %v612 = vmax.f32 %v547, 0.0
  %vm613 = vcmask 130048
  %614 = vst.msk [vmem:[%s3] sm:$0xff] %vm613, %v549
  %615 = vst.msk [vmem:[%s3 + $0x8] sm:$0xff] %vm613, %v550
  %616 = vst.msk [vmem:[%s3 + $0x10] sm:$0xff] %vm613, %v551
  %617 = vst.msk [vmem:[%s3 + $0x18] sm:$0xff] %vm613, %v552
  %618 = vst.msk [vmem:[%s3 + $0x20] sm:$0xff] %vm613, %v553
  %619 = vst.msk [vmem:[%s3 + $0x28] sm:$0xff] %vm613, %v554
  %620 = vst.msk [vmem:[%s3 + $0x30] sm:$0xff] %vm613, %v555
  %621 = vst.msk [vmem:[%s3 + $0x38] sm:$0xff] %vm613, %v556
  %622 = vst.msk [vmem:[%s3 + $0x40] sm:$0xff] %vm613, %v557
  %623 = vst.msk [vmem:[%s3 + $0x48] sm:$0xff] %vm613, %v558
  %624 = vst.msk [vmem:[%s3 + $0x50] sm:$0xff] %vm613, %v559
  %625 = vst.msk [vmem:[%s3 + $0x58] sm:$0xff] %vm613, %v560
  %626 = vst.msk [vmem:[%s3 + $0x60] sm:$0xff] %vm613, %v561
  %627 = vst.msk [vmem:[%s3 + $0x68] sm:$0xff] %vm613, %v562
  %628 = vst.msk [vmem:[%s3 + $0x70] sm:$0xff] %vm613, %v563
  %629 = vst.msk [vmem:[%s3 + $0x78] sm:$0xff] %vm613, %v564
  %630 = vst.msk [vmem:[%s3 + $0x80] sm:$0xff] %vm613, %v565
  %631 = vst.msk [vmem:[%s3 + $0x88] sm:$0xff] %vm613, %v566
  %632 = vst.msk [vmem:[%s3 + $0x90] sm:$0xff] %vm613, %v567
  %633 = vst.msk [vmem:[%s3 + $0x98] sm:$0xff] %vm613, %v568
  %634 = vst.msk [vmem:[%s3 + $0xa0] sm:$0xff] %vm613, %v569
  %635 = vst.msk [vmem:[%s3 + $0xa8] sm:$0xff] %vm613, %v570
  %636 = vst.msk [vmem:[%s3 + $0xb0] sm:$0xff] %vm613, %v571
  %637 = vst.msk [vmem:[%s3 + $0xb8] sm:$0xff] %vm613, %v572
  %638 = vst.msk [vmem:[%s3 + $0xc0] sm:$0xff] %vm613, %v573
  %639 = vst.msk [vmem:[%s3 + $0xc8] sm:$0xff] %vm613, %v574
  %640 = vst.msk [vmem:[%s3 + $0xd0] sm:$0xff] %vm613, %v575
  %641 = vst.msk [vmem:[%s3 + $0xd8] sm:$0xff] %vm613, %v576
  %642 = vst.msk [vmem:[%s3 + $0xe0] sm:$0xff] %vm613, %v577
  %643 = vst.msk [vmem:[%s3 + $0xe8] sm:$0xff] %vm613, %v578
  %644 = vst.msk [vmem:[%s3 + $0xf0] sm:$0xff] %vm613, %v579
  %645 = vst.msk [vmem:[%s3 + $0xf8] sm:$0xff] %vm613, %v580
  %646 = vst.msk [vmem:[%s3 + $0x100] sm:$0xff] %vm613, %v581
  %647 = vst.msk [vmem:[%s3 + $0x108] sm:$0xff] %vm613, %v582
  %648 = vst.msk [vmem:[%s3 + $0x110] sm:$0xff] %vm613, %v583
  %649 = vst.msk [vmem:[%s3 + $0x118] sm:$0xff] %vm613, %v584
  %650 = vst.msk [vmem:[%s3 + $0x120] sm:$0xff] %vm613, %v585
  %651 = vst.msk [vmem:[%s3 + $0x128] sm:$0xff] %vm613, %v586
  %652 = vst.msk [vmem:[%s3 + $0x130] sm:$0xff] %vm613, %v587
  %653 = vst.msk [vmem:[%s3 + $0x138] sm:$0xff] %vm613, %v588
  %654 = vst.msk [vmem:[%s3 + $0x140] sm:$0xff] %vm613, %v589
  %655 = vst.msk [vmem:[%s3 + $0x148] sm:$0xff] %vm613, %v590
  %656 = vst.msk [vmem:[%s3 + $0x150] sm:$0xff] %vm613, %v591
  %657 = vst.msk [vmem:[%s3 + $0x158] sm:$0xff] %vm613, %v592
  %658 = vst.msk [vmem:[%s3 + $0x160] sm:$0xff] %vm613, %v593
  %659 = vst.msk [vmem:[%s3 + $0x168] sm:$0xff] %vm613, %v594
  %660 = vst.msk [vmem:[%s3 + $0x170] sm:$0xff] %vm613, %v595
  %661 = vst.msk [vmem:[%s3 + $0x178] sm:$0xff] %vm613, %v596
  %662 = vst.msk [vmem:[%s3 + $0x180] sm:$0xff] %vm613, %v597
  %663 = vst.msk [vmem:[%s3 + $0x188] sm:$0xff] %vm613, %v598
  %664 = vst.msk [vmem:[%s3 + $0x190] sm:$0xff] %vm613, %v599
  %665 = vst.msk [vmem:[%s3 + $0x198] sm:$0xff] %vm613, %v600
  %666 = vst.msk [vmem:[%s3 + $0x1a0] sm:$0xff] %vm613, %v601
  %667 = vst.msk [vmem:[%s3 + $0x1a8] sm:$0xff] %vm613, %v602
  %668 = vst.msk [vmem:[%s3 + $0x1b0] sm:$0xff] %vm613, %v603
  %669 = vst.msk [vmem:[%s3 + $0x1b8] sm:$0xff] %vm613, %v604
  %670 = vst.msk [vmem:[%s3 + $0x1c0] sm:$0xff] %vm613, %v605
  %671 = vst.msk [vmem:[%s3 + $0x1c8] sm:$0xff] %vm613, %v606
  %672 = vst.msk [vmem:[%s3 + $0x1d0] sm:$0xff] %vm613, %v607
  %673 = vst.msk [vmem:[%s3 + $0x1d8] sm:$0xff] %vm613, %v608
  %674 = vst.msk [vmem:[%s3 + $0x1e0] sm:$0xff] %vm613, %v609
  %675 = vst.msk [vmem:[%s3 + $0x1e8] sm:$0xff] %vm613, %v610
  %676 = vst.msk [vmem:[%s3 + $0x1f0] sm:$0xff] %vm613, %v611
  %677 = vst.msk [vmem:[%s3 + $0x1f8] sm:$0xff] %vm613, %v612
  // Predicated region
  $region14: #{kfcos_net.14} parent=0 // pred_check
    _
  $region15: #{kfcos_net.14} parent=0 // pred_check_branch
    %679 = sbr.rel (0) target = $region17
  $region16: #{kfcos_net.14} parent=0 // pred_region
    _
  $region17: #{kfcos_net.14} parent=0 // pred_fallthru
    _
  // Predicated region
  $region18: #{kfcos_net.14} parent=0 // pred_check
    _
  $region19: #{kfcos_net.14} parent=0 // pred_check_branch
    %681 = sbr.rel (0) target = $region21
  $region20: #{kfcos_net.14} parent=0 // pred_region
    _
  $region21: #{kfcos_net.14} parent=0 // pred_fallthru
    _

// kernel: kfcos_net.15
$region0: #{kfcos_net.15}
  #allocation0 [shape = 'u32[]', space=smem, size = 0x4, offset = 0x4, fixed_abs, tag = 'smem constant byte address 0x4 - core index']
  #allocation1 [shape = 'u32[72,128]{1,0:T(1,128)}', space=vmem, size = 0x9000, scoped, tag = 'internal scratch']
  %s0 = inlined_call_operand.vmem [shape: bf16[128,144], index: 0, kind: input, shape index: {}]
  %s1 = inlined_call_operand.vmem [shape: bf16[144,32], index: 1, kind: input, shape index: {}]
  %s2 = inlined_call_operand.vmem [shape: f32[1,32], index: 2, kind: input, shape index: {}]
  %s3 = inlined_call_operand.vmem [shape: f32[128,32], index: 3, kind: output, shape index: {}]
  %s4 = sld [smem:[#allocation0]]
  $region22: #{kfcos_net.15} parent=0
    _
  %s6 = ssub.s32 1, %s4
  %s7 = scalar_select 0, %s6, %s4
  // Predicated region
  $region2: #{kfcos_net.15} parent=0 // pred_check
    _
  $region3: #{kfcos_net.15} parent=0 // pred_check_branch
    %9 = sbr.rel (0) target = $region5
  $region4: #{kfcos_net.15} parent=0 // pred_region
    _
  $region5: #{kfcos_net.15} parent=0 // pred_fallthru
    _
  // Predicated region
  $region6: #{kfcos_net.15} parent=0 // pred_check
    _
  $region7: #{kfcos_net.15} parent=0 // pred_check_branch
    %11 = sbr.rel (0) target = $region9
  $region8: #{kfcos_net.15} parent=0 // pred_region
    _
  $region9: #{kfcos_net.15} parent=0 // pred_fallthru
    _
  // Predicated region
  $region10: #{kfcos_net.15} parent=0 // pred_check
    _
  $region11: #{kfcos_net.15} parent=0 // pred_check_branch
    %13 = sbr.rel (0) target = $region13
  $region12: #{kfcos_net.15} parent=0 // pred_region
    _
  $region13: #{kfcos_net.15} parent=0 // pred_fallthru
    _
  %v15 = vld [vmem:[%s0] sm:$0xff]
  %v16 = vld [vmem:[%s0 + $0x8] sm:$0xff]
  %v17 = vld [vmem:[%s0 + $0x10] sm:$0xff]
  %v18 = vld [vmem:[%s0 + $0x18] sm:$0xff]
  %v19 = vld [vmem:[%s0 + $0x20] sm:$0xff]
  %v20 = vld [vmem:[%s0 + $0x28] sm:$0xff]
  %v21 = vld [vmem:[%s0 + $0x30] sm:$0xff]
  %v22 = vld [vmem:[%s0 + $0x38] sm:$0xff]
  %v23 = vld [vmem:[%s0 + $0x40] sm:$0xff]
  %v24 = vld [vmem:[%s0 + $0x48] sm:$0xff]
  %v25 = vld [vmem:[%s0 + $0x50] sm:$0xff]
  %v26 = vld [vmem:[%s0 + $0x58] sm:$0xff]
  %v27 = vld [vmem:[%s0 + $0x60] sm:$0xff]
  %v28 = vld [vmem:[%s0 + $0x68] sm:$0xff]
  %v29 = vld [vmem:[%s0 + $0x70] sm:$0xff]
  %v30 = vld [vmem:[%s0 + $0x78] sm:$0xff]
  %v31 = vld [vmem:[%s1] sm:$0xf]
  %v32 = vld [vmem:[%s1 + $0x4] sm:$0xf]
  %v33 = vld [vmem:[%s1 + $0x8] sm:$0xf]
  %v34 = vld [vmem:[%s1 + $0xc] sm:$0xf]
  %v35 = vld [vmem:[%s1 + $0x10] sm:$0xf]
  %v36 = vld [vmem:[%s1 + $0x14] sm:$0xf]
  %v37 = vld [vmem:[%s1 + $0x18] sm:$0xf]
  %v38 = vld [vmem:[%s1 + $0x1c] sm:$0xf]
  %v39 = vld [vmem:[%s1 + $0x20] sm:$0xf]
  %v40 = vld [vmem:[%s1 + $0x24] sm:$0xf]
  %v41 = vld [vmem:[%s1 + $0x28] sm:$0xf]
  %v42 = vld [vmem:[%s1 + $0x2c] sm:$0xf]
  %v43 = vld [vmem:[%s1 + $0x30] sm:$0xf]
  %v44 = vld [vmem:[%s1 + $0x34] sm:$0xf]
  %v45 = vld [vmem:[%s1 + $0x38] sm:$0xf]
  %v46 = vld [vmem:[%s1 + $0x3c] sm:$0xf]
  %v47 = vld [vmem:[%s1 + $0x40] sm:$0xf]
  %v48 = vld [vmem:[%s1 + $0x44] sm:$0xf]
  %v49 = vld [vmem:[%s2] sm:$0x1]
  %v51 = vperm.slane %v49, 0
  %v69 = vunpack.c.l.b16 %v15
  %v70 = vunpack.c.h.b16 %v15
  %v71 = vunpack.c.l.b16 %v16
  %v72 = vunpack.c.h.b16 %v16
  %v73 = vunpack.c.l.b16 %v17
  %v74 = vunpack.c.h.b16 %v17
  %v75 = vunpack.c.l.b16 %v18
  %v76 = vunpack.c.h.b16 %v18
  %v77 = vunpack.c.l.b16 %v19
  %v78 = vunpack.c.h.b16 %v19
  %v79 = vunpack.c.l.b16 %v20
  %v80 = vunpack.c.h.b16 %v20
  %v81 = vunpack.c.l.b16 %v21
  %v82 = vunpack.c.h.b16 %v21
  %v83 = vunpack.c.l.b16 %v22
  %v84 = vunpack.c.h.b16 %v22
  %v85 = vunpack.c.l.b16 %v23
  %v86 = vunpack.c.h.b16 %v23
  %v87 = vunpack.c.l.b16 %v24
  %v88 = vunpack.c.h.b16 %v24
  %v89 = vunpack.c.l.b16 %v25
  %v90 = vunpack.c.h.b16 %v25
  %v91 = vunpack.c.l.b16 %v26
  %v92 = vunpack.c.h.b16 %v26
  %v93 = vunpack.c.l.b16 %v27
  %v94 = vunpack.c.h.b16 %v27
  %v95 = vunpack.c.l.b16 %v28
  %v96 = vunpack.c.h.b16 %v28
  %v97 = vunpack.c.l.b16 %v29
  %v98 = vunpack.c.h.b16 %v29
  %v99 = vunpack.c.l.b16 %v30
  %v100 = vunpack.c.h.b16 %v30
  %v101 = vpack.c.b16 %v71, %v69
  %v102 = vpack.c.b16 %v72, %v70
  %v103 = vpack.c.b16 %v75, %v73
  %v104 = vpack.c.b16 %v76, %v74
  %v105 = vpack.c.b16 %v79, %v77
  %v106 = vpack.c.b16 %v80, %v78
  %v107 = vpack.c.b16 %v83, %v81
  %v108 = vpack.c.b16 %v84, %v82
  %v109 = vpack.c.b16 %v87, %v85
  %v110 = vpack.c.b16 %v88, %v86
  %v111 = vpack.c.b16 %v91, %v89
  %v112 = vpack.c.b16 %v92, %v90
  %v113 = vpack.c.b16 %v95, %v93
  %v114 = vpack.c.b16 %v96, %v94
  %v115 = vpack.c.b16 %v99, %v97
  %v116 = vpack.c.b16 %v100, %v98
  %v143 = vunpack.c.l.b16 %v31
  %v144 = vunpack.c.l.b16 %v32
  %v145 = vunpack.c.l.b16 %v33
  %v146 = vunpack.c.l.b16 %v34
  %v147 = vunpack.c.l.b16 %v35
  %v148 = vunpack.c.l.b16 %v36
  %v149 = vunpack.c.l.b16 %v37
  %v150 = vunpack.c.l.b16 %v38
  %v151 = vunpack.c.l.b16 %v39
  %v152 = vunpack.c.l.b16 %v40
  %v153 = vunpack.c.l.b16 %v41
  %v154 = vunpack.c.l.b16 %v42
  %v155 = vunpack.c.l.b16 %v43
  %v156 = vunpack.c.l.b16 %v44
  %v157 = vunpack.c.l.b16 %v45
  %v158 = vunpack.c.l.b16 %v46
  %v159 = vunpack.c.l.b16 %v47
  %v160 = vunpack.c.l.b16 %v48
  %v161 = vpack.c.b16 %v144, %v143
  %v162 = vpack.c.b16 %v146, %v145
  %v163 = vpack.c.b16 %v148, %v147
  %v164 = vpack.c.b16 %v150, %v149
  %v165 = vpack.c.b16 %v152, %v151
  %v166 = vpack.c.b16 %v154, %v153
  %v167 = vpack.c.b16 %v156, %v155
  %v168 = vpack.c.b16 %v158, %v157
  %v169 = vpack.c.b16 %v160, %v159
  %vm179 = vcmask 130048
  %v181 = vsel %vm179, %v102, 0
  %v184 = vsel %vm179, %v104, 0
  %v187 = vsel %vm179, %v106, 0
  %v190 = vsel %vm179, %v108, 0
  %v193 = vsel %vm179, %v110, 0
  %v196 = vsel %vm179, %v112, 0
  %v199 = vsel %vm179, %v114, 0
  %v202 = vsel %vm179, %v116, 0
  %204 = vmatpush.bf16.msra.mxu0 %v168
  %205 = vmatpush.bf16.msra.mxu0 %v167
  %206 = vmatpush.bf16.msra.mxu0 %v166
  %207 = vmatpush.bf16.msra.mxu0 %v165
  %208 = vmatpush.bf16.msra.mxu0 %v164
  %209 = vmatpush.bf16.msra.mxu0 %v163
  %210 = vmatpush.bf16.msra.mxu0 %v162
  %211 = vmatpush.bf16.msra.mxu0 %v161
  %212 = vmatmul.bf16.gmra.mxu0 %v101
  %v213 = vpop.f32.mrf.mxu0
  %v214 = vadd.f32 %v51, %v213
  %v215 = vpop.f32.mrf.mxu0
  %v216 = vadd.f32 %v51, %v215
  %217 = vmatmul.bf16.gmra.mxu0 %v103
  %v218 = vpop.f32.mrf.mxu0
  %v219 = vadd.f32 %v51, %v218
  %v220 = vpop.f32.mrf.mxu0
  %v221 = vadd.f32 %v51, %v220
  %222 = vmatmul.bf16.gmra.mxu0 %v105
  %v223 = vpop.f32.mrf.mxu0
  %v224 = vadd.f32 %v51, %v223
  %v225 = vpop.f32.mrf.mxu0
  %v226 = vadd.f32 %v51, %v225
  %227 = vmatmul.bf16.gmra.mxu0 %v107
  %v228 = vpop.f32.mrf.mxu0
  %v229 = vadd.f32 %v51, %v228
  %v230 = vpop.f32.mrf.mxu0
  %v231 = vadd.f32 %v51, %v230
  %232 = vmatmul.bf16.gmra.mxu0 %v109
  %v233 = vpop.f32.mrf.mxu0
  %v234 = vadd.f32 %v51, %v233
  %v235 = vpop.f32.mrf.mxu0
  %v236 = vadd.f32 %v51, %v235
  %237 = vmatmul.bf16.gmra.mxu0 %v111
  %v238 = vpop.f32.mrf.mxu0
  %v239 = vadd.f32 %v51, %v238
  %v240 = vpop.f32.mrf.mxu0
  %v241 = vadd.f32 %v51, %v240
  %242 = vmatmul.bf16.gmra.mxu0 %v113
  %v243 = vpop.f32.mrf.mxu0
  %v244 = vadd.f32 %v51, %v243
  %v245 = vpop.f32.mrf.mxu0
  %v246 = vadd.f32 %v51, %v245
  %247 = vmatmul.bf16.gmra.mxu0 %v115
  %v248 = vpop.f32.mrf.mxu0
  %v249 = vadd.f32 %v51, %v248
  %v250 = vpop.f32.mrf.mxu0
  %v251 = vadd.f32 %v51, %v250
  %252 = vdwg.mxu0
  %253 = vmatpush.bf16.msra.mxu0 0
  %254 = vmatpush.bf16.msra.mxu0 0
  %255 = vmatpush.bf16.msra.mxu0 0
  %256 = vmatpush.bf16.msra.mxu0 0
  %257 = vmatpush.bf16.msra.mxu0 0
  %258 = vmatpush.bf16.msra.mxu0 0
  %259 = vmatpush.bf16.msra.mxu0 0
  %260 = vmatpush.bf16.msra.mxu0 %v169
  %261 = vmatmul.bf16.gmra.mxu0 %v181
  %v262 = vpop.f32.mrf.mxu0
  %v263 = vadd.f32 %v214, %v262
  %v264 = vpop.f32.mrf.mxu0
  %v265 = vadd.f32 %v216, %v264
  %266 = vmatmul.bf16.gmra.mxu0 %v184
  %v267 = vpop.f32.mrf.mxu0
  %v268 = vadd.f32 %v219, %v267
  %v269 = vpop.f32.mrf.mxu0
  %v270 = vadd.f32 %v221, %v269
  %271 = vmatmul.bf16.gmra.mxu0 %v187
  %v272 = vpop.f32.mrf.mxu0
  %v273 = vadd.f32 %v224, %v272
  %v274 = vpop.f32.mrf.mxu0
  %v275 = vadd.f32 %v226, %v274
  %276 = vmatmul.bf16.gmra.mxu0 %v190
  %v277 = vpop.f32.mrf.mxu0
  %v278 = vadd.f32 %v229, %v277
  %v279 = vpop.f32.mrf.mxu0
  %v280 = vadd.f32 %v231, %v279
  %281 = vmatmul.bf16.gmra.mxu0 %v193
  %v282 = vpop.f32.mrf.mxu0
  %v283 = vadd.f32 %v234, %v282
  %v284 = vpop.f32.mrf.mxu0
  %v285 = vadd.f32 %v236, %v284
  %286 = vmatmul.bf16.gmra.mxu0 %v196
  %v287 = vpop.f32.mrf.mxu0
  %v288 = vadd.f32 %v239, %v287
  %v289 = vpop.f32.mrf.mxu0
  %v290 = vadd.f32 %v241, %v289
  %291 = vmatmul.bf16.gmra.mxu0 %v199
  %v292 = vpop.f32.mrf.mxu0
  %v293 = vadd.f32 %v244, %v292
  %v294 = vpop.f32.mrf.mxu0
  %v295 = vadd.f32 %v246, %v294
  %296 = vmatmul.bf16.gmra.mxu0 %v202
  %v297 = vpop.f32.mrf.mxu0
  %v298 = vadd.f32 %v249, %v297
  %v299 = vpop.f32.mrf.mxu0
  %v300 = vadd.f32 %v251, %v299
  %301 = vdwg.mxu0
  %v302 = vmax.f32 %v263, 0.0
  %v303 = vmax.f32 %v265, 0.0
  %v304 = vmax.f32 %v268, 0.0
  %v305 = vmax.f32 %v270, 0.0
  %v306 = vmax.f32 %v273, 0.0
  %v307 = vmax.f32 %v275, 0.0
  %v308 = vmax.f32 %v278, 0.0
  %v309 = vmax.f32 %v280, 0.0
  %v310 = vmax.f32 %v283, 0.0
  %v311 = vmax.f32 %v285, 0.0
  %v312 = vmax.f32 %v288, 0.0
  %v313 = vmax.f32 %v290, 0.0
  %v314 = vmax.f32 %v293, 0.0
  %v315 = vmax.f32 %v295, 0.0
  %v316 = vmax.f32 %v298, 0.0
  %v317 = vmax.f32 %v300, 0.0
  %vm318 = vcmask 261120
  %319 = vst.msk [vmem:[%s3] sm:$0xff] %vm318, %v302
  %320 = vst.msk [vmem:[%s3 + $0x8] sm:$0xff] %vm318, %v303
  %321 = vst.msk [vmem:[%s3 + $0x10] sm:$0xff] %vm318, %v304
  %322 = vst.msk [vmem:[%s3 + $0x18] sm:$0xff] %vm318, %v305
  %323 = vst.msk [vmem:[%s3 + $0x20] sm:$0xff] %vm318, %v306
  %324 = vst.msk [vmem:[%s3 + $0x28] sm:$0xff] %vm318, %v307
  %325 = vst.msk [vmem:[%s3 + $0x30] sm:$0xff] %vm318, %v308
  %326 = vst.msk [vmem:[%s3 + $0x38] sm:$0xff] %vm318, %v309
  %327 = vst.msk [vmem:[%s3 + $0x40] sm:$0xff] %vm318, %v310
  %328 = vst.msk [vmem:[%s3 + $0x48] sm:$0xff] %vm318, %v311
  %329 = vst.msk [vmem:[%s3 + $0x50] sm:$0xff] %vm318, %v312
  %330 = vst.msk [vmem:[%s3 + $0x58] sm:$0xff] %vm318, %v313
  %331 = vst.msk [vmem:[%s3 + $0x60] sm:$0xff] %vm318, %v314
  %332 = vst.msk [vmem:[%s3 + $0x68] sm:$0xff] %vm318, %v315
  %333 = vst.msk [vmem:[%s3 + $0x70] sm:$0xff] %vm318, %v316
  %334 = vst.msk [vmem:[%s3 + $0x78] sm:$0xff] %vm318, %v317
  // Predicated region
  $region14: #{kfcos_net.15} parent=0 // pred_check
    _
  $region15: #{kfcos_net.15} parent=0 // pred_check_branch
    %336 = sbr.rel (0) target = $region17
  $region16: #{kfcos_net.15} parent=0 // pred_region
    _
  $region17: #{kfcos_net.15} parent=0 // pred_fallthru
    _
  // Predicated region
  $region18: #{kfcos_net.15} parent=0 // pred_check
    _
  $region19: #{kfcos_net.15} parent=0 // pred_check_branch
    %338 = sbr.rel (0) target = $region21
  $region20: #{kfcos_net.15} parent=0 // pred_region
    _
  $region21: #{kfcos_net.15} parent=0 // pred_fallthru
    _

// kernel: kfcos_net.16
$region0: #{kfcos_net.16}
  #allocation0 [shape = 'u32[]', space=smem, size = 0x4, offset = 0x4, fixed_abs, tag = 'smem constant byte address 0x4 - core index']
  #allocation1 [shape = 'u32[72,128]{1,0:T(1,128)}', space=vmem, size = 0x9000, scoped, tag = 'internal scratch']
  %s0 = inlined_call_operand.vmem [shape: bf16[32,288], index: 0, kind: input, shape index: {}]
  %s1 = inlined_call_operand.vmem [shape: bf16[288,64], index: 1, kind: input, shape index: {}]
  %s2 = inlined_call_operand.vmem [shape: f32[1,64], index: 2, kind: input, shape index: {}]
  %s3 = inlined_call_operand.vmem [shape: f32[32,64], index: 3, kind: output, shape index: {}]
  %s4 = sld [smem:[#allocation0]]
  $region22: #{kfcos_net.16} parent=0
    _
  %s6 = ssub.s32 1, %s4
  %s7 = scalar_select 0, %s6, %s4
  // Predicated region
  $region2: #{kfcos_net.16} parent=0 // pred_check
    _
  $region3: #{kfcos_net.16} parent=0 // pred_check_branch
    %9 = sbr.rel (0) target = $region5
  $region4: #{kfcos_net.16} parent=0 // pred_region
    _
  $region5: #{kfcos_net.16} parent=0 // pred_fallthru
    _
  // Predicated region
  $region6: #{kfcos_net.16} parent=0 // pred_check
    _
  $region7: #{kfcos_net.16} parent=0 // pred_check_branch
    %11 = sbr.rel (0) target = $region9
  $region8: #{kfcos_net.16} parent=0 // pred_region
    _
  $region9: #{kfcos_net.16} parent=0 // pred_fallthru
    _
  // Predicated region
  $region10: #{kfcos_net.16} parent=0 // pred_check
    _
  $region11: #{kfcos_net.16} parent=0 // pred_check_branch
    %13 = sbr.rel (0) target = $region13
  $region12: #{kfcos_net.16} parent=0 // pred_region
    _
  $region13: #{kfcos_net.16} parent=0 // pred_fallthru
    _
  %v15 = vld [vmem:[%s0] sm:$0xff]
  %v16 = vld [vmem:[%s0 + $0x8] sm:$0xf]
  %v17 = vld [vmem:[%s0 + $0xc] sm:$0xff]
  %v18 = vld [vmem:[%s0 + $0x14] sm:$0xf]
  %v19 = vld [vmem:[%s0 + $0x18] sm:$0xff]
  %v20 = vld [vmem:[%s0 + $0x20] sm:$0xf]
  %v21 = vld [vmem:[%s0 + $0x24] sm:$0xff]
  %v22 = vld [vmem:[%s0 + $0x2c] sm:$0xf]
  %v23 = vld [vmem:[%s1] sm:$0xf]
  %v24 = vld [vmem:[%s1 + $0x4] sm:$0xf]
  %v25 = vld [vmem:[%s1 + $0x8] sm:$0xf]
  %v26 = vld [vmem:[%s1 + $0xc] sm:$0xf]
  %v27 = vld [vmem:[%s1 + $0x10] sm:$0xf]
  %v28 = vld [vmem:[%s1 + $0x14] sm:$0xf]
  %v29 = vld [vmem:[%s1 + $0x18] sm:$0xf]
  %v30 = vld [vmem:[%s1 + $0x1c] sm:$0xf]
  %v31 = vld [vmem:[%s1 + $0x20] sm:$0xf]
  %v32 = vld [vmem:[%s1 + $0x24] sm:$0xf]
  %v33 = vld [vmem:[%s1 + $0x28] sm:$0xf]
  %v34 = vld [vmem:[%s1 + $0x2c] sm:$0xf]
  %v35 = vld [vmem:[%s1 + $0x30] sm:$0xf]
  %v36 = vld [vmem:[%s1 + $0x34] sm:$0xf]
  %v37 = vld [vmem:[%s1 + $0x38] sm:$0xf]
  %v38 = vld [vmem:[%s1 + $0x3c] sm:$0xf]
  %v39 = vld [vmem:[%s1 + $0x40] sm:$0xf]
  %v40 = vld [vmem:[%s1 + $0x44] sm:$0xf]
  %v41 = vld [vmem:[%s1 + $0x48] sm:$0xf]
  %v42 = vld [vmem:[%s1 + $0x4c] sm:$0xf]
  %v43 = vld [vmem:[%s1 + $0x50] sm:$0xf]
  %v44 = vld [vmem:[%s1 + $0x54] sm:$0xf]
  %v45 = vld [vmem:[%s1 + $0x58] sm:$0xf]
  %v46 = vld [vmem:[%s1 + $0x5c] sm:$0xf]
  %v47 = vld [vmem:[%s1 + $0x60] sm:$0xf]
  %v48 = vld [vmem:[%s1 + $0x64] sm:$0xf]
  %v49 = vld [vmem:[%s1 + $0x68] sm:$0xf]
  %v50 = vld [vmem:[%s1 + $0x6c] sm:$0xf]
  %v51 = vld [vmem:[%s1 + $0x70] sm:$0xf]
  %v52 = vld [vmem:[%s1 + $0x74] sm:$0xf]
  %v53 = vld [vmem:[%s1 + $0x78] sm:$0xf]
  %v54 = vld [vmem:[%s1 + $0x7c] sm:$0xf]
  %v55 = vld [vmem:[%s1 + $0x80] sm:$0xf]
  %v56 = vld [vmem:[%s1 + $0x84] sm:$0xf]
  %v57 = vld [vmem:[%s1 + $0x88] sm:$0xf]
  %v58 = vld [vmem:[%s1 + $0x8c] sm:$0xf]
  %v59 = vld [vmem:[%s2] sm:$0x1]
  %v61 = vperm.slane %v59, 0
  %v71 = vunpack.c.l.b16 %v15
  %v72 = vunpack.c.h.b16 %v15
  %v73 = vunpack.c.l.b16 %v16
  %v74 = vunpack.c.l.b16 %v17
  %v75 = vunpack.c.h.b16 %v17
  %v76 = vunpack.c.l.b16 %v18
  %v77 = vunpack.c.l.b16 %v19
  %v78 = vunpack.c.h.b16 %v19
  %v79 = vunpack.c.l.b16 %v20
  %v80 = vunpack.c.l.b16 %v21
  %v81 = vunpack.c.h.b16 %v21
  %v82 = vunpack.c.l.b16 %v22
  %v83 = vpack.c.b16 %v74, %v71
  %v84 = vpack.c.b16 %v75, %v72
  %v85 = vpack.c.b16 %v76, %v73
  %v86 = vpack.c.b16 %v80, %v77
  %v87 = vpack.c.b16 %v81, %v78
  %v88 = vpack.c.b16 %v82, %v79
  %v129 = vunpack.c.l.b16 %v23
  %v130 = vunpack.c.l.b16 %v24
  %v131 = vunpack.c.l.b16 %v25
  %v132 = vunpack.c.l.b16 %v26
  %v133 = vunpack.c.l.b16 %v27
  %v134 = vunpack.c.l.b16 %v28
  %v135 = vunpack.c.l.b16 %v29
  %v136 = vunpack.c.l.b16 %v30
  %v137 = vunpack.c.l.b16 %v31
  %v138 = vunpack.c.l.b16 %v32
  %v139 = vunpack.c.l.b16 %v33
  %v140 = vunpack.c.l.b16 %v34
  %v141 = vunpack.c.l.b16 %v35
  %v142 = vunpack.c.l.b16 %v36
  %v143 = vunpack.c.l.b16 %v37
  %v144 = vunpack.c.l.b16 %v38
  %v145 = vunpack.c.l.b16 %v39
  %v146 = vunpack.c.l.b16 %v40
  %v147 = vunpack.c.l.b16 %v41
  %v148 = vunpack.c.l.b16 %v42
  %v149 = vunpack.c.l.b16 %v43
  %v150 = vunpack.c.l.b16 %v44
  %v151 = vunpack.c.l.b16 %v45
  %v152 = vunpack.c.l.b16 %v46
  %v153 = vunpack.c.l.b16 %v47
  %v154 = vunpack.c.l.b16 %v48
  %v155 = vunpack.c.l.b16 %v49
  %v156 = vunpack.c.l.b16 %v50
  %v157 = vunpack.c.l.b16 %v51
  %v158 = vunpack.c.l.b16 %v52
  %v159 = vunpack.c.l.b16 %v53
  %v160 = vunpack.c.l.b16 %v54
  %v161 = vunpack.c.l.b16 %v55
  %v162 = vunpack.c.l.b16 %v56
  %v163 = vunpack.c.l.b16 %v57
  %v164 = vunpack.c.l.b16 %v58
  %v165 = vpack.c.b16 %v130, %v129
  %v166 = vpack.c.b16 %v132, %v131
  %v167 = vpack.c.b16 %v134, %v133
  %v168 = vpack.c.b16 %v136, %v135
  %v169 = vpack.c.b16 %v138, %v137
  %v170 = vpack.c.b16 %v140, %v139
  %v171 = vpack.c.b16 %v142, %v141
  %v172 = vpack.c.b16 %v144, %v143
  %v173 = vpack.c.b16 %v146, %v145
  %v174 = vpack.c.b16 %v148, %v147
  %v175 = vpack.c.b16 %v150, %v149
  %v176 = vpack.c.b16 %v152, %v151
  %v177 = vpack.c.b16 %v154, %v153
  %v178 = vpack.c.b16 %v156, %v155
  %v179 = vpack.c.b16 %v158, %v157
  %v180 = vpack.c.b16 %v160, %v159
  %v181 = vpack.c.b16 %v162, %v161
  %v182 = vpack.c.b16 %v164, %v163
  %vm201 = vcmask 261120
  %v203 = vsel %vm201, %v85, 0
  %v206 = vsel %vm201, %v88, 0
  %208 = vmatpush.bf16.msra.mxu0 %v172
  %209 = vmatpush.bf16.msra.mxu0 %v171
  %210 = vmatpush.bf16.msra.mxu0 %v170
  %211 = vmatpush.bf16.msra.mxu0 %v169
  %212 = vmatpush.bf16.msra.mxu0 %v168
  %213 = vmatpush.bf16.msra.mxu0 %v167
  %214 = vmatpush.bf16.msra.mxu0 %v166
  %215 = vmatpush.bf16.msra.mxu0 %v165
  %216 = vmatmul.bf16.gmra.mxu0 %v83
  %v217 = vpop.f32.mrf.mxu0
  %v218 = vadd.f32 %v61, %v217
  %v219 = vpop.f32.mrf.mxu0
  %v220 = vadd.f32 %v61, %v219
  %221 = vmatmul.bf16.gmra.mxu0 %v86
  %v222 = vpop.f32.mrf.mxu0
  %v223 = vadd.f32 %v61, %v222
  %v224 = vpop.f32.mrf.mxu0
  %v225 = vadd.f32 %v61, %v224
  %226 = vdwg.mxu0
  %227 = vmatpush.bf16.msra.mxu0 %v180
  %228 = vmatpush.bf16.msra.mxu0 %v179
  %229 = vmatpush.bf16.msra.mxu0 %v178
  %230 = vmatpush.bf16.msra.mxu0 %v177
  %231 = vmatpush.bf16.msra.mxu0 %v176
  %232 = vmatpush.bf16.msra.mxu0 %v175
  %233 = vmatpush.bf16.msra.mxu0 %v174
  %234 = vmatpush.bf16.msra.mxu0 %v173
  %235 = vmatmul.bf16.gmra.mxu0 %v84
  %v236 = vpop.f32.mrf.mxu0
  %v237 = vadd.f32 %v218, %v236
  %v238 = vpop.f32.mrf.mxu0
  %v239 = vadd.f32 %v220, %v238
  %240 = vmatmul.bf16.gmra.mxu0 %v87
  %v241 = vpop.f32.mrf.mxu0
  %v242 = vadd.f32 %v223, %v241
  %v243 = vpop.f32.mrf.mxu0
  %v244 = vadd.f32 %v225, %v243
  %245 = vdwg.mxu0
  %246 = vmatpush.bf16.msra.mxu0 0
  %247 = vmatpush.bf16.msra.mxu0 0
  %248 = vmatpush.bf16.msra.mxu0 0
  %249 = vmatpush.bf16.msra.mxu0 0
  %250 = vmatpush.bf16.msra.mxu0 0
  %251 = vmatpush.bf16.msra.mxu0 0
  %252 = vmatpush.bf16.msra.mxu0 %v182
  %253 = vmatpush.bf16.msra.mxu0 %v181
  %254 = vmatmul.bf16.gmra.mxu0 %v203
  %v255 = vpop.f32.mrf.mxu0
  %v256 = vadd.f32 %v237, %v255
  %v257 = vpop.f32.mrf.mxu0
  %v258 = vadd.f32 %v239, %v257
  %259 = vmatmul.bf16.gmra.mxu0 %v206
  %v260 = vpop.f32.mrf.mxu0
  %v261 = vadd.f32 %v242, %v260
  %v262 = vpop.f32.mrf.mxu0
  %v263 = vadd.f32 %v244, %v262
  %264 = vdwg.mxu0
  %v265 = vmax.f32 %v256, 0.0
  %v266 = vmax.f32 %v258, 0.0
  %v267 = vmax.f32 %v261, 0.0
  %v268 = vmax.f32 %v263, 0.0
  %vm269 = vcmask 523264
  %270 = vst.msk [vmem:[%s3] sm:$0xff] %vm269, %v265
  %271 = vst.msk [vmem:[%s3 + $0x8] sm:$0xff] %vm269, %v266
  %272 = vst.msk [vmem:[%s3 + $0x10] sm:$0xff] %vm269, %v267
  %273 = vst.msk [vmem:[%s3 + $0x18] sm:$0xff] %vm269, %v268
  // Predicated region
  $region14: #{kfcos_net.16} parent=0 // pred_check
    _
  $region15: #{kfcos_net.16} parent=0 // pred_check_branch
    %275 = sbr.rel (0) target = $region17
  $region16: #{kfcos_net.16} parent=0 // pred_region
    _
  $region17: #{kfcos_net.16} parent=0 // pred_fallthru
    _
  // Predicated region
  $region18: #{kfcos_net.16} parent=0 // pred_check
    _
  $region19: #{kfcos_net.16} parent=0 // pred_check_branch
    %277 = sbr.rel (0) target = $region21
  $region20: #{kfcos_net.16} parent=0 // pred_region
    _
  $region21: #{kfcos_net.16} parent=0 // pred_fallthru
    _

// kernel: kfcos_net.17
$region0: #{kfcos_net.17}
  #allocation0 [shape = 'u32[]', space=smem, size = 0x4, offset = 0x4, fixed_abs, tag = 'smem constant byte address 0x4 - core index']
  #allocation1 [shape = 'u32[72,128]{1,0:T(1,128)}', space=vmem, size = 0x9000, scoped, tag = 'internal scratch']
  %s0 = inlined_call_operand.vmem [shape: bf16[32,64], index: 0, kind: input, shape index: {}]
  %s1 = inlined_call_operand.vmem [shape: bf16[64,16], index: 1, kind: input, shape index: {}]
  %s2 = inlined_call_operand.vmem [shape: f32[1,16], index: 2, kind: input, shape index: {}]
  %s3 = inlined_call_operand.vmem [shape: f32[32,16], index: 3, kind: output, shape index: {}]
  %s4 = sld [smem:[#allocation0]]
  $region22: #{kfcos_net.17} parent=0
    _
  %s6 = ssub.s32 1, %s4
  %s7 = scalar_select 0, %s6, %s4
  // Predicated region
  $region2: #{kfcos_net.17} parent=0 // pred_check
    _
  $region3: #{kfcos_net.17} parent=0 // pred_check_branch
    %9 = sbr.rel (0) target = $region5
  $region4: #{kfcos_net.17} parent=0 // pred_region
    _
  $region5: #{kfcos_net.17} parent=0 // pred_fallthru
    _
  // Predicated region
  $region6: #{kfcos_net.17} parent=0 // pred_check
    _
  $region7: #{kfcos_net.17} parent=0 // pred_check_branch
    %11 = sbr.rel (0) target = $region9
  $region8: #{kfcos_net.17} parent=0 // pred_region
    _
  $region9: #{kfcos_net.17} parent=0 // pred_fallthru
    _
  // Predicated region
  $region10: #{kfcos_net.17} parent=0 // pred_check
    _
  $region11: #{kfcos_net.17} parent=0 // pred_check_branch
    %13 = sbr.rel (0) target = $region13
  $region12: #{kfcos_net.17} parent=0 // pred_region
    _
  $region13: #{kfcos_net.17} parent=0 // pred_fallthru
    _
  %v15 = vld [vmem:[%s0] sm:$0xf]
  %v16 = vld [vmem:[%s0 + $0x4] sm:$0xf]
  %v17 = vld [vmem:[%s0 + $0x8] sm:$0xf]
  %v18 = vld [vmem:[%s0 + $0xc] sm:$0xf]
  %v19 = vld [vmem:[%s1] sm:$0xf]
  %v20 = vld [vmem:[%s1 + $0x4] sm:$0xf]
  %v21 = vld [vmem:[%s1 + $0x8] sm:$0xf]
  %v22 = vld [vmem:[%s1 + $0xc] sm:$0xf]
  %v23 = vld [vmem:[%s1 + $0x10] sm:$0xf]
  %v24 = vld [vmem:[%s1 + $0x14] sm:$0xf]
  %v25 = vld [vmem:[%s1 + $0x18] sm:$0xf]
  %v26 = vld [vmem:[%s1 + $0x1c] sm:$0xf]
  %v27 = vld [vmem:[%s2] sm:$0x1]
  %v29 = vperm.slane %v27, 0
  %v35 = vunpack.c.l.b16 %v15
  %v36 = vunpack.c.l.b16 %v16
  %v37 = vunpack.c.l.b16 %v17
  %v38 = vunpack.c.l.b16 %v18
  %v39 = vpack.c.b16 %v36, %v35
  %v40 = vpack.c.b16 %v38, %v37
  %v49 = vunpack.c.l.b16 %v19
  %v50 = vunpack.c.l.b16 %v20
  %v51 = vunpack.c.l.b16 %v21
  %v52 = vunpack.c.l.b16 %v22
  %v53 = vunpack.c.l.b16 %v23
  %v54 = vunpack.c.l.b16 %v24
  %v55 = vunpack.c.l.b16 %v25
  %v56 = vunpack.c.l.b16 %v26
  %v57 = vpack.c.b16 %v50, %v49
  %v58 = vpack.c.b16 %v52, %v51
  %v59 = vpack.c.b16 %v54, %v53
  %v60 = vpack.c.b16 %v56, %v55
  %vm65 = vcmask 523264
  %v67 = vsel %vm65, %v39, 0
  %v70 = vsel %vm65, %v40, 0
  %72 = vmatpush.bf16.msra.mxu0 0
  %73 = vmatpush.bf16.msra.mxu0 0
  %74 = vmatpush.bf16.msra.mxu0 0
  %75 = vmatpush.bf16.msra.mxu0 0
  %76 = vmatpush.bf16.msra.mxu0 %v60
  %77 = vmatpush.bf16.msra.mxu0 %v59
  %78 = vmatpush.bf16.msra.mxu0 %v58
  %79 = vmatpush.bf16.msra.mxu0 %v57
  %80 = vmatmul.bf16.gmra.mxu0 %v67
  %v81 = vpop.f32.mrf.mxu0
  %v82 = vadd.f32 %v29, %v81
  %v83 = vpop.f32.mrf.mxu0
  %v84 = vadd.f32 %v29, %v83
  %85 = vmatmul.bf16.gmra.mxu0 %v70
  %v86 = vpop.f32.mrf.mxu0
  %v87 = vadd.f32 %v29, %v86
  %v88 = vpop.f32.mrf.mxu0
  %v89 = vadd.f32 %v29, %v88
  %90 = vdwg.mxu0
  %vm91 = vcmask 130048
  %92 = vst.msk [vmem:[%s3] sm:$0xff] %vm91, %v82
  %93 = vst.msk [vmem:[%s3 + $0x8] sm:$0xff] %vm91, %v84
  %94 = vst.msk [vmem:[%s3 + $0x10] sm:$0xff] %vm91, %v87
  %95 = vst.msk [vmem:[%s3 + $0x18] sm:$0xff] %vm91, %v89
  // Predicated region
  $region14: #{kfcos_net.17} parent=0 // pred_check
    _
  $region15: #{kfcos_net.17} parent=0 // pred_check_branch
    %97 = sbr.rel (0) target = $region17
  $region16: #{kfcos_net.17} parent=0 // pred_region
    _
  $region17: #{kfcos_net.17} parent=0 // pred_fallthru
    _
  // Predicated region
  $region18: #{kfcos_net.17} parent=0 // pred_check
    _
  $region19: #{kfcos_net.17} parent=0 // pred_check_branch
    %99 = sbr.rel (0) target = $region21
  $region20: #{kfcos_net.17} parent=0 // pred_region
    _
  $region21: #{kfcos_net.17} parent=0 // pred_fallthru
    _

// kernel: kfcos_net.22
$region0: #{kfcos_net.22}
  #allocation0 [shape = 'u32[]', space=smem, size = 0x4, offset = 0x4, fixed_abs, tag = 'smem constant byte address 0x4 - core index']
  #allocation1 [shape = 'u32[72,128]{1,0:T(1,128)}', space=vmem, size = 0x9000, scoped, tag = 'internal scratch']
  %s0 = inlined_call_operand.vmem [shape: bf16[32,144], index: 0, kind: input, shape index: {}]
  %s1 = inlined_call_operand.vmem [shape: bf16[144,16], index: 1, kind: input, shape index: {}]
  %s2 = inlined_call_operand.vmem [shape: f32[1,16], index: 2, kind: input, shape index: {}]
  %s3 = inlined_call_operand.vmem [shape: f32[32,16], index: 3, kind: output, shape index: {}]
  %s4 = sld [smem:[#allocation0]]
  $region22: #{kfcos_net.22} parent=0
    _
  %s6 = ssub.s32 1, %s4
  %s7 = scalar_select 0, %s6, %s4
  // Predicated region
  $region2: #{kfcos_net.22} parent=0 // pred_check
    _
  $region3: #{kfcos_net.22} parent=0 // pred_check_branch
    %9 = sbr.rel (0) target = $region5
  $region4: #{kfcos_net.22} parent=0 // pred_region
    _
  $region5: #{kfcos_net.22} parent=0 // pred_fallthru
    _
  // Predicated region
  $region6: #{kfcos_net.22} parent=0 // pred_check
    _
  $region7: #{kfcos_net.22} parent=0 // pred_check_branch
    %11 = sbr.rel (0) target = $region9
  $region8: #{kfcos_net.22} parent=0 // pred_region
    _
  $region9: #{kfcos_net.22} parent=0 // pred_fallthru
    _
  // Predicated region
  $region10: #{kfcos_net.22} parent=0 // pred_check
    _
  $region11: #{kfcos_net.22} parent=0 // pred_check_branch
    %13 = sbr.rel (0) target = $region13
  $region12: #{kfcos_net.22} parent=0 // pred_region
    _
  $region13: #{kfcos_net.22} parent=0 // pred_fallthru
    _
  %v15 = vld [vmem:[%s0] sm:$0xff]
  %v16 = vld [vmem:[%s0 + $0x8] sm:$0xff]
  %v17 = vld [vmem:[%s0 + $0x10] sm:$0xff]
  %v18 = vld [vmem:[%s0 + $0x18] sm:$0xff]
  %v19 = vld [vmem:[%s1] sm:$0xf]
  %v20 = vld [vmem:[%s1 + $0x4] sm:$0xf]
  %v21 = vld [vmem:[%s1 + $0x8] sm:$0xf]
  %v22 = vld [vmem:[%s1 + $0xc] sm:$0xf]
  %v23 = vld [vmem:[%s1 + $0x10] sm:$0xf]
  %v24 = vld [vmem:[%s1 + $0x14] sm:$0xf]
  %v25 = vld [vmem:[%s1 + $0x18] sm:$0xf]
  %v26 = vld [vmem:[%s1 + $0x1c] sm:$0xf]
  %v27 = vld [vmem:[%s1 + $0x20] sm:$0xf]
  %v28 = vld [vmem:[%s1 + $0x24] sm:$0xf]
  %v29 = vld [vmem:[%s1 + $0x28] sm:$0xf]
  %v30 = vld [vmem:[%s1 + $0x2c] sm:$0xf]
  %v31 = vld [vmem:[%s1 + $0x30] sm:$0xf]
  %v32 = vld [vmem:[%s1 + $0x34] sm:$0xf]
  %v33 = vld [vmem:[%s1 + $0x38] sm:$0xf]
  %v34 = vld [vmem:[%s1 + $0x3c] sm:$0xf]
  %v35 = vld [vmem:[%s1 + $0x40] sm:$0xf]
  %v36 = vld [vmem:[%s1 + $0x44] sm:$0xf]
  %v37 = vld [vmem:[%s2] sm:$0x1]
  %v39 = vperm.slane %v37, 0
  %v45 = vunpack.c.l.b16 %v15
  %v46 = vunpack.c.h.b16 %v15
  %v47 = vunpack.c.l.b16 %v16
  %v48 = vunpack.c.h.b16 %v16
  %v49 = vunpack.c.l.b16 %v17
  %v50 = vunpack.c.h.b16 %v17
  %v51 = vunpack.c.l.b16 %v18
  %v52 = vunpack.c.h.b16 %v18
  %v53 = vpack.c.b16 %v47, %v45
  %v54 = vpack.c.b16 %v48, %v46
  %v55 = vpack.c.b16 %v51, %v49
  %v56 = vpack.c.b16 %v52, %v50
  %v77 = vunpack.c.l.b16 %v19
  %v78 = vunpack.c.l.b16 %v20
  %v79 = vunpack.c.l.b16 %v21
  %v80 = vunpack.c.l.b16 %v22
  %v81 = vunpack.c.l.b16 %v23
  %v82 = vunpack.c.l.b16 %v24
  %v83 = vunpack.c.l.b16 %v25
  %v84 = vunpack.c.l.b16 %v26
  %v85 = vunpack.c.l.b16 %v27
  %v86 = vunpack.c.l.b16 %v28
  %v87 = vunpack.c.l.b16 %v29
  %v88 = vunpack.c.l.b16 %v30
  %v89 = vunpack.c.l.b16 %v31
  %v90 = vunpack.c.l.b16 %v32
  %v91 = vunpack.c.l.b16 %v33
  %v92 = vunpack.c.l.b16 %v34
  %v93 = vunpack.c.l.b16 %v35
  %v94 = vunpack.c.l.b16 %v36
  %v95 = vpack.c.b16 %v78, %v77
  %v96 = vpack.c.b16 %v80, %v79
  %v97 = vpack.c.b16 %v82, %v81
  %v98 = vpack.c.b16 %v84, %v83
  %v99 = vpack.c.b16 %v86, %v85
  %v100 = vpack.c.b16 %v88, %v87
  %v101 = vpack.c.b16 %v90, %v89
  %v102 = vpack.c.b16 %v92, %v91
  %v103 = vpack.c.b16 %v94, %v93
  %vm113 = vcmask 130048
  %v115 = vsel %vm113, %v54, 0
  %v118 = vsel %vm113, %v56, 0
  %120 = vmatpush.bf16.msra.mxu0 %v102
  %121 = vmatpush.bf16.msra.mxu0 %v101
  %122 = vmatpush.bf16.msra.mxu0 %v100
  %123 = vmatpush.bf16.msra.mxu0 %v99
  %124 = vmatpush.bf16.msra.mxu0 %v98
  %125 = vmatpush.bf16.msra.mxu0 %v97
  %126 = vmatpush.bf16.msra.mxu0 %v96
  %127 = vmatpush.bf16.msra.mxu0 %v95
  %128 = vmatmul.bf16.gmra.mxu0 %v53
  %v129 = vpop.f32.mrf.mxu0
  %v130 = vadd.f32 %v39, %v129
  %v131 = vpop.f32.mrf.mxu0
  %v132 = vadd.f32 %v39, %v131
  %133 = vmatmul.bf16.gmra.mxu0 %v55
  %v134 = vpop.f32.mrf.mxu0
  %v135 = vadd.f32 %v39, %v134
  %v136 = vpop.f32.mrf.mxu0
  %v137 = vadd.f32 %v39, %v136
  %138 = vdwg.mxu0
  %139 = vmatpush.bf16.msra.mxu0 0
  %140 = vmatpush.bf16.msra.mxu0 0
  %141 = vmatpush.bf16.msra.mxu0 0
  %142 = vmatpush.bf16.msra.mxu0 0
  %143 = vmatpush.bf16.msra.mxu0 0
  %144 = vmatpush.bf16.msra.mxu0 0
  %145 = vmatpush.bf16.msra.mxu0 0
  %146 = vmatpush.bf16.msra.mxu0 %v103
  %147 = vmatmul.bf16.gmra.mxu0 %v115
  %v148 = vpop.f32.mrf.mxu0
  %v149 = vadd.f32 %v130, %v148
  %v150 = vpop.f32.mrf.mxu0
  %v151 = vadd.f32 %v132, %v150
  %152 = vmatmul.bf16.gmra.mxu0 %v118
  %v153 = vpop.f32.mrf.mxu0
  %v154 = vadd.f32 %v135, %v153
  %v155 = vpop.f32.mrf.mxu0
  %v156 = vadd.f32 %v137, %v155
  %157 = vdwg.mxu0
  %158 = vst.msk [vmem:[%s3] sm:$0xff] %vm113, %v149
  %159 = vst.msk [vmem:[%s3 + $0x8] sm:$0xff] %vm113, %v151
  %160 = vst.msk [vmem:[%s3 + $0x10] sm:$0xff] %vm113, %v154
  %161 = vst.msk [vmem:[%s3 + $0x18] sm:$0xff] %vm113, %v156
  // Predicated region
  $region14: #{kfcos_net.22} parent=0 // pred_check
    _
  $region15: #{kfcos_net.22} parent=0 // pred_check_branch
    %163 = sbr.rel (0) target = $region17
  $region16: #{kfcos_net.22} parent=0 // pred_region
    _
  $region17: #{kfcos_net.22} parent=0 // pred_fallthru
    _
  // Predicated region
  $region18: #{kfcos_net.22} parent=0 // pred_check
    _
  $region19: #{kfcos_net.22} parent=0 // pred_check_branch
    %165 = sbr.rel (0) target = $region21
  $region20: #{kfcos_net.22} parent=0 // pred_region
    _
  $region21: #{kfcos_net.22} parent=0 // pred_fallthru
    _

// kernel: kfcos_net.23
$region0: #{kfcos_net.23}
  #allocation0 [shape = 'u32[]', space=smem, size = 0x4, offset = 0x4, fixed_abs, tag = 'smem constant byte address 0x4 - core index']
  #allocation1 [shape = 'u32[72,128]{1,0:T(1,128)}', space=vmem, size = 0x9000, scoped, tag = 'internal scratch']
  %s0 = inlined_call_operand.vmem [shape: bf16[8,144], index: 0, kind: input, shape index: {}]
  %s1 = inlined_call_operand.vmem [shape: bf16[144,16], index: 1, kind: input, shape index: {}]
  %s2 = inlined_call_operand.vmem [shape: f32[1,16], index: 2, kind: input, shape index: {}]
  %s3 = inlined_call_operand.vmem [shape: f32[8,16], index: 3, kind: output, shape index: {}]
  %s4 = sld [smem:[#allocation0]]
  $region22: #{kfcos_net.23} parent=0
    _
  %s6 = ssub.s32 1, %s4
  %s7 = scalar_select 0, %s6, %s4
  // Predicated region
  $region2: #{kfcos_net.23} parent=0 // pred_check
    _
  $region3: #{kfcos_net.23} parent=0 // pred_check_branch
    %9 = sbr.rel (0) target = $region5
  $region4: #{kfcos_net.23} parent=0 // pred_region
    _
  $region5: #{kfcos_net.23} parent=0 // pred_fallthru
    _
  // Predicated region
  $region6: #{kfcos_net.23} parent=0 // pred_check
    _
  $region7: #{kfcos_net.23} parent=0 // pred_check_branch
    %11 = sbr.rel (0) target = $region9
  $region8: #{kfcos_net.23} parent=0 // pred_region
    _
  $region9: #{kfcos_net.23} parent=0 // pred_fallthru
    _
  // Predicated region
  $region10: #{kfcos_net.23} parent=0 // pred_check
    _
  $region11: #{kfcos_net.23} parent=0 // pred_check_branch
    %13 = sbr.rel (0) target = $region13
  $region12: #{kfcos_net.23} parent=0 // pred_region
    _
  $region13: #{kfcos_net.23} parent=0 // pred_fallthru
    _
  %v15 = vld [vmem:[%s0] sm:$0xff]
  %v16 = vld [vmem:[%s1] sm:$0xf]
  %v17 = vld [vmem:[%s1 + $0x4] sm:$0xf]
  %v18 = vld [vmem:[%s1 + $0x8] sm:$0xf]
  %v19 = vld [vmem:[%s1 + $0xc] sm:$0xf]
  %v20 = vld [vmem:[%s1 + $0x10] sm:$0xf]
  %v21 = vld [vmem:[%s1 + $0x14] sm:$0xf]
  %v22 = vld [vmem:[%s1 + $0x18] sm:$0xf]
  %v23 = vld [vmem:[%s1 + $0x1c] sm:$0xf]
  %v24 = vld [vmem:[%s1 + $0x20] sm:$0xf]
  %v25 = vld [vmem:[%s1 + $0x24] sm:$0xf]
  %v26 = vld [vmem:[%s1 + $0x28] sm:$0xf]
  %v27 = vld [vmem:[%s1 + $0x2c] sm:$0xf]
  %v28 = vld [vmem:[%s1 + $0x30] sm:$0xf]
  %v29 = vld [vmem:[%s1 + $0x34] sm:$0xf]
  %v30 = vld [vmem:[%s1 + $0x38] sm:$0xf]
  %v31 = vld [vmem:[%s1 + $0x3c] sm:$0xf]
  %v32 = vld [vmem:[%s1 + $0x40] sm:$0xf]
  %v33 = vld [vmem:[%s1 + $0x44] sm:$0xf]
  %v34 = vld [vmem:[%s2] sm:$0x1]
  %v36 = vperm.slane %v34, 0
  %v39 = vunpack.c.l.b16 %v15
  %v40 = vunpack.c.h.b16 %v15
  %v41 = vpack.c.b16 %v39, %v39
  %v42 = vpack.c.b16 %v40, %v40
  %v62 = vunpack.c.l.b16 %v16
  %v63 = vunpack.c.l.b16 %v17
  %v64 = vunpack.c.l.b16 %v18
  %v65 = vunpack.c.l.b16 %v19
  %v66 = vunpack.c.l.b16 %v20
  %v67 = vunpack.c.l.b16 %v21
  %v68 = vunpack.c.l.b16 %v22
  %v69 = vunpack.c.l.b16 %v23
  %v70 = vunpack.c.l.b16 %v24
  %v71 = vunpack.c.l.b16 %v25
  %v72 = vunpack.c.l.b16 %v26
  %v73 = vunpack.c.l.b16 %v27
  %v74 = vunpack.c.l.b16 %v28
  %v75 = vunpack.c.l.b16 %v29
  %v76 = vunpack.c.l.b16 %v30
  %v77 = vunpack.c.l.b16 %v31
  %v78 = vunpack.c.l.b16 %v32
  %v79 = vunpack.c.l.b16 %v33
  %v80 = vpack.c.b16 %v63, %v62
  %v81 = vpack.c.b16 %v65, %v64
  %v82 = vpack.c.b16 %v67, %v66
  %v83 = vpack.c.b16 %v69, %v68
  %v84 = vpack.c.b16 %v71, %v70
  %v85 = vpack.c.b16 %v73, %v72
  %v86 = vpack.c.b16 %v75, %v74
  %v87 = vpack.c.b16 %v77, %v76
  %v88 = vpack.c.b16 %v79, %v78
  %vm98 = vcmask 130048
  %v100 = vsel %vm98, %v42, 0
  %102 = vmatpush.bf16.msra.mxu0 %v87
  %103 = vmatpush.bf16.msra.mxu0 %v86
  %104 = vmatpush.bf16.msra.mxu0 %v85
  %105 = vmatpush.bf16.msra.mxu0 %v84
  %106 = vmatpush.bf16.msra.mxu0 %v83
  %107 = vmatpush.bf16.msra.mxu0 %v82
  %108 = vmatpush.bf16.msra.mxu0 %v81
  %109 = vmatpush.bf16.msra.mxu0 %v80
  %110 = vmatmul.bf16.gmra.mxu0 %v41
  %v111 = vpop.f32.mrf.mxu0
  %v112 = vadd.f32 %v36, %v111
  %v113 = vpop.f32.mrf.mxu0
  %114 = vdwg.mxu0
  %115 = vmatpush.bf16.msra.mxu0 0
  %116 = vmatpush.bf16.msra.mxu0 0
  %117 = vmatpush.bf16.msra.mxu0 0
  %118 = vmatpush.bf16.msra.mxu0 0
  %119 = vmatpush.bf16.msra.mxu0 0
  %120 = vmatpush.bf16.msra.mxu0 0
  %121 = vmatpush.bf16.msra.mxu0 0
  %122 = vmatpush.bf16.msra.mxu0 %v88
  %123 = vmatmul.bf16.gmra.mxu0 %v100
  %v124 = vpop.f32.mrf.mxu0
  %v125 = vadd.f32 %v112, %v124
  %v126 = vpop.f32.mrf.mxu0
  %127 = vdwg.mxu0
  %128 = vst.msk [vmem:[%s3] sm:$0xff] %vm98, %v125
  // Predicated region
  $region14: #{kfcos_net.23} parent=0 // pred_check
    _
  $region15: #{kfcos_net.23} parent=0 // pred_check_branch
    %130 = sbr.rel (0) target = $region17
  $region16: #{kfcos_net.23} parent=0 // pred_region
    _
  $region17: #{kfcos_net.23} parent=0 // pred_fallthru
    _
  // Predicated region
  $region18: #{kfcos_net.23} parent=0 // pred_check
    _
  $region19: #{kfcos_net.23} parent=0 // pred_check_branch
    %132 = sbr.rel (0) target = $region21
  $region20: #{kfcos_net.23} parent=0 // pred_region
    _
  $region21: #{kfcos_net.23} parent=0 // pred_fallthru
    _

// kernel: kfcos_net.18
$region0: #{kfcos_net.18}
  #allocation0 [shape = 'u32[]', space=smem, size = 0x4, offset = 0x4, fixed_abs, tag = 'smem constant byte address 0x4 - core index']
  #allocation1 [shape = 'u32[72,128]{1,0:T(1,128)}', space=vmem, size = 0x9000, scoped, tag = 'internal scratch']
  %s0 = inlined_call_operand.vmem [shape: bf16[128,32], index: 0, kind: input, shape index: {}]
  %s1 = inlined_call_operand.vmem [shape: bf16[32,16], index: 1, kind: input, shape index: {}]
  %s2 = inlined_call_operand.vmem [shape: f32[1,16], index: 2, kind: input, shape index: {}]
  %s3 = inlined_call_operand.vmem [shape: f32[128,16], index: 3, kind: output, shape index: {}]
  %s4 = sld [smem:[#allocation0]]
  $region22: #{kfcos_net.18} parent=0
    _
  %s6 = ssub.s32 1, %s4
  %s7 = scalar_select 0, %s6, %s4
  // Predicated region
  $region2: #{kfcos_net.18} parent=0 // pred_check
    _
  $region3: #{kfcos_net.18} parent=0 // pred_check_branch
    %9 = sbr.rel (0) target = $region5
  $region4: #{kfcos_net.18} parent=0 // pred_region
    _
  $region5: #{kfcos_net.18} parent=0 // pred_fallthru
    _
  // Predicated region
  $region6: #{kfcos_net.18} parent=0 // pred_check
    _
  $region7: #{kfcos_net.18} parent=0 // pred_check_branch
    %11 = sbr.rel (0) target = $region9
  $region8: #{kfcos_net.18} parent=0 // pred_region
    _
  $region9: #{kfcos_net.18} parent=0 // pred_fallthru
    _
  // Predicated region
  $region10: #{kfcos_net.18} parent=0 // pred_check
    _
  $region11: #{kfcos_net.18} parent=0 // pred_check_branch
    %13 = sbr.rel (0) target = $region13
  $region12: #{kfcos_net.18} parent=0 // pred_region
    _
  $region13: #{kfcos_net.18} parent=0 // pred_fallthru
    _
  %v15 = vld [vmem:[%s0] sm:$0xf]
  %v16 = vld [vmem:[%s0 + $0x4] sm:$0xf]
  %v17 = vld [vmem:[%s0 + $0x8] sm:$0xf]
  %v18 = vld [vmem:[%s0 + $0xc] sm:$0xf]
  %v19 = vld [vmem:[%s0 + $0x10] sm:$0xf]
  %v20 = vld [vmem:[%s0 + $0x14] sm:$0xf]
  %v21 = vld [vmem:[%s0 + $0x18] sm:$0xf]
  %v22 = vld [vmem:[%s0 + $0x1c] sm:$0xf]
  %v23 = vld [vmem:[%s0 + $0x20] sm:$0xf]
  %v24 = vld [vmem:[%s0 + $0x24] sm:$0xf]
  %v25 = vld [vmem:[%s0 + $0x28] sm:$0xf]
  %v26 = vld [vmem:[%s0 + $0x2c] sm:$0xf]
  %v27 = vld [vmem:[%s0 + $0x30] sm:$0xf]
  %v28 = vld [vmem:[%s0 + $0x34] sm:$0xf]
  %v29 = vld [vmem:[%s0 + $0x38] sm:$0xf]
  %v30 = vld [vmem:[%s0 + $0x3c] sm:$0xf]
  %v31 = vld [vmem:[%s1] sm:$0xf]
  %v32 = vld [vmem:[%s1 + $0x4] sm:$0xf]
  %v33 = vld [vmem:[%s1 + $0x8] sm:$0xf]
  %v34 = vld [vmem:[%s1 + $0xc] sm:$0xf]
  %v35 = vld [vmem:[%s2] sm:$0x1]
  %v37 = vperm.slane %v35, 0
  %v55 = vunpack.c.l.b16 %v15
  %v56 = vunpack.c.l.b16 %v16
  %v57 = vunpack.c.l.b16 %v17
  %v58 = vunpack.c.l.b16 %v18
  %v59 = vunpack.c.l.b16 %v19
  %v60 = vunpack.c.l.b16 %v20
  %v61 = vunpack.c.l.b16 %v21
  %v62 = vunpack.c.l.b16 %v22
  %v63 = vunpack.c.l.b16 %v23
  %v64 = vunpack.c.l.b16 %v24
  %v65 = vunpack.c.l.b16 %v25
  %v66 = vunpack.c.l.b16 %v26
  %v67 = vunpack.c.l.b16 %v27
  %v68 = vunpack.c.l.b16 %v28
  %v69 = vunpack.c.l.b16 %v29
  %v70 = vunpack.c.l.b16 %v30
  %v71 = vpack.c.b16 %v56, %v55
  %v72 = vpack.c.b16 %v58, %v57
  %v73 = vpack.c.b16 %v60, %v59
  %v74 = vpack.c.b16 %v62, %v61
  %v75 = vpack.c.b16 %v64, %v63
  %v76 = vpack.c.b16 %v66, %v65
  %v77 = vpack.c.b16 %v68, %v67
  %v78 = vpack.c.b16 %v70, %v69
  %v83 = vunpack.c.l.b16 %v31
  %v84 = vunpack.c.l.b16 %v32
  %v85 = vunpack.c.l.b16 %v33
  %v86 = vunpack.c.l.b16 %v34
  %v87 = vpack.c.b16 %v84, %v83
  %v88 = vpack.c.b16 %v86, %v85
  %vm91 = vcmask 261120
  %v93 = vsel %vm91, %v71, 0
  %v96 = vsel %vm91, %v72, 0
  %v99 = vsel %vm91, %v73, 0
  %v102 = vsel %vm91, %v74, 0
  %v105 = vsel %vm91, %v75, 0
  %v108 = vsel %vm91, %v76, 0
  %v111 = vsel %vm91, %v77, 0
  %v114 = vsel %vm91, %v78, 0
  %116 = vmatpush.bf16.msra.mxu0 0
  %117 = vmatpush.bf16.msra.mxu0 0
  %118 = vmatpush.bf16.msra.mxu0 0
  %119 = vmatpush.bf16.msra.mxu0 0
  %120 = vmatpush.bf16.msra.mxu0 0
  %121 = vmatpush.bf16.msra.mxu0 0
  %122 = vmatpush.bf16.msra.mxu0 %v88
  %123 = vmatpush.bf16.msra.mxu0 %v87
  %124 = vmatmul.bf16.gmra.mxu0 %v93
  %v125 = vpop.f32.mrf.mxu0
  %v126 = vadd.f32 %v37, %v125
  %v127 = vpop.f32.mrf.mxu0
  %v128 = vadd.f32 %v37, %v127
  %129 = vmatmul.bf16.gmra.mxu0 %v96
  %v130 = vpop.f32.mrf.mxu0
  %v131 = vadd.f32 %v37, %v130
  %v132 = vpop.f32.mrf.mxu0
  %v133 = vadd.f32 %v37, %v132
  %134 = vmatmul.bf16.gmra.mxu0 %v99
  %v135 = vpop.f32.mrf.mxu0
  %v136 = vadd.f32 %v37, %v135
  %v137 = vpop.f32.mrf.mxu0
  %v138 = vadd.f32 %v37, %v137
  %139 = vmatmul.bf16.gmra.mxu0 %v102
  %v140 = vpop.f32.mrf.mxu0
  %v141 = vadd.f32 %v37, %v140
  %v142 = vpop.f32.mrf.mxu0
  %v143 = vadd.f32 %v37, %v142
  %144 = vmatmul.bf16.gmra.mxu0 %v105
  %v145 = vpop.f32.mrf.mxu0
  %v146 = vadd.f32 %v37, %v145
  %v147 = vpop.f32.mrf.mxu0
  %v148 = vadd.f32 %v37, %v147
  %149 = vmatmul.bf16.gmra.mxu0 %v108
  %v150 = vpop.f32.mrf.mxu0
  %v151 = vadd.f32 %v37, %v150
  %v152 = vpop.f32.mrf.mxu0
  %v153 = vadd.f32 %v37, %v152
  %154 = vmatmul.bf16.gmra.mxu0 %v111
  %v155 = vpop.f32.mrf.mxu0
  %v156 = vadd.f32 %v37, %v155
  %v157 = vpop.f32.mrf.mxu0
  %v158 = vadd.f32 %v37, %v157
  %159 = vmatmul.bf16.gmra.mxu0 %v114
  %v160 = vpop.f32.mrf.mxu0
  %v161 = vadd.f32 %v37, %v160
  %v162 = vpop.f32.mrf.mxu0
  %v163 = vadd.f32 %v37, %v162
  %164 = vdwg.mxu0
  %vm165 = vcmask 130048
  %166 = vst.msk [vmem:[%s3] sm:$0xff] %vm165, %v126
  %167 = vst.msk [vmem:[%s3 + $0x8] sm:$0xff] %vm165, %v128
  %168 = vst.msk [vmem:[%s3 + $0x10] sm:$0xff] %vm165, %v131
  %169 = vst.msk [vmem:[%s3 + $0x18] sm:$0xff] %vm165, %v133
  %170 = vst.msk [vmem:[%s3 + $0x20] sm:$0xff] %vm165, %v136
  %171 = vst.msk [vmem:[%s3 + $0x28] sm:$0xff] %vm165, %v138
  %172 = vst.msk [vmem:[%s3 + $0x30] sm:$0xff] %vm165, %v141
  %173 = vst.msk [vmem:[%s3 + $0x38] sm:$0xff] %vm165, %v143
  %174 = vst.msk [vmem:[%s3 + $0x40] sm:$0xff] %vm165, %v146
  %175 = vst.msk [vmem:[%s3 + $0x48] sm:$0xff] %vm165, %v148
  %176 = vst.msk [vmem:[%s3 + $0x50] sm:$0xff] %vm165, %v151
  %177 = vst.msk [vmem:[%s3 + $0x58] sm:$0xff] %vm165, %v153
  %178 = vst.msk [vmem:[%s3 + $0x60] sm:$0xff] %vm165, %v156
  %179 = vst.msk [vmem:[%s3 + $0x68] sm:$0xff] %vm165, %v158
  %180 = vst.msk [vmem:[%s3 + $0x70] sm:$0xff] %vm165, %v161
  %181 = vst.msk [vmem:[%s3 + $0x78] sm:$0xff] %vm165, %v163
  // Predicated region
  $region14: #{kfcos_net.18} parent=0 // pred_check
    _
  $region15: #{kfcos_net.18} parent=0 // pred_check_branch
    %183 = sbr.rel (0) target = $region17
  $region16: #{kfcos_net.18} parent=0 // pred_region
    _
  $region17: #{kfcos_net.18} parent=0 // pred_fallthru
    _
  // Predicated region
  $region18: #{kfcos_net.18} parent=0 // pred_check
    _
  $region19: #{kfcos_net.18} parent=0 // pred_check_branch
    %185 = sbr.rel (0) target = $region21
  $region20: #{kfcos_net.18} parent=0 // pred_region
    _
  $region21: #{kfcos_net.18} parent=0 // pred_fallthru
    _

// kernel: kfcos_net.21
$region0: #{kfcos_net.21}
  #allocation0 [shape = 'u32[]', space=smem, size = 0x4, offset = 0x4, fixed_abs, tag = 'smem constant byte address 0x4 - core index']
  #allocation1 [shape = 'u32[72,128]{1,0:T(1,128)}', space=vmem, size = 0x9000, scoped, tag = 'internal scratch']
  %s0 = inlined_call_operand.vmem [shape: bf16[128,144], index: 0, kind: input, shape index: {}]
  %s1 = inlined_call_operand.vmem [shape: bf16[144,16], index: 1, kind: input, shape index: {}]
  %s2 = inlined_call_operand.vmem [shape: f32[1,16], index: 2, kind: input, shape index: {}]
  %s3 = inlined_call_operand.vmem [shape: f32[128,16], index: 3, kind: output, shape index: {}]
  %s4 = sld [smem:[#allocation0]]
  $region22: #{kfcos_net.21} parent=0
    _
  %s6 = ssub.s32 1, %s4
  %s7 = scalar_select 0, %s6, %s4
  // Predicated region
  $region2: #{kfcos_net.21} parent=0 // pred_check
    _
  $region3: #{kfcos_net.21} parent=0 // pred_check_branch
    %9 = sbr.rel (0) target = $region5
  $region4: #{kfcos_net.21} parent=0 // pred_region
    _
  $region5: #{kfcos_net.21} parent=0 // pred_fallthru
    _
  // Predicated region
  $region6: #{kfcos_net.21} parent=0 // pred_check
    _
  $region7: #{kfcos_net.21} parent=0 // pred_check_branch
    %11 = sbr.rel (0) target = $region9
  $region8: #{kfcos_net.21} parent=0 // pred_region
    _
  $region9: #{kfcos_net.21} parent=0 // pred_fallthru
    _
  // Predicated region
  $region10: #{kfcos_net.21} parent=0 // pred_check
    _
  $region11: #{kfcos_net.21} parent=0 // pred_check_branch
    %13 = sbr.rel (0) target = $region13
  $region12: #{kfcos_net.21} parent=0 // pred_region
    _
  $region13: #{kfcos_net.21} parent=0 // pred_fallthru
    _
  %v15 = vld [vmem:[%s0] sm:$0xff]
  %v16 = vld [vmem:[%s0 + $0x8] sm:$0xff]
  %v17 = vld [vmem:[%s0 + $0x10] sm:$0xff]
  %v18 = vld [vmem:[%s0 + $0x18] sm:$0xff]
  %v19 = vld [vmem:[%s0 + $0x20] sm:$0xff]
  %v20 = vld [vmem:[%s0 + $0x28] sm:$0xff]
  %v21 = vld [vmem:[%s0 + $0x30] sm:$0xff]
  %v22 = vld [vmem:[%s0 + $0x38] sm:$0xff]
  %v23 = vld [vmem:[%s0 + $0x40] sm:$0xff]
  %v24 = vld [vmem:[%s0 + $0x48] sm:$0xff]
  %v25 = vld [vmem:[%s0 + $0x50] sm:$0xff]
  %v26 = vld [vmem:[%s0 + $0x58] sm:$0xff]
  %v27 = vld [vmem:[%s0 + $0x60] sm:$0xff]
  %v28 = vld [vmem:[%s0 + $0x68] sm:$0xff]
  %v29 = vld [vmem:[%s0 + $0x70] sm:$0xff]
  %v30 = vld [vmem:[%s0 + $0x78] sm:$0xff]
  %v31 = vld [vmem:[%s1] sm:$0xf]
  %v32 = vld [vmem:[%s1 + $0x4] sm:$0xf]
  %v33 = vld [vmem:[%s1 + $0x8] sm:$0xf]
  %v34 = vld [vmem:[%s1 + $0xc] sm:$0xf]
  %v35 = vld [vmem:[%s1 + $0x10] sm:$0xf]
  %v36 = vld [vmem:[%s1 + $0x14] sm:$0xf]
  %v37 = vld [vmem:[%s1 + $0x18] sm:$0xf]
  %v38 = vld [vmem:[%s1 + $0x1c] sm:$0xf]
  %v39 = vld [vmem:[%s1 + $0x20] sm:$0xf]
  %v40 = vld [vmem:[%s1 + $0x24] sm:$0xf]
  %v41 = vld [vmem:[%s1 + $0x28] sm:$0xf]
  %v42 = vld [vmem:[%s1 + $0x2c] sm:$0xf]
  %v43 = vld [vmem:[%s1 + $0x30] sm:$0xf]
  %v44 = vld [vmem:[%s1 + $0x34] sm:$0xf]
  %v45 = vld [vmem:[%s1 + $0x38] sm:$0xf]
  %v46 = vld [vmem:[%s1 + $0x3c] sm:$0xf]
  %v47 = vld [vmem:[%s1 + $0x40] sm:$0xf]
  %v48 = vld [vmem:[%s1 + $0x44] sm:$0xf]
  %v49 = vld [vmem:[%s2] sm:$0x1]
  %v51 = vperm.slane %v49, 0
  %v69 = vunpack.c.l.b16 %v15
  %v70 = vunpack.c.h.b16 %v15
  %v71 = vunpack.c.l.b16 %v16
  %v72 = vunpack.c.h.b16 %v16
  %v73 = vunpack.c.l.b16 %v17
  %v74 = vunpack.c.h.b16 %v17
  %v75 = vunpack.c.l.b16 %v18
  %v76 = vunpack.c.h.b16 %v18
  %v77 = vunpack.c.l.b16 %v19
  %v78 = vunpack.c.h.b16 %v19
  %v79 = vunpack.c.l.b16 %v20
  %v80 = vunpack.c.h.b16 %v20
  %v81 = vunpack.c.l.b16 %v21
  %v82 = vunpack.c.h.b16 %v21
  %v83 = vunpack.c.l.b16 %v22
  %v84 = vunpack.c.h.b16 %v22
  %v85 = vunpack.c.l.b16 %v23
  %v86 = vunpack.c.h.b16 %v23
  %v87 = vunpack.c.l.b16 %v24
  %v88 = vunpack.c.h.b16 %v24
  %v89 = vunpack.c.l.b16 %v25
  %v90 = vunpack.c.h.b16 %v25
  %v91 = vunpack.c.l.b16 %v26
  %v92 = vunpack.c.h.b16 %v26
  %v93 = vunpack.c.l.b16 %v27
  %v94 = vunpack.c.h.b16 %v27
  %v95 = vunpack.c.l.b16 %v28
  %v96 = vunpack.c.h.b16 %v28
  %v97 = vunpack.c.l.b16 %v29
  %v98 = vunpack.c.h.b16 %v29
  %v99 = vunpack.c.l.b16 %v30
  %v100 = vunpack.c.h.b16 %v30
  %v101 = vpack.c.b16 %v71, %v69
  %v102 = vpack.c.b16 %v72, %v70
  %v103 = vpack.c.b16 %v75, %v73
  %v104 = vpack.c.b16 %v76, %v74
  %v105 = vpack.c.b16 %v79, %v77
  %v106 = vpack.c.b16 %v80, %v78
  %v107 = vpack.c.b16 %v83, %v81
  %v108 = vpack.c.b16 %v84, %v82
  %v109 = vpack.c.b16 %v87, %v85
  %v110 = vpack.c.b16 %v88, %v86
  %v111 = vpack.c.b16 %v91, %v89
  %v112 = vpack.c.b16 %v92, %v90
  %v113 = vpack.c.b16 %v95, %v93
  %v114 = vpack.c.b16 %v96, %v94
  %v115 = vpack.c.b16 %v99, %v97
  %v116 = vpack.c.b16 %v100, %v98
  %v143 = vunpack.c.l.b16 %v31
  %v144 = vunpack.c.l.b16 %v32
  %v145 = vunpack.c.l.b16 %v33
  %v146 = vunpack.c.l.b16 %v34
  %v147 = vunpack.c.l.b16 %v35
  %v148 = vunpack.c.l.b16 %v36
  %v149 = vunpack.c.l.b16 %v37
  %v150 = vunpack.c.l.b16 %v38
  %v151 = vunpack.c.l.b16 %v39
  %v152 = vunpack.c.l.b16 %v40
  %v153 = vunpack.c.l.b16 %v41
  %v154 = vunpack.c.l.b16 %v42
  %v155 = vunpack.c.l.b16 %v43
  %v156 = vunpack.c.l.b16 %v44
  %v157 = vunpack.c.l.b16 %v45
  %v158 = vunpack.c.l.b16 %v46
  %v159 = vunpack.c.l.b16 %v47
  %v160 = vunpack.c.l.b16 %v48
  %v161 = vpack.c.b16 %v144, %v143
  %v162 = vpack.c.b16 %v146, %v145
  %v163 = vpack.c.b16 %v148, %v147
  %v164 = vpack.c.b16 %v150, %v149
  %v165 = vpack.c.b16 %v152, %v151
  %v166 = vpack.c.b16 %v154, %v153
  %v167 = vpack.c.b16 %v156, %v155
  %v168 = vpack.c.b16 %v158, %v157
  %v169 = vpack.c.b16 %v160, %v159
  %vm179 = vcmask 130048
  %v181 = vsel %vm179, %v102, 0
  %v184 = vsel %vm179, %v104, 0
  %v187 = vsel %vm179, %v106, 0
  %v190 = vsel %vm179, %v108, 0
  %v193 = vsel %vm179, %v110, 0
  %v196 = vsel %vm179, %v112, 0
  %v199 = vsel %vm179, %v114, 0
  %v202 = vsel %vm179, %v116, 0
  %204 = vmatpush.bf16.msra.mxu0 %v168
  %205 = vmatpush.bf16.msra.mxu0 %v167
  %206 = vmatpush.bf16.msra.mxu0 %v166
  %207 = vmatpush.bf16.msra.mxu0 %v165
  %208 = vmatpush.bf16.msra.mxu0 %v164
  %209 = vmatpush.bf16.msra.mxu0 %v163
  %210 = vmatpush.bf16.msra.mxu0 %v162
  %211 = vmatpush.bf16.msra.mxu0 %v161
  %212 = vmatmul.bf16.gmra.mxu0 %v101
  %v213 = vpop.f32.mrf.mxu0
  %v214 = vadd.f32 %v51, %v213
  %v215 = vpop.f32.mrf.mxu0
  %v216 = vadd.f32 %v51, %v215
  %217 = vmatmul.bf16.gmra.mxu0 %v103
  %v218 = vpop.f32.mrf.mxu0
  %v219 = vadd.f32 %v51, %v218
  %v220 = vpop.f32.mrf.mxu0
  %v221 = vadd.f32 %v51, %v220
  %222 = vmatmul.bf16.gmra.mxu0 %v105
  %v223 = vpop.f32.mrf.mxu0
  %v224 = vadd.f32 %v51, %v223
  %v225 = vpop.f32.mrf.mxu0
  %v226 = vadd.f32 %v51, %v225
  %227 = vmatmul.bf16.gmra.mxu0 %v107
  %v228 = vpop.f32.mrf.mxu0
  %v229 = vadd.f32 %v51, %v228
  %v230 = vpop.f32.mrf.mxu0
  %v231 = vadd.f32 %v51, %v230
  %232 = vmatmul.bf16.gmra.mxu0 %v109
  %v233 = vpop.f32.mrf.mxu0
  %v234 = vadd.f32 %v51, %v233
  %v235 = vpop.f32.mrf.mxu0
  %v236 = vadd.f32 %v51, %v235
  %237 = vmatmul.bf16.gmra.mxu0 %v111
  %v238 = vpop.f32.mrf.mxu0
  %v239 = vadd.f32 %v51, %v238
  %v240 = vpop.f32.mrf.mxu0
  %v241 = vadd.f32 %v51, %v240
  %242 = vmatmul.bf16.gmra.mxu0 %v113
  %v243 = vpop.f32.mrf.mxu0
  %v244 = vadd.f32 %v51, %v243
  %v245 = vpop.f32.mrf.mxu0
  %v246 = vadd.f32 %v51, %v245
  %247 = vmatmul.bf16.gmra.mxu0 %v115
  %v248 = vpop.f32.mrf.mxu0
  %v249 = vadd.f32 %v51, %v248
  %v250 = vpop.f32.mrf.mxu0
  %v251 = vadd.f32 %v51, %v250
  %252 = vdwg.mxu0
  %253 = vmatpush.bf16.msra.mxu0 0
  %254 = vmatpush.bf16.msra.mxu0 0
  %255 = vmatpush.bf16.msra.mxu0 0
  %256 = vmatpush.bf16.msra.mxu0 0
  %257 = vmatpush.bf16.msra.mxu0 0
  %258 = vmatpush.bf16.msra.mxu0 0
  %259 = vmatpush.bf16.msra.mxu0 0
  %260 = vmatpush.bf16.msra.mxu0 %v169
  %261 = vmatmul.bf16.gmra.mxu0 %v181
  %v262 = vpop.f32.mrf.mxu0
  %v263 = vadd.f32 %v214, %v262
  %v264 = vpop.f32.mrf.mxu0
  %v265 = vadd.f32 %v216, %v264
  %266 = vmatmul.bf16.gmra.mxu0 %v184
  %v267 = vpop.f32.mrf.mxu0
  %v268 = vadd.f32 %v219, %v267
  %v269 = vpop.f32.mrf.mxu0
  %v270 = vadd.f32 %v221, %v269
  %271 = vmatmul.bf16.gmra.mxu0 %v187
  %v272 = vpop.f32.mrf.mxu0
  %v273 = vadd.f32 %v224, %v272
  %v274 = vpop.f32.mrf.mxu0
  %v275 = vadd.f32 %v226, %v274
  %276 = vmatmul.bf16.gmra.mxu0 %v190
  %v277 = vpop.f32.mrf.mxu0
  %v278 = vadd.f32 %v229, %v277
  %v279 = vpop.f32.mrf.mxu0
  %v280 = vadd.f32 %v231, %v279
  %281 = vmatmul.bf16.gmra.mxu0 %v193
  %v282 = vpop.f32.mrf.mxu0
  %v283 = vadd.f32 %v234, %v282
  %v284 = vpop.f32.mrf.mxu0
  %v285 = vadd.f32 %v236, %v284
  %286 = vmatmul.bf16.gmra.mxu0 %v196
  %v287 = vpop.f32.mrf.mxu0
  %v288 = vadd.f32 %v239, %v287
  %v289 = vpop.f32.mrf.mxu0
  %v290 = vadd.f32 %v241, %v289
  %291 = vmatmul.bf16.gmra.mxu0 %v199
  %v292 = vpop.f32.mrf.mxu0
  %v293 = vadd.f32 %v244, %v292
  %v294 = vpop.f32.mrf.mxu0
  %v295 = vadd.f32 %v246, %v294
  %296 = vmatmul.bf16.gmra.mxu0 %v202
  %v297 = vpop.f32.mrf.mxu0
  %v298 = vadd.f32 %v249, %v297
  %v299 = vpop.f32.mrf.mxu0
  %v300 = vadd.f32 %v251, %v299
  %301 = vdwg.mxu0
  %302 = vst.msk [vmem:[%s3] sm:$0xff] %vm179, %v263
  %303 = vst.msk [vmem:[%s3 + $0x8] sm:$0xff] %vm179, %v265
  %304 = vst.msk [vmem:[%s3 + $0x10] sm:$0xff] %vm179, %v268
  %305 = vst.msk [vmem:[%s3 + $0x18] sm:$0xff] %vm179, %v270
  %306 = vst.msk [vmem:[%s3 + $0x20] sm:$0xff] %vm179, %v273
  %307 = vst.msk [vmem:[%s3 + $0x28] sm:$0xff] %vm179, %v275
  %308 = vst.msk [vmem:[%s3 + $0x30] sm:$0xff] %vm179, %v278
  %309 = vst.msk [vmem:[%s3 + $0x38] sm:$0xff] %vm179, %v280
  %310 = vst.msk [vmem:[%s3 + $0x40] sm:$0xff] %vm179, %v283
  %311 = vst.msk [vmem:[%s3 + $0x48] sm:$0xff] %vm179, %v285
  %312 = vst.msk [vmem:[%s3 + $0x50] sm:$0xff] %vm179, %v288
  %313 = vst.msk [vmem:[%s3 + $0x58] sm:$0xff] %vm179, %v290
  %314 = vst.msk [vmem:[%s3 + $0x60] sm:$0xff] %vm179, %v293
  %315 = vst.msk [vmem:[%s3 + $0x68] sm:$0xff] %vm179, %v295
  %316 = vst.msk [vmem:[%s3 + $0x70] sm:$0xff] %vm179, %v298
  %317 = vst.msk [vmem:[%s3 + $0x78] sm:$0xff] %vm179, %v300
  // Predicated region
  $region14: #{kfcos_net.21} parent=0 // pred_check
    _
  $region15: #{kfcos_net.21} parent=0 // pred_check_branch
    %319 = sbr.rel (0) target = $region17
  $region16: #{kfcos_net.21} parent=0 // pred_region
    _
  $region17: #{kfcos_net.21} parent=0 // pred_fallthru
    _
  // Predicated region
  $region18: #{kfcos_net.21} parent=0 // pred_check
    _
  $region19: #{kfcos_net.21} parent=0 // pred_check_branch
    %321 = sbr.rel (0) target = $region21
  $region20: #{kfcos_net.21} parent=0 // pred_region
    _
  $region21: #{kfcos_net.21} parent=0 // pred_fallthru
    _

// kernel: kfcos_net.24
$region0: #{kfcos_net.24}
  #allocation0 [shape = 'u32[]', space=smem, size = 0x4, offset = 0x4, fixed_abs, tag = 'smem constant byte address 0x4 - core index']
  #allocation1 [shape = 'u32[72,128]{1,0:T(1,128)}', space=vmem, size = 0x9000, scoped, tag = 'internal scratch']
  %s0 = inlined_call_operand.vmem [shape: bf16[8,144], index: 0, kind: input, shape index: {}]
  %s1 = inlined_call_operand.vmem [shape: bf16[144,16], index: 1, kind: input, shape index: {}]
  %s2 = inlined_call_operand.vmem [shape: f32[1,16], index: 2, kind: input, shape index: {}]
  %s3 = inlined_call_operand.vmem [shape: f32[8,16], index: 3, kind: output, shape index: {}]
  %s4 = sld [smem:[#allocation0]]
  $region22: #{kfcos_net.24} parent=0
    _
  %s6 = ssub.s32 1, %s4
  %s7 = scalar_select 0, %s6, %s4
  // Predicated region
  $region2: #{kfcos_net.24} parent=0 // pred_check
    _
  $region3: #{kfcos_net.24} parent=0 // pred_check_branch
    %9 = sbr.rel (0) target = $region5
  $region4: #{kfcos_net.24} parent=0 // pred_region
    _
  $region5: #{kfcos_net.24} parent=0 // pred_fallthru
    _
  // Predicated region
  $region6: #{kfcos_net.24} parent=0 // pred_check
    _
  $region7: #{kfcos_net.24} parent=0 // pred_check_branch
    %11 = sbr.rel (0) target = $region9
  $region8: #{kfcos_net.24} parent=0 // pred_region
    _
  $region9: #{kfcos_net.24} parent=0 // pred_fallthru
    _
  // Predicated region
  $region10: #{kfcos_net.24} parent=0 // pred_check
    _
  $region11: #{kfcos_net.24} parent=0 // pred_check_branch
    %13 = sbr.rel (0) target = $region13
  $region12: #{kfcos_net.24} parent=0 // pred_region
    _
  $region13: #{kfcos_net.24} parent=0 // pred_fallthru
    _
  %v15 = vld [vmem:[%s0] sm:$0xff]
  %v16 = vunpack.c.l.bf16 %v15
  %v17 = vunpack.c.h.bf16 %v15
  %v18 = vmax.f32 %v16, 0.0
  %v19 = vmax.f32 %v17, 0.0
  %v20 = vpack.c.bf16 %v18, %v18
  %v21 = vpack.c.bf16 %v19, %v19
  %v22 = vld [vmem:[%s1] sm:$0xf]
  %v23 = vld [vmem:[%s1 + $0x4] sm:$0xf]
  %v24 = vld [vmem:[%s1 + $0x8] sm:$0xf]
  %v25 = vld [vmem:[%s1 + $0xc] sm:$0xf]
  %v26 = vld [vmem:[%s1 + $0x10] sm:$0xf]
  %v27 = vld [vmem:[%s1 + $0x14] sm:$0xf]
  %v28 = vld [vmem:[%s1 + $0x18] sm:$0xf]
  %v29 = vld [vmem:[%s1 + $0x1c] sm:$0xf]
  %v30 = vld [vmem:[%s1 + $0x20] sm:$0xf]
  %v31 = vld [vmem:[%s1 + $0x24] sm:$0xf]
  %v32 = vld [vmem:[%s1 + $0x28] sm:$0xf]
  %v33 = vld [vmem:[%s1 + $0x2c] sm:$0xf]
  %v34 = vld [vmem:[%s1 + $0x30] sm:$0xf]
  %v35 = vld [vmem:[%s1 + $0x34] sm:$0xf]
  %v36 = vld [vmem:[%s1 + $0x38] sm:$0xf]
  %v37 = vld [vmem:[%s1 + $0x3c] sm:$0xf]
  %v38 = vld [vmem:[%s1 + $0x40] sm:$0xf]
  %v39 = vld [vmem:[%s1 + $0x44] sm:$0xf]
  %v40 = vld [vmem:[%s2] sm:$0x1]
  %v42 = vperm.slane %v40, 0
  %v62 = vunpack.c.l.b16 %v22
  %v63 = vunpack.c.l.b16 %v23
  %v64 = vunpack.c.l.b16 %v24
  %v65 = vunpack.c.l.b16 %v25
  %v66 = vunpack.c.l.b16 %v26
  %v67 = vunpack.c.l.b16 %v27
  %v68 = vunpack.c.l.b16 %v28
  %v69 = vunpack.c.l.b16 %v29
  %v70 = vunpack.c.l.b16 %v30
  %v71 = vunpack.c.l.b16 %v31
  %v72 = vunpack.c.l.b16 %v32
  %v73 = vunpack.c.l.b16 %v33
  %v74 = vunpack.c.l.b16 %v34
  %v75 = vunpack.c.l.b16 %v35
  %v76 = vunpack.c.l.b16 %v36
  %v77 = vunpack.c.l.b16 %v37
  %v78 = vunpack.c.l.b16 %v38
  %v79 = vunpack.c.l.b16 %v39
  %v80 = vpack.c.b16 %v63, %v62
  %v81 = vpack.c.b16 %v65, %v64
  %v82 = vpack.c.b16 %v67, %v66
  %v83 = vpack.c.b16 %v69, %v68
  %v84 = vpack.c.b16 %v71, %v70
  %v85 = vpack.c.b16 %v73, %v72
  %v86 = vpack.c.b16 %v75, %v74
  %v87 = vpack.c.b16 %v77, %v76
  %v88 = vpack.c.b16 %v79, %v78
  %vm98 = vcmask 130048
  %v100 = vsel %vm98, %v21, 0
  %102 = vmatpush.bf16.msra.mxu0 %v87
  %103 = vmatpush.bf16.msra.mxu0 %v86
  %104 = vmatpush.bf16.msra.mxu0 %v85
  %105 = vmatpush.bf16.msra.mxu0 %v84
  %106 = vmatpush.bf16.msra.mxu0 %v83
  %107 = vmatpush.bf16.msra.mxu0 %v82
  %108 = vmatpush.bf16.msra.mxu0 %v81
  %109 = vmatpush.bf16.msra.mxu0 %v80
  %110 = vmatmul.bf16.gmra.mxu0 %v20
  %v111 = vpop.f32.mrf.mxu0
  %v112 = vadd.f32 %v42, %v111
  %v113 = vpop.f32.mrf.mxu0
  %114 = vdwg.mxu0
  %115 = vmatpush.bf16.msra.mxu0 0
  %116 = vmatpush.bf16.msra.mxu0 0
  %117 = vmatpush.bf16.msra.mxu0 0
  %118 = vmatpush.bf16.msra.mxu0 0
  %119 = vmatpush.bf16.msra.mxu0 0
  %120 = vmatpush.bf16.msra.mxu0 0
  %121 = vmatpush.bf16.msra.mxu0 0
  %122 = vmatpush.bf16.msra.mxu0 %v88
  %123 = vmatmul.bf16.gmra.mxu0 %v100
  %v124 = vpop.f32.mrf.mxu0
  %v125 = vadd.f32 %v112, %v124
  %v126 = vpop.f32.mrf.mxu0
  %127 = vdwg.mxu0
  %128 = vst.msk [vmem:[%s3] sm:$0xff] %vm98, %v125
  // Predicated region
  $region14: #{kfcos_net.24} parent=0 // pred_check
    _
  $region15: #{kfcos_net.24} parent=0 // pred_check_branch
    %130 = sbr.rel (0) target = $region17
  $region16: #{kfcos_net.24} parent=0 // pred_region
    _
  $region17: #{kfcos_net.24} parent=0 // pred_fallthru
    _
  // Predicated region
  $region18: #{kfcos_net.24} parent=0 // pred_check
    _
  $region19: #{kfcos_net.24} parent=0 // pred_check_branch
    %132 = sbr.rel (0) target = $region21
  $region20: #{kfcos_net.24} parent=0 // pred_region
    _
  $region21: #{kfcos_net.24} parent=0 // pred_fallthru
    _

// kernel: kfcos_net.19
$region0: #{kfcos_net.19}
  #allocation0 [shape = 'u32[]', space=smem, size = 0x4, offset = 0x4, fixed_abs, tag = 'smem constant byte address 0x4 - core index']
  #allocation1 [shape = 'u32[72,128]{1,0:T(1,128)}', space=vmem, size = 0x9000, scoped, tag = 'internal scratch']
  %s0 = inlined_call_operand.vmem [shape: bf16[512,16], index: 0, kind: input, shape index: {}]
  %s1 = inlined_call_operand.vmem [shape: bf16[16,16], index: 1, kind: input, shape index: {}]
  %s2 = inlined_call_operand.vmem [shape: f32[1,16], index: 2, kind: input, shape index: {}]
  %s3 = inlined_call_operand.vmem [shape: f32[512,16], index: 3, kind: output, shape index: {}]
  %s4 = sld [smem:[#allocation0]]
  $region22: #{kfcos_net.19} parent=0
    _
  %s6 = ssub.s32 1, %s4
  %s7 = scalar_select 0, %s6, %s4
  // Predicated region
  $region2: #{kfcos_net.19} parent=0 // pred_check
    _
  $region3: #{kfcos_net.19} parent=0 // pred_check_branch
    %9 = sbr.rel (0) target = $region5
  $region4: #{kfcos_net.19} parent=0 // pred_region
    _
  $region5: #{kfcos_net.19} parent=0 // pred_fallthru
    _
  // Predicated region
  $region6: #{kfcos_net.19} parent=0 // pred_check
    _
  $region7: #{kfcos_net.19} parent=0 // pred_check_branch
    %11 = sbr.rel (0) target = $region9
  $region8: #{kfcos_net.19} parent=0 // pred_region
    _
  $region9: #{kfcos_net.19} parent=0 // pred_fallthru
    _
  // Predicated region
  $region10: #{kfcos_net.19} parent=0 // pred_check
    _
  $region11: #{kfcos_net.19} parent=0 // pred_check_branch
    %13 = sbr.rel (0) target = $region13
  $region12: #{kfcos_net.19} parent=0 // pred_region
    _
  $region13: #{kfcos_net.19} parent=0 // pred_fallthru
    _
  %v15 = vld [vmem:[%s0] sm:$0xf]
  %v16 = vld [vmem:[%s0 + $0x4] sm:$0xf]
  %v17 = vld [vmem:[%s0 + $0x8] sm:$0xf]
  %v18 = vld [vmem:[%s0 + $0xc] sm:$0xf]
  %v19 = vld [vmem:[%s0 + $0x10] sm:$0xf]
  %v20 = vld [vmem:[%s0 + $0x14] sm:$0xf]
  %v21 = vld [vmem:[%s0 + $0x18] sm:$0xf]
  %v22 = vld [vmem:[%s0 + $0x1c] sm:$0xf]
  %v23 = vld [vmem:[%s0 + $0x20] sm:$0xf]
  %v24 = vld [vmem:[%s0 + $0x24] sm:$0xf]
  %v25 = vld [vmem:[%s0 + $0x28] sm:$0xf]
  %v26 = vld [vmem:[%s0 + $0x2c] sm:$0xf]
  %v27 = vld [vmem:[%s0 + $0x30] sm:$0xf]
  %v28 = vld [vmem:[%s0 + $0x34] sm:$0xf]
  %v29 = vld [vmem:[%s0 + $0x38] sm:$0xf]
  %v30 = vld [vmem:[%s0 + $0x3c] sm:$0xf]
  %v31 = vld [vmem:[%s0 + $0x40] sm:$0xf]
  %v32 = vld [vmem:[%s0 + $0x44] sm:$0xf]
  %v33 = vld [vmem:[%s0 + $0x48] sm:$0xf]
  %v34 = vld [vmem:[%s0 + $0x4c] sm:$0xf]
  %v35 = vld [vmem:[%s0 + $0x50] sm:$0xf]
  %v36 = vld [vmem:[%s0 + $0x54] sm:$0xf]
  %v37 = vld [vmem:[%s0 + $0x58] sm:$0xf]
  %v38 = vld [vmem:[%s0 + $0x5c] sm:$0xf]
  %v39 = vld [vmem:[%s0 + $0x60] sm:$0xf]
  %v40 = vld [vmem:[%s0 + $0x64] sm:$0xf]
  %v41 = vld [vmem:[%s0 + $0x68] sm:$0xf]
  %v42 = vld [vmem:[%s0 + $0x6c] sm:$0xf]
  %v43 = vld [vmem:[%s0 + $0x70] sm:$0xf]
  %v44 = vld [vmem:[%s0 + $0x74] sm:$0xf]
  %v45 = vld [vmem:[%s0 + $0x78] sm:$0xf]
  %v46 = vld [vmem:[%s0 + $0x7c] sm:$0xf]
  %v47 = vld [vmem:[%s0 + $0x80] sm:$0xf]
  %v48 = vld [vmem:[%s0 + $0x84] sm:$0xf]
  %v49 = vld [vmem:[%s0 + $0x88] sm:$0xf]
  %v50 = vld [vmem:[%s0 + $0x8c] sm:$0xf]
  %v51 = vld [vmem:[%s0 + $0x90] sm:$0xf]
  %v52 = vld [vmem:[%s0 + $0x94] sm:$0xf]
  %v53 = vld [vmem:[%s0 + $0x98] sm:$0xf]
  %v54 = vld [vmem:[%s0 + $0x9c] sm:$0xf]
  %v55 = vld [vmem:[%s0 + $0xa0] sm:$0xf]
  %v56 = vld [vmem:[%s0 + $0xa4] sm:$0xf]
  %v57 = vld [vmem:[%s0 + $0xa8] sm:$0xf]
  %v58 = vld [vmem:[%s0 + $0xac] sm:$0xf]
  %v59 = vld [vmem:[%s0 + $0xb0] sm:$0xf]
  %v60 = vld [vmem:[%s0 + $0xb4] sm:$0xf]
  %v61 = vld [vmem:[%s0 + $0xb8] sm:$0xf]
  %v62 = vld [vmem:[%s0 + $0xbc] sm:$0xf]
  %v63 = vld [vmem:[%s0 + $0xc0] sm:$0xf]
  %v64 = vld [vmem:[%s0 + $0xc4] sm:$0xf]
  %v65 = vld [vmem:[%s0 + $0xc8] sm:$0xf]
  %v66 = vld [vmem:[%s0 + $0xcc] sm:$0xf]
  %v67 = vld [vmem:[%s0 + $0xd0] sm:$0xf]
  %v68 = vld [vmem:[%s0 + $0xd4] sm:$0xf]
  %v69 = vld [vmem:[%s0 + $0xd8] sm:$0xf]
  %v70 = vld [vmem:[%s0 + $0xdc] sm:$0xf]
  %v71 = vld [vmem:[%s0 + $0xe0] sm:$0xf]
  %v72 = vld [vmem:[%s0 + $0xe4] sm:$0xf]
  %v73 = vld [vmem:[%s0 + $0xe8] sm:$0xf]
  %v74 = vld [vmem:[%s0 + $0xec] sm:$0xf]
  %v75 = vld [vmem:[%s0 + $0xf0] sm:$0xf]
  %v76 = vld [vmem:[%s0 + $0xf4] sm:$0xf]
  %v77 = vld [vmem:[%s0 + $0xf8] sm:$0xf]
  %v78 = vld [vmem:[%s0 + $0xfc] sm:$0xf]
  %v79 = vld [vmem:[%s1] sm:$0xf]
  %v80 = vld [vmem:[%s1 + $0x4] sm:$0xf]
  %v81 = vld [vmem:[%s2] sm:$0x1]
  %v83 = vperm.slane %v81, 0
  %v149 = vunpack.c.l.b16 %v15
  %v150 = vunpack.c.l.b16 %v16
  %v151 = vunpack.c.l.b16 %v17
  %v152 = vunpack.c.l.b16 %v18
  %v153 = vunpack.c.l.b16 %v19
  %v154 = vunpack.c.l.b16 %v20
  %v155 = vunpack.c.l.b16 %v21
  %v156 = vunpack.c.l.b16 %v22
  %v157 = vunpack.c.l.b16 %v23
  %v158 = vunpack.c.l.b16 %v24
  %v159 = vunpack.c.l.b16 %v25
  %v160 = vunpack.c.l.b16 %v26
  %v161 = vunpack.c.l.b16 %v27
  %v162 = vunpack.c.l.b16 %v28
  %v163 = vunpack.c.l.b16 %v29
  %v164 = vunpack.c.l.b16 %v30
  %v165 = vunpack.c.l.b16 %v31
  %v166 = vunpack.c.l.b16 %v32
  %v167 = vunpack.c.l.b16 %v33
  %v168 = vunpack.c.l.b16 %v34
  %v169 = vunpack.c.l.b16 %v35
  %v170 = vunpack.c.l.b16 %v36
  %v171 = vunpack.c.l.b16 %v37
  %v172 = vunpack.c.l.b16 %v38
  %v173 = vunpack.c.l.b16 %v39
  %v174 = vunpack.c.l.b16 %v40
  %v175 = vunpack.c.l.b16 %v41
  %v176 = vunpack.c.l.b16 %v42
  %v177 = vunpack.c.l.b16 %v43
  %v178 = vunpack.c.l.b16 %v44
  %v179 = vunpack.c.l.b16 %v45
  %v180 = vunpack.c.l.b16 %v46
  %v181 = vunpack.c.l.b16 %v47
  %v182 = vunpack.c.l.b16 %v48
  %v183 = vunpack.c.l.b16 %v49
  %v184 = vunpack.c.l.b16 %v50
  %v185 = vunpack.c.l.b16 %v51
  %v186 = vunpack.c.l.b16 %v52
  %v187 = vunpack.c.l.b16 %v53
  %v188 = vunpack.c.l.b16 %v54
  %v189 = vunpack.c.l.b16 %v55
  %v190 = vunpack.c.l.b16 %v56
  %v191 = vunpack.c.l.b16 %v57
  %v192 = vunpack.c.l.b16 %v58
  %v193 = vunpack.c.l.b16 %v59
  %v194 = vunpack.c.l.b16 %v60
  %v195 = vunpack.c.l.b16 %v61
  %v196 = vunpack.c.l.b16 %v62
  %v197 = vunpack.c.l.b16 %v63
  %v198 = vunpack.c.l.b16 %v64
  %v199 = vunpack.c.l.b16 %v65
  %v200 = vunpack.c.l.b16 %v66
  %v201 = vunpack.c.l.b16 %v67
  %v202 = vunpack.c.l.b16 %v68
  %v203 = vunpack.c.l.b16 %v69
  %v204 = vunpack.c.l.b16 %v70
  %v205 = vunpack.c.l.b16 %v71
  %v206 = vunpack.c.l.b16 %v72
  %v207 = vunpack.c.l.b16 %v73
  %v208 = vunpack.c.l.b16 %v74
  %v209 = vunpack.c.l.b16 %v75
  %v210 = vunpack.c.l.b16 %v76
  %v211 = vunpack.c.l.b16 %v77
  %v212 = vunpack.c.l.b16 %v78
  %v213 = vpack.c.b16 %v150, %v149
  %v214 = vpack.c.b16 %v152, %v151
  %v215 = vpack.c.b16 %v154, %v153
  %v216 = vpack.c.b16 %v156, %v155
  %v217 = vpack.c.b16 %v158, %v157
  %v218 = vpack.c.b16 %v160, %v159
  %v219 = vpack.c.b16 %v162, %v161
  %v220 = vpack.c.b16 %v164, %v163
  %v221 = vpack.c.b16 %v166, %v165
  %v222 = vpack.c.b16 %v168, %v167
  %v223 = vpack.c.b16 %v170, %v169
  %v224 = vpack.c.b16 %v172, %v171
  %v225 = vpack.c.b16 %v174, %v173
  %v226 = vpack.c.b16 %v176, %v175
  %v227 = vpack.c.b16 %v178, %v177
  %v228 = vpack.c.b16 %v180, %v179
  %v229 = vpack.c.b16 %v182, %v181
  %v230 = vpack.c.b16 %v184, %v183
  %v231 = vpack.c.b16 %v186, %v185
  %v232 = vpack.c.b16 %v188, %v187
  %v233 = vpack.c.b16 %v190, %v189
  %v234 = vpack.c.b16 %v192, %v191
  %v235 = vpack.c.b16 %v194, %v193
  %v236 = vpack.c.b16 %v196, %v195
  %v237 = vpack.c.b16 %v198, %v197
  %v238 = vpack.c.b16 %v200, %v199
  %v239 = vpack.c.b16 %v202, %v201
  %v240 = vpack.c.b16 %v204, %v203
  %v241 = vpack.c.b16 %v206, %v205
  %v242 = vpack.c.b16 %v208, %v207
  %v243 = vpack.c.b16 %v210, %v209
  %v244 = vpack.c.b16 %v212, %v211
  %v247 = vunpack.c.l.b16 %v79
  %v248 = vunpack.c.l.b16 %v80
  %v249 = vpack.c.b16 %v248, %v247
  %vm251 = vcmask 130048
  %v253 = vsel %vm251, %v213, 0
  %v256 = vsel %vm251, %v214, 0
  %v259 = vsel %vm251, %v215, 0
  %v262 = vsel %vm251, %v216, 0
  %v265 = vsel %vm251, %v217, 0
  %v268 = vsel %vm251, %v218, 0
  %v271 = vsel %vm251, %v219, 0
  %v274 = vsel %vm251, %v220, 0
  %v277 = vsel %vm251, %v221, 0
  %v280 = vsel %vm251, %v222, 0
  %v283 = vsel %vm251, %v223, 0
  %v286 = vsel %vm251, %v224, 0
  %v289 = vsel %vm251, %v225, 0
  %v292 = vsel %vm251, %v226, 0
  %v295 = vsel %vm251, %v227, 0
  %v298 = vsel %vm251, %v228, 0
  %v301 = vsel %vm251, %v229, 0
  %v304 = vsel %vm251, %v230, 0
  %v307 = vsel %vm251, %v231, 0
  %v310 = vsel %vm251, %v232, 0
  %v313 = vsel %vm251, %v233, 0
  %v316 = vsel %vm251, %v234, 0
  %v319 = vsel %vm251, %v235, 0
  %v322 = vsel %vm251, %v236, 0
  %v325 = vsel %vm251, %v237, 0
  %v328 = vsel %vm251, %v238, 0
  %v331 = vsel %vm251, %v239, 0
  %v334 = vsel %vm251, %v240, 0
  %v337 = vsel %vm251, %v241, 0
  %v340 = vsel %vm251, %v242, 0
  %v343 = vsel %vm251, %v243, 0
  %v346 = vsel %vm251, %v244, 0
  %348 = vmatpush.bf16.msra.mxu0 0
  %349 = vmatpush.bf16.msra.mxu0 0
  %350 = vmatpush.bf16.msra.mxu0 0
  %351 = vmatpush.bf16.msra.mxu0 0
  %352 = vmatpush.bf16.msra.mxu0 0
  %353 = vmatpush.bf16.msra.mxu0 0
  %354 = vmatpush.bf16.msra.mxu0 0
  %355 = vmatpush.bf16.msra.mxu0 %v249
  %356 = vmatmul.bf16.gmra.mxu0 %v253
  %v357 = vpop.f32.mrf.mxu0
  %v358 = vadd.f32 %v83, %v357
  %v359 = vpop.f32.mrf.mxu0
  %v360 = vadd.f32 %v83, %v359
  %361 = vmatmul.bf16.gmra.mxu0 %v256
  %v362 = vpop.f32.mrf.mxu0
  %v363 = vadd.f32 %v83, %v362
  %v364 = vpop.f32.mrf.mxu0
  %v365 = vadd.f32 %v83, %v364
  %366 = vmatmul.bf16.gmra.mxu0 %v259
  %v367 = vpop.f32.mrf.mxu0
  %v368 = vadd.f32 %v83, %v367
  %v369 = vpop.f32.mrf.mxu0
  %v370 = vadd.f32 %v83, %v369
  %371 = vmatmul.bf16.gmra.mxu0 %v262
  %v372 = vpop.f32.mrf.mxu0
  %v373 = vadd.f32 %v83, %v372
  %v374 = vpop.f32.mrf.mxu0
  %v375 = vadd.f32 %v83, %v374
  %376 = vmatmul.bf16.gmra.mxu0 %v265
  %v377 = vpop.f32.mrf.mxu0
  %v378 = vadd.f32 %v83, %v377
  %v379 = vpop.f32.mrf.mxu0
  %v380 = vadd.f32 %v83, %v379
  %381 = vmatmul.bf16.gmra.mxu0 %v268
  %v382 = vpop.f32.mrf.mxu0
  %v383 = vadd.f32 %v83, %v382
  %v384 = vpop.f32.mrf.mxu0
  %v385 = vadd.f32 %v83, %v384
  %386 = vmatmul.bf16.gmra.mxu0 %v271
  %v387 = vpop.f32.mrf.mxu0
  %v388 = vadd.f32 %v83, %v387
  %v389 = vpop.f32.mrf.mxu0
  %v390 = vadd.f32 %v83, %v389
  %391 = vmatmul.bf16.gmra.mxu0 %v274
  %v392 = vpop.f32.mrf.mxu0
  %v393 = vadd.f32 %v83, %v392
  %v394 = vpop.f32.mrf.mxu0
  %v395 = vadd.f32 %v83, %v394
  %396 = vmatmul.bf16.gmra.mxu0 %v277
  %v397 = vpop.f32.mrf.mxu0
  %v398 = vadd.f32 %v83, %v397
  %v399 = vpop.f32.mrf.mxu0
  %v400 = vadd.f32 %v83, %v399
  %401 = vmatmul.bf16.gmra.mxu0 %v280
  %v402 = vpop.f32.mrf.mxu0
  %v403 = vadd.f32 %v83, %v402
  %v404 = vpop.f32.mrf.mxu0
  %v405 = vadd.f32 %v83, %v404
  %406 = vmatmul.bf16.gmra.mxu0 %v283
  %v407 = vpop.f32.mrf.mxu0
  %v408 = vadd.f32 %v83, %v407
  %v409 = vpop.f32.mrf.mxu0
  %v410 = vadd.f32 %v83, %v409
  %411 = vmatmul.bf16.gmra.mxu0 %v286
  %v412 = vpop.f32.mrf.mxu0
  %v413 = vadd.f32 %v83, %v412
  %v414 = vpop.f32.mrf.mxu0
  %v415 = vadd.f32 %v83, %v414
  %416 = vmatmul.bf16.gmra.mxu0 %v289
  %v417 = vpop.f32.mrf.mxu0
  %v418 = vadd.f32 %v83, %v417
  %v419 = vpop.f32.mrf.mxu0
  %v420 = vadd.f32 %v83, %v419
  %421 = vmatmul.bf16.gmra.mxu0 %v292
  %v422 = vpop.f32.mrf.mxu0
  %v423 = vadd.f32 %v83, %v422
  %v424 = vpop.f32.mrf.mxu0
  %v425 = vadd.f32 %v83, %v424
  %426 = vmatmul.bf16.gmra.mxu0 %v295
  %v427 = vpop.f32.mrf.mxu0
  %v428 = vadd.f32 %v83, %v427
  %v429 = vpop.f32.mrf.mxu0
  %v430 = vadd.f32 %v83, %v429
  %431 = vmatmul.bf16.gmra.mxu0 %v298
  %v432 = vpop.f32.mrf.mxu0
  %v433 = vadd.f32 %v83, %v432
  %v434 = vpop.f32.mrf.mxu0
  %v435 = vadd.f32 %v83, %v434
  %436 = vmatmul.bf16.gmra.mxu0 %v301
  %v437 = vpop.f32.mrf.mxu0
  %v438 = vadd.f32 %v83, %v437
  %v439 = vpop.f32.mrf.mxu0
  %v440 = vadd.f32 %v83, %v439
  %441 = vmatmul.bf16.gmra.mxu0 %v304
  %v442 = vpop.f32.mrf.mxu0
  %v443 = vadd.f32 %v83, %v442
  %v444 = vpop.f32.mrf.mxu0
  %v445 = vadd.f32 %v83, %v444
  %446 = vmatmul.bf16.gmra.mxu0 %v307
  %v447 = vpop.f32.mrf.mxu0
  %v448 = vadd.f32 %v83, %v447
  %v449 = vpop.f32.mrf.mxu0
  %v450 = vadd.f32 %v83, %v449
  %451 = vmatmul.bf16.gmra.mxu0 %v310
  %v452 = vpop.f32.mrf.mxu0
  %v453 = vadd.f32 %v83, %v452
  %v454 = vpop.f32.mrf.mxu0
  %v455 = vadd.f32 %v83, %v454
  %456 = vmatmul.bf16.gmra.mxu0 %v313
  %v457 = vpop.f32.mrf.mxu0
  %v458 = vadd.f32 %v83, %v457
  %v459 = vpop.f32.mrf.mxu0
  %v460 = vadd.f32 %v83, %v459
  %461 = vmatmul.bf16.gmra.mxu0 %v316
  %v462 = vpop.f32.mrf.mxu0
  %v463 = vadd.f32 %v83, %v462
  %v464 = vpop.f32.mrf.mxu0
  %v465 = vadd.f32 %v83, %v464
  %466 = vmatmul.bf16.gmra.mxu0 %v319
  %v467 = vpop.f32.mrf.mxu0
  %v468 = vadd.f32 %v83, %v467
  %v469 = vpop.f32.mrf.mxu0
  %v470 = vadd.f32 %v83, %v469
  %471 = vmatmul.bf16.gmra.mxu0 %v322
  %v472 = vpop.f32.mrf.mxu0
  %v473 = vadd.f32 %v83, %v472
  %v474 = vpop.f32.mrf.mxu0
  %v475 = vadd.f32 %v83, %v474
  %476 = vmatmul.bf16.gmra.mxu0 %v325
  %v477 = vpop.f32.mrf.mxu0
  %v478 = vadd.f32 %v83, %v477
  %v479 = vpop.f32.mrf.mxu0
  %v480 = vadd.f32 %v83, %v479
  %481 = vmatmul.bf16.gmra.mxu0 %v328
  %v482 = vpop.f32.mrf.mxu0
  %v483 = vadd.f32 %v83, %v482
  %v484 = vpop.f32.mrf.mxu0
  %v485 = vadd.f32 %v83, %v484
  %486 = vmatmul.bf16.gmra.mxu0 %v331
  %v487 = vpop.f32.mrf.mxu0
  %v488 = vadd.f32 %v83, %v487
  %v489 = vpop.f32.mrf.mxu0
  %v490 = vadd.f32 %v83, %v489
  %491 = vmatmul.bf16.gmra.mxu0 %v334
  %v492 = vpop.f32.mrf.mxu0
  %v493 = vadd.f32 %v83, %v492
  %v494 = vpop.f32.mrf.mxu0
  %v495 = vadd.f32 %v83, %v494
  %496 = vmatmul.bf16.gmra.mxu0 %v337
  %v497 = vpop.f32.mrf.mxu0
  %v498 = vadd.f32 %v83, %v497
  %v499 = vpop.f32.mrf.mxu0
  %v500 = vadd.f32 %v83, %v499
  %501 = vmatmul.bf16.gmra.mxu0 %v340
  %v502 = vpop.f32.mrf.mxu0
  %v503 = vadd.f32 %v83, %v502
  %v504 = vpop.f32.mrf.mxu0
  %v505 = vadd.f32 %v83, %v504
  %506 = vmatmul.bf16.gmra.mxu0 %v343
  %v507 = vpop.f32.mrf.mxu0
  %v508 = vadd.f32 %v83, %v507
  %v509 = vpop.f32.mrf.mxu0
  %v510 = vadd.f32 %v83, %v509
  %511 = vmatmul.bf16.gmra.mxu0 %v346
  %v512 = vpop.f32.mrf.mxu0
  %v513 = vadd.f32 %v83, %v512
  %v514 = vpop.f32.mrf.mxu0
  %v515 = vadd.f32 %v83, %v514
  %516 = vdwg.mxu0
  %517 = vst.msk [vmem:[%s3] sm:$0xff] %vm251, %v358
  %518 = vst.msk [vmem:[%s3 + $0x8] sm:$0xff] %vm251, %v360
  %519 = vst.msk [vmem:[%s3 + $0x10] sm:$0xff] %vm251, %v363
  %520 = vst.msk [vmem:[%s3 + $0x18] sm:$0xff] %vm251, %v365
  %521 = vst.msk [vmem:[%s3 + $0x20] sm:$0xff] %vm251, %v368
  %522 = vst.msk [vmem:[%s3 + $0x28] sm:$0xff] %vm251, %v370
  %523 = vst.msk [vmem:[%s3 + $0x30] sm:$0xff] %vm251, %v373
  %524 = vst.msk [vmem:[%s3 + $0x38] sm:$0xff] %vm251, %v375
  %525 = vst.msk [vmem:[%s3 + $0x40] sm:$0xff] %vm251, %v378
  %526 = vst.msk [vmem:[%s3 + $0x48] sm:$0xff] %vm251, %v380
  %527 = vst.msk [vmem:[%s3 + $0x50] sm:$0xff] %vm251, %v383
  %528 = vst.msk [vmem:[%s3 + $0x58] sm:$0xff] %vm251, %v385
  %529 = vst.msk [vmem:[%s3 + $0x60] sm:$0xff] %vm251, %v388
  %530 = vst.msk [vmem:[%s3 + $0x68] sm:$0xff] %vm251, %v390
  %531 = vst.msk [vmem:[%s3 + $0x70] sm:$0xff] %vm251, %v393
  %532 = vst.msk [vmem:[%s3 + $0x78] sm:$0xff] %vm251, %v395
  %533 = vst.msk [vmem:[%s3 + $0x80] sm:$0xff] %vm251, %v398
  %534 = vst.msk [vmem:[%s3 + $0x88] sm:$0xff] %vm251, %v400
  %535 = vst.msk [vmem:[%s3 + $0x90] sm:$0xff] %vm251, %v403
  %536 = vst.msk [vmem:[%s3 + $0x98] sm:$0xff] %vm251, %v405
  %537 = vst.msk [vmem:[%s3 + $0xa0] sm:$0xff] %vm251, %v408
  %538 = vst.msk [vmem:[%s3 + $0xa8] sm:$0xff] %vm251, %v410
  %539 = vst.msk [vmem:[%s3 + $0xb0] sm:$0xff] %vm251, %v413
  %540 = vst.msk [vmem:[%s3 + $0xb8] sm:$0xff] %vm251, %v415
  %541 = vst.msk [vmem:[%s3 + $0xc0] sm:$0xff] %vm251, %v418
  %542 = vst.msk [vmem:[%s3 + $0xc8] sm:$0xff] %vm251, %v420
  %543 = vst.msk [vmem:[%s3 + $0xd0] sm:$0xff] %vm251, %v423
  %544 = vst.msk [vmem:[%s3 + $0xd8] sm:$0xff] %vm251, %v425
  %545 = vst.msk [vmem:[%s3 + $0xe0] sm:$0xff] %vm251, %v428
  %546 = vst.msk [vmem:[%s3 + $0xe8] sm:$0xff] %vm251, %v430
  %547 = vst.msk [vmem:[%s3 + $0xf0] sm:$0xff] %vm251, %v433
  %548 = vst.msk [vmem:[%s3 + $0xf8] sm:$0xff] %vm251, %v435
  %549 = vst.msk [vmem:[%s3 + $0x100] sm:$0xff] %vm251, %v438
  %550 = vst.msk [vmem:[%s3 + $0x108] sm:$0xff] %vm251, %v440
  %551 = vst.msk [vmem:[%s3 + $0x110] sm:$0xff] %vm251, %v443
  %552 = vst.msk [vmem:[%s3 + $0x118] sm:$0xff] %vm251, %v445
  %553 = vst.msk [vmem:[%s3 + $0x120] sm:$0xff] %vm251, %v448
  %554 = vst.msk [vmem:[%s3 + $0x128] sm:$0xff] %vm251, %v450
  %555 = vst.msk [vmem:[%s3 + $0x130] sm:$0xff] %vm251, %v453
  %556 = vst.msk [vmem:[%s3 + $0x138] sm:$0xff] %vm251, %v455
  %557 = vst.msk [vmem:[%s3 + $0x140] sm:$0xff] %vm251, %v458
  %558 = vst.msk [vmem:[%s3 + $0x148] sm:$0xff] %vm251, %v460
  %559 = vst.msk [vmem:[%s3 + $0x150] sm:$0xff] %vm251, %v463
  %560 = vst.msk [vmem:[%s3 + $0x158] sm:$0xff] %vm251, %v465
  %561 = vst.msk [vmem:[%s3 + $0x160] sm:$0xff] %vm251, %v468
  %562 = vst.msk [vmem:[%s3 + $0x168] sm:$0xff] %vm251, %v470
  %563 = vst.msk [vmem:[%s3 + $0x170] sm:$0xff] %vm251, %v473
  %564 = vst.msk [vmem:[%s3 + $0x178] sm:$0xff] %vm251, %v475
  %565 = vst.msk [vmem:[%s3 + $0x180] sm:$0xff] %vm251, %v478
  %566 = vst.msk [vmem:[%s3 + $0x188] sm:$0xff] %vm251, %v480
  %567 = vst.msk [vmem:[%s3 + $0x190] sm:$0xff] %vm251, %v483
  %568 = vst.msk [vmem:[%s3 + $0x198] sm:$0xff] %vm251, %v485
  %569 = vst.msk [vmem:[%s3 + $0x1a0] sm:$0xff] %vm251, %v488
  %570 = vst.msk [vmem:[%s3 + $0x1a8] sm:$0xff] %vm251, %v490
  %571 = vst.msk [vmem:[%s3 + $0x1b0] sm:$0xff] %vm251, %v493
  %572 = vst.msk [vmem:[%s3 + $0x1b8] sm:$0xff] %vm251, %v495
  %573 = vst.msk [vmem:[%s3 + $0x1c0] sm:$0xff] %vm251, %v498
  %574 = vst.msk [vmem:[%s3 + $0x1c8] sm:$0xff] %vm251, %v500
  %575 = vst.msk [vmem:[%s3 + $0x1d0] sm:$0xff] %vm251, %v503
  %576 = vst.msk [vmem:[%s3 + $0x1d8] sm:$0xff] %vm251, %v505
  %577 = vst.msk [vmem:[%s3 + $0x1e0] sm:$0xff] %vm251, %v508
  %578 = vst.msk [vmem:[%s3 + $0x1e8] sm:$0xff] %vm251, %v510
  %579 = vst.msk [vmem:[%s3 + $0x1f0] sm:$0xff] %vm251, %v513
  %580 = vst.msk [vmem:[%s3 + $0x1f8] sm:$0xff] %vm251, %v515
  // Predicated region
  $region14: #{kfcos_net.19} parent=0 // pred_check
    _
  $region15: #{kfcos_net.19} parent=0 // pred_check_branch
    %582 = sbr.rel (0) target = $region17
  $region16: #{kfcos_net.19} parent=0 // pred_region
    _
  $region17: #{kfcos_net.19} parent=0 // pred_fallthru
    _
  // Predicated region
  $region18: #{kfcos_net.19} parent=0 // pred_check
    _
  $region19: #{kfcos_net.19} parent=0 // pred_check_branch
    %584 = sbr.rel (0) target = $region21
  $region20: #{kfcos_net.19} parent=0 // pred_region
    _
  $region21: #{kfcos_net.19} parent=0 // pred_fallthru
    _

// kernel: kfcos_net.20
$region0: #{kfcos_net.20}
  #allocation0 [shape = 'u32[]', space=smem, size = 0x4, offset = 0x4, fixed_abs, tag = 'smem constant byte address 0x4 - core index']
  #allocation1 [shape = 'u32[72,128]{1,0:T(1,128)}', space=vmem, size = 0x9000, scoped, tag = 'internal scratch']
  %s0 = inlined_call_operand.vmem [shape: bf16[512,144], index: 0, kind: input, shape index: {}]
  %s1 = inlined_call_operand.vmem [shape: bf16[144,16], index: 1, kind: input, shape index: {}]
  %s2 = inlined_call_operand.vmem [shape: f32[1,16], index: 2, kind: input, shape index: {}]
  %s3 = inlined_call_operand.vmem [shape: f32[512,16], index: 3, kind: output, shape index: {}]
  %s4 = sld [smem:[#allocation0]]
  $region22: #{kfcos_net.20} parent=0
    _
  %s6 = ssub.s32 1, %s4
  %s7 = scalar_select 0, %s6, %s4
  // Predicated region
  $region2: #{kfcos_net.20} parent=0 // pred_check
    _
  $region3: #{kfcos_net.20} parent=0 // pred_check_branch
    %9 = sbr.rel (0) target = $region5
  $region4: #{kfcos_net.20} parent=0 // pred_region
    _
  $region5: #{kfcos_net.20} parent=0 // pred_fallthru
    _
  // Predicated region
  $region6: #{kfcos_net.20} parent=0 // pred_check
    _
  $region7: #{kfcos_net.20} parent=0 // pred_check_branch
    %11 = sbr.rel (0) target = $region9
  $region8: #{kfcos_net.20} parent=0 // pred_region
    _
  $region9: #{kfcos_net.20} parent=0 // pred_fallthru
    _
  // Predicated region
  $region10: #{kfcos_net.20} parent=0 // pred_check
    _
  $region11: #{kfcos_net.20} parent=0 // pred_check_branch
    %13 = sbr.rel (0) target = $region13
  $region12: #{kfcos_net.20} parent=0 // pred_region
    _
  $region13: #{kfcos_net.20} parent=0 // pred_fallthru
    _
  %v15 = vld [vmem:[%s0] sm:$0xff]
  %v16 = vld [vmem:[%s0 + $0x8] sm:$0xff]
  %v17 = vld [vmem:[%s0 + $0x10] sm:$0xff]
  %v18 = vld [vmem:[%s0 + $0x18] sm:$0xff]
  %v19 = vld [vmem:[%s0 + $0x20] sm:$0xff]
  %v20 = vld [vmem:[%s0 + $0x28] sm:$0xff]
  %v21 = vld [vmem:[%s0 + $0x30] sm:$0xff]
  %v22 = vld [vmem:[%s0 + $0x38] sm:$0xff]
  %v23 = vld [vmem:[%s0 + $0x40] sm:$0xff]
  %v24 = vld [vmem:[%s0 + $0x48] sm:$0xff]
  %v25 = vld [vmem:[%s0 + $0x50] sm:$0xff]
  %v26 = vld [vmem:[%s0 + $0x58] sm:$0xff]
  %v27 = vld [vmem:[%s0 + $0x60] sm:$0xff]
  %v28 = vld [vmem:[%s0 + $0x68] sm:$0xff]
  %v29 = vld [vmem:[%s0 + $0x70] sm:$0xff]
  %v30 = vld [vmem:[%s0 + $0x78] sm:$0xff]
  %v31 = vld [vmem:[%s0 + $0x80] sm:$0xff]
  %v32 = vld [vmem:[%s0 + $0x88] sm:$0xff]
  %v33 = vld [vmem:[%s0 + $0x90] sm:$0xff]
  %v34 = vld [vmem:[%s0 + $0x98] sm:$0xff]
  %v35 = vld [vmem:[%s0 + $0xa0] sm:$0xff]
  %v36 = vld [vmem:[%s0 + $0xa8] sm:$0xff]
  %v37 = vld [vmem:[%s0 + $0xb0] sm:$0xff]
  %v38 = vld [vmem:[%s0 + $0xb8] sm:$0xff]
  %v39 = vld [vmem:[%s0 + $0xc0] sm:$0xff]
  %v40 = vld [vmem:[%s0 + $0xc8] sm:$0xff]
  %v41 = vld [vmem:[%s0 + $0xd0] sm:$0xff]
  %v42 = vld [vmem:[%s0 + $0xd8] sm:$0xff]
  %v43 = vld [vmem:[%s0 + $0xe0] sm:$0xff]
  %v44 = vld [vmem:[%s0 + $0xe8] sm:$0xff]
  %v45 = vld [vmem:[%s0 + $0xf0] sm:$0xff]
  %v46 = vld [vmem:[%s0 + $0xf8] sm:$0xff]
  %v47 = vld [vmem:[%s0 + $0x100] sm:$0xff]
  %v48 = vld [vmem:[%s0 + $0x108] sm:$0xff]
  %v49 = vld [vmem:[%s0 + $0x110] sm:$0xff]
  %v50 = vld [vmem:[%s0 + $0x118] sm:$0xff]
  %v51 = vld [vmem:[%s0 + $0x120] sm:$0xff]
  %v52 = vld [vmem:[%s0 + $0x128] sm:$0xff]
  %v53 = vld [vmem:[%s0 + $0x130] sm:$0xff]
  %v54 = vld [vmem:[%s0 + $0x138] sm:$0xff]
  %v55 = vld [vmem:[%s0 + $0x140] sm:$0xff]
  %v56 = vld [vmem:[%s0 + $0x148] sm:$0xff]
  %v57 = vld [vmem:[%s0 + $0x150] sm:$0xff]
  %v58 = vld [vmem:[%s0 + $0x158] sm:$0xff]
  %v59 = vld [vmem:[%s0 + $0x160] sm:$0xff]
  %v60 = vld [vmem:[%s0 + $0x168] sm:$0xff]
  %v61 = vld [vmem:[%s0 + $0x170] sm:$0xff]
  %v62 = vld [vmem:[%s0 + $0x178] sm:$0xff]
  %v63 = vld [vmem:[%s0 + $0x180] sm:$0xff]
  %v64 = vld [vmem:[%s0 + $0x188] sm:$0xff]
  %v65 = vld [vmem:[%s0 + $0x190] sm:$0xff]
  %v66 = vld [vmem:[%s0 + $0x198] sm:$0xff]
  %v67 = vld [vmem:[%s0 + $0x1a0] sm:$0xff]
  %v68 = vld [vmem:[%s0 + $0x1a8] sm:$0xff]
  %v69 = vld [vmem:[%s0 + $0x1b0] sm:$0xff]
  %v70 = vld [vmem:[%s0 + $0x1b8] sm:$0xff]
  %v71 = vld [vmem:[%s0 + $0x1c0] sm:$0xff]
  %v72 = vld [vmem:[%s0 + $0x1c8] sm:$0xff]
  %v73 = vld [vmem:[%s0 + $0x1d0] sm:$0xff]
  %v74 = vld [vmem:[%s0 + $0x1d8] sm:$0xff]
  %v75 = vld [vmem:[%s0 + $0x1e0] sm:$0xff]
  %v76 = vld [vmem:[%s0 + $0x1e8] sm:$0xff]
  %v77 = vld [vmem:[%s0 + $0x1f0] sm:$0xff]
  %v78 = vld [vmem:[%s0 + $0x1f8] sm:$0xff]
  %v79 = vld [vmem:[%s1] sm:$0xf]
  %v80 = vld [vmem:[%s1 + $0x4] sm:$0xf]
  %v81 = vld [vmem:[%s1 + $0x8] sm:$0xf]
  %v82 = vld [vmem:[%s1 + $0xc] sm:$0xf]
  %v83 = vld [vmem:[%s1 + $0x10] sm:$0xf]
  %v84 = vld [vmem:[%s1 + $0x14] sm:$0xf]
  %v85 = vld [vmem:[%s1 + $0x18] sm:$0xf]
  %v86 = vld [vmem:[%s1 + $0x1c] sm:$0xf]
  %v87 = vld [vmem:[%s1 + $0x20] sm:$0xf]
  %v88 = vld [vmem:[%s1 + $0x24] sm:$0xf]
  %v89 = vld [vmem:[%s1 + $0x28] sm:$0xf]
  %v90 = vld [vmem:[%s1 + $0x2c] sm:$0xf]
  %v91 = vld [vmem:[%s1 + $0x30] sm:$0xf]
  %v92 = vld [vmem:[%s1 + $0x34] sm:$0xf]
  %v93 = vld [vmem:[%s1 + $0x38] sm:$0xf]
  %v94 = vld [vmem:[%s1 + $0x3c] sm:$0xf]
  %v95 = vld [vmem:[%s1 + $0x40] sm:$0xf]
  %v96 = vld [vmem:[%s1 + $0x44] sm:$0xf]
  %v97 = vld [vmem:[%s2] sm:$0x1]
  %v99 = vperm.slane %v97, 0
  %v165 = vunpack.c.l.b16 %v15
  %v166 = vunpack.c.h.b16 %v15
  %v167 = vunpack.c.l.b16 %v16
  %v168 = vunpack.c.h.b16 %v16
  %v169 = vunpack.c.l.b16 %v17
  %v170 = vunpack.c.h.b16 %v17
  %v171 = vunpack.c.l.b16 %v18
  %v172 = vunpack.c.h.b16 %v18
  %v173 = vunpack.c.l.b16 %v19
  %v174 = vunpack.c.h.b16 %v19
  %v175 = vunpack.c.l.b16 %v20
  %v176 = vunpack.c.h.b16 %v20
  %v177 = vunpack.c.l.b16 %v21
  %v178 = vunpack.c.h.b16 %v21
  %v179 = vunpack.c.l.b16 %v22
  %v180 = vunpack.c.h.b16 %v22
  %v181 = vunpack.c.l.b16 %v23
  %v182 = vunpack.c.h.b16 %v23
  %v183 = vunpack.c.l.b16 %v24
  %v184 = vunpack.c.h.b16 %v24
  %v185 = vunpack.c.l.b16 %v25
  %v186 = vunpack.c.h.b16 %v25
  %v187 = vunpack.c.l.b16 %v26
  %v188 = vunpack.c.h.b16 %v26
  %v189 = vunpack.c.l.b16 %v27
  %v190 = vunpack.c.h.b16 %v27
  %v191 = vunpack.c.l.b16 %v28
  %v192 = vunpack.c.h.b16 %v28
  %v193 = vunpack.c.l.b16 %v29
  %v194 = vunpack.c.h.b16 %v29
  %v195 = vunpack.c.l.b16 %v30
  %v196 = vunpack.c.h.b16 %v30
  %v197 = vunpack.c.l.b16 %v31
  %v198 = vunpack.c.h.b16 %v31
  %v199 = vunpack.c.l.b16 %v32
  %v200 = vunpack.c.h.b16 %v32
  %v201 = vunpack.c.l.b16 %v33
  %v202 = vunpack.c.h.b16 %v33
  %v203 = vunpack.c.l.b16 %v34
  %v204 = vunpack.c.h.b16 %v34
  %v205 = vunpack.c.l.b16 %v35
  %v206 = vunpack.c.h.b16 %v35
  %v207 = vunpack.c.l.b16 %v36
  %v208 = vunpack.c.h.b16 %v36
  %v209 = vunpack.c.l.b16 %v37
  %v210 = vunpack.c.h.b16 %v37
  %v211 = vunpack.c.l.b16 %v38
  %v212 = vunpack.c.h.b16 %v38
  %v213 = vunpack.c.l.b16 %v39
  %v214 = vunpack.c.h.b16 %v39
  %v215 = vunpack.c.l.b16 %v40
  %v216 = vunpack.c.h.b16 %v40
  %v217 = vunpack.c.l.b16 %v41
  %v218 = vunpack.c.h.b16 %v41
  %v219 = vunpack.c.l.b16 %v42
  %v220 = vunpack.c.h.b16 %v42
  %v221 = vunpack.c.l.b16 %v43
  %v222 = vunpack.c.h.b16 %v43
  %v223 = vunpack.c.l.b16 %v44
  %v224 = vunpack.c.h.b16 %v44
  %v225 = vunpack.c.l.b16 %v45
  %v226 = vunpack.c.h.b16 %v45
  %v227 = vunpack.c.l.b16 %v46
  %v228 = vunpack.c.h.b16 %v46
  %v229 = vunpack.c.l.b16 %v47
  %v230 = vunpack.c.h.b16 %v47
  %v231 = vunpack.c.l.b16 %v48
  %v232 = vunpack.c.h.b16 %v48
  %v233 = vunpack.c.l.b16 %v49
  %v234 = vunpack.c.h.b16 %v49
  %v235 = vunpack.c.l.b16 %v50
  %v236 = vunpack.c.h.b16 %v50
  %v237 = vunpack.c.l.b16 %v51
  %v238 = vunpack.c.h.b16 %v51
  %v239 = vunpack.c.l.b16 %v52
  %v240 = vunpack.c.h.b16 %v52
  %v241 = vunpack.c.l.b16 %v53
  %v242 = vunpack.c.h.b16 %v53
  %v243 = vunpack.c.l.b16 %v54
  %v244 = vunpack.c.h.b16 %v54
  %v245 = vunpack.c.l.b16 %v55
  %v246 = vunpack.c.h.b16 %v55
  %v247 = vunpack.c.l.b16 %v56
  %v248 = vunpack.c.h.b16 %v56
  %v249 = vunpack.c.l.b16 %v57
  %v250 = vunpack.c.h.b16 %v57
  %v251 = vunpack.c.l.b16 %v58
  %v252 = vunpack.c.h.b16 %v58
  %v253 = vunpack.c.l.b16 %v59
  %v254 = vunpack.c.h.b16 %v59
  %v255 = vunpack.c.l.b16 %v60
  %v256 = vunpack.c.h.b16 %v60
  %v257 = vunpack.c.l.b16 %v61
  %v258 = vunpack.c.h.b16 %v61
  %v259 = vunpack.c.l.b16 %v62
  %v260 = vunpack.c.h.b16 %v62
  %v261 = vunpack.c.l.b16 %v63
  %v262 = vunpack.c.h.b16 %v63
  %v263 = vunpack.c.l.b16 %v64
  %v264 = vunpack.c.h.b16 %v64
  %v265 = vunpack.c.l.b16 %v65
  %v266 = vunpack.c.h.b16 %v65
  %v267 = vunpack.c.l.b16 %v66
  %v268 = vunpack.c.h.b16 %v66
  %v269 = vunpack.c.l.b16 %v67
  %v270 = vunpack.c.h.b16 %v67
  %v271 = vunpack.c.l.b16 %v68
  %v272 = vunpack.c.h.b16 %v68
  %v273 = vunpack.c.l.b16 %v69
  %v274 = vunpack.c.h.b16 %v69
  %v275 = vunpack.c.l.b16 %v70
  %v276 = vunpack.c.h.b16 %v70
  %v277 = vunpack.c.l.b16 %v71
  %v278 = vunpack.c.h.b16 %v71
  %v279 = vunpack.c.l.b16 %v72
  %v280 = vunpack.c.h.b16 %v72
  %v281 = vunpack.c.l.b16 %v73
  %v282 = vunpack.c.h.b16 %v73
  %v283 = vunpack.c.l.b16 %v74
  %v284 = vunpack.c.h.b16 %v74
  %v285 = vunpack.c.l.b16 %v75
  %v286 = vunpack.c.h.b16 %v75
  %v287 = vunpack.c.l.b16 %v76
  %v288 = vunpack.c.h.b16 %v76
  %v289 = vunpack.c.l.b16 %v77
  %v290 = vunpack.c.h.b16 %v77
  %v291 = vunpack.c.l.b16 %v78
  %v292 = vunpack.c.h.b16 %v78
  %v293 = vpack.c.b16 %v167, %v165
  %v294 = vpack.c.b16 %v168, %v166
  %v295 = vpack.c.b16 %v171, %v169
  %v296 = vpack.c.b16 %v172, %v170
  %v297 = vpack.c.b16 %v175, %v173
  %v298 = vpack.c.b16 %v176, %v174
  %v299 = vpack.c.b16 %v179, %v177
  %v300 = vpack.c.b16 %v180, %v178
  %v301 = vpack.c.b16 %v183, %v181
  %v302 = vpack.c.b16 %v184, %v182
  %v303 = vpack.c.b16 %v187, %v185
  %v304 = vpack.c.b16 %v188, %v186
  %v305 = vpack.c.b16 %v191, %v189
  %v306 = vpack.c.b16 %v192, %v190
  %v307 = vpack.c.b16 %v195, %v193
  %v308 = vpack.c.b16 %v196, %v194
  %v309 = vpack.c.b16 %v199, %v197
  %v310 = vpack.c.b16 %v200, %v198
  %v311 = vpack.c.b16 %v203, %v201
  %v312 = vpack.c.b16 %v204, %v202
  %v313 = vpack.c.b16 %v207, %v205
  %v314 = vpack.c.b16 %v208, %v206
  %v315 = vpack.c.b16 %v211, %v209
  %v316 = vpack.c.b16 %v212, %v210
  %v317 = vpack.c.b16 %v215, %v213
  %v318 = vpack.c.b16 %v216, %v214
  %v319 = vpack.c.b16 %v219, %v217
  %v320 = vpack.c.b16 %v220, %v218
  %v321 = vpack.c.b16 %v223, %v221
  %v322 = vpack.c.b16 %v224, %v222
  %v323 = vpack.c.b16 %v227, %v225
  %v324 = vpack.c.b16 %v228, %v226
  %v325 = vpack.c.b16 %v231, %v229
  %v326 = vpack.c.b16 %v232, %v230
  %v327 = vpack.c.b16 %v235, %v233
  %v328 = vpack.c.b16 %v236, %v234
  %v329 = vpack.c.b16 %v239, %v237
  %v330 = vpack.c.b16 %v240, %v238
  %v331 = vpack.c.b16 %v243, %v241
  %v332 = vpack.c.b16 %v244, %v242
  %v333 = vpack.c.b16 %v247, %v245
  %v334 = vpack.c.b16 %v248, %v246
  %v335 = vpack.c.b16 %v251, %v249
  %v336 = vpack.c.b16 %v252, %v250
  %v337 = vpack.c.b16 %v255, %v253
  %v338 = vpack.c.b16 %v256, %v254
  %v339 = vpack.c.b16 %v259, %v257
  %v340 = vpack.c.b16 %v260, %v258
  %v341 = vpack.c.b16 %v263, %v261
  %v342 = vpack.c.b16 %v264, %v262
  %v343 = vpack.c.b16 %v267, %v265
  %v344 = vpack.c.b16 %v268, %v266
  %v345 = vpack.c.b16 %v271, %v269
  %v346 = vpack.c.b16 %v272, %v270
  %v347 = vpack.c.b16 %v275, %v273
  %v348 = vpack.c.b16 %v276, %v274
  %v349 = vpack.c.b16 %v279, %v277
  %v350 = vpack.c.b16 %v280, %v278
  %v351 = vpack.c.b16 %v283, %v281
  %v352 = vpack.c.b16 %v284, %v282
  %v353 = vpack.c.b16 %v287, %v285
  %v354 = vpack.c.b16 %v288, %v286
  %v355 = vpack.c.b16 %v291, %v289
  %v356 = vpack.c.b16 %v292, %v290
  %v407 = vunpack.c.l.b16 %v79
  %v408 = vunpack.c.l.b16 %v80
  %v409 = vunpack.c.l.b16 %v81
  %v410 = vunpack.c.l.b16 %v82
  %v411 = vunpack.c.l.b16 %v83
  %v412 = vunpack.c.l.b16 %v84
  %v413 = vunpack.c.l.b16 %v85
  %v414 = vunpack.c.l.b16 %v86
  %v415 = vunpack.c.l.b16 %v87
  %v416 = vunpack.c.l.b16 %v88
  %v417 = vunpack.c.l.b16 %v89
  %v418 = vunpack.c.l.b16 %v90
  %v419 = vunpack.c.l.b16 %v91
  %v420 = vunpack.c.l.b16 %v92
  %v421 = vunpack.c.l.b16 %v93
  %v422 = vunpack.c.l.b16 %v94
  %v423 = vunpack.c.l.b16 %v95
  %v424 = vunpack.c.l.b16 %v96
  %v425 = vpack.c.b16 %v408, %v407
  %v426 = vpack.c.b16 %v410, %v409
  %v427 = vpack.c.b16 %v412, %v411
  %v428 = vpack.c.b16 %v414, %v413
  %v429 = vpack.c.b16 %v416, %v415
  %v430 = vpack.c.b16 %v418, %v417
  %v431 = vpack.c.b16 %v420, %v419
  %v432 = vpack.c.b16 %v422, %v421
  %v433 = vpack.c.b16 %v424, %v423
  %vm443 = vcmask 130048
  %v445 = vsel %vm443, %v294, 0
  %v448 = vsel %vm443, %v296, 0
  %v451 = vsel %vm443, %v298, 0
  %v454 = vsel %vm443, %v300, 0
  %v457 = vsel %vm443, %v302, 0
  %v460 = vsel %vm443, %v304, 0
  %v463 = vsel %vm443, %v306, 0
  %v466 = vsel %vm443, %v308, 0
  %v469 = vsel %vm443, %v310, 0
  %v472 = vsel %vm443, %v312, 0
  %v475 = vsel %vm443, %v314, 0
  %v478 = vsel %vm443, %v316, 0
  %v481 = vsel %vm443, %v318, 0
  %v484 = vsel %vm443, %v320, 0
  %v487 = vsel %vm443, %v322, 0
  %v490 = vsel %vm443, %v324, 0
  %v493 = vsel %vm443, %v326, 0
  %v496 = vsel %vm443, %v328, 0
  %v499 = vsel %vm443, %v330, 0
  %v502 = vsel %vm443, %v332, 0
  %v505 = vsel %vm443, %v334, 0
  %v508 = vsel %vm443, %v336, 0
  %v511 = vsel %vm443, %v338, 0
  %v514 = vsel %vm443, %v340, 0
  %v517 = vsel %vm443, %v342, 0
  %v520 = vsel %vm443, %v344, 0
  %v523 = vsel %vm443, %v346, 0
  %v526 = vsel %vm443, %v348, 0
  %v529 = vsel %vm443, %v350, 0
  %v532 = vsel %vm443, %v352, 0
  %v535 = vsel %vm443, %v354, 0
  %v538 = vsel %vm443, %v356, 0
  %540 = vmatpush.bf16.msra.mxu0 %v432
  %541 = vmatpush.bf16.msra.mxu0 %v431
  %542 = vmatpush.bf16.msra.mxu0 %v430
  %543 = vmatpush.bf16.msra.mxu0 %v429
  %544 = vmatpush.bf16.msra.mxu0 %v428
  %545 = vmatpush.bf16.msra.mxu0 %v427
  %546 = vmatpush.bf16.msra.mxu0 %v426
  %547 = vmatpush.bf16.msra.mxu0 %v425
  %548 = vmatmul.bf16.gmra.mxu0 %v293
  %v549 = vpop.f32.mrf.mxu0
  %v550 = vadd.f32 %v99, %v549
  %v551 = vpop.f32.mrf.mxu0
  %v552 = vadd.f32 %v99, %v551
  %553 = vmatmul.bf16.gmra.mxu0 %v295
  %v554 = vpop.f32.mrf.mxu0
  %v555 = vadd.f32 %v99, %v554
  %v556 = vpop.f32.mrf.mxu0
  %v557 = vadd.f32 %v99, %v556
  %558 = vmatmul.bf16.gmra.mxu0 %v297
  %v559 = vpop.f32.mrf.mxu0
  %v560 = vadd.f32 %v99, %v559
  %v561 = vpop.f32.mrf.mxu0
  %v562 = vadd.f32 %v99, %v561
  %563 = vmatmul.bf16.gmra.mxu0 %v299
  %v564 = vpop.f32.mrf.mxu0
  %v565 = vadd.f32 %v99, %v564
  %v566 = vpop.f32.mrf.mxu0
  %v567 = vadd.f32 %v99, %v566
  %568 = vmatmul.bf16.gmra.mxu0 %v301
  %v569 = vpop.f32.mrf.mxu0
  %v570 = vadd.f32 %v99, %v569
  %v571 = vpop.f32.mrf.mxu0
  %v572 = vadd.f32 %v99, %v571
  %573 = vmatmul.bf16.gmra.mxu0 %v303
  %v574 = vpop.f32.mrf.mxu0
  %v575 = vadd.f32 %v99, %v574
  %v576 = vpop.f32.mrf.mxu0
  %v577 = vadd.f32 %v99, %v576
  %578 = vmatmul.bf16.gmra.mxu0 %v305
  %v579 = vpop.f32.mrf.mxu0
  %v580 = vadd.f32 %v99, %v579
  %v581 = vpop.f32.mrf.mxu0
  %v582 = vadd.f32 %v99, %v581
  %583 = vmatmul.bf16.gmra.mxu0 %v307
  %v584 = vpop.f32.mrf.mxu0
  %v585 = vadd.f32 %v99, %v584
  %v586 = vpop.f32.mrf.mxu0
  %v587 = vadd.f32 %v99, %v586
  %588 = vmatmul.bf16.gmra.mxu0 %v309
  %v589 = vpop.f32.mrf.mxu0
  %v590 = vadd.f32 %v99, %v589
  %v591 = vpop.f32.mrf.mxu0
  %v592 = vadd.f32 %v99, %v591
  %593 = vmatmul.bf16.gmra.mxu0 %v311
  %v594 = vpop.f32.mrf.mxu0
  %v595 = vadd.f32 %v99, %v594
  %v596 = vpop.f32.mrf.mxu0
  %v597 = vadd.f32 %v99, %v596
  %598 = vmatmul.bf16.gmra.mxu0 %v313
  %v599 = vpop.f32.mrf.mxu0
  %v600 = vadd.f32 %v99, %v599
  %v601 = vpop.f32.mrf.mxu0
  %v602 = vadd.f32 %v99, %v601
  %603 = vmatmul.bf16.gmra.mxu0 %v315
  %v604 = vpop.f32.mrf.mxu0
  %v605 = vadd.f32 %v99, %v604
  %v606 = vpop.f32.mrf.mxu0
  %v607 = vadd.f32 %v99, %v606
  %608 = vmatmul.bf16.gmra.mxu0 %v317
  %v609 = vpop.f32.mrf.mxu0
  %v610 = vadd.f32 %v99, %v609
  %v611 = vpop.f32.mrf.mxu0
  %v612 = vadd.f32 %v99, %v611
  %613 = vmatmul.bf16.gmra.mxu0 %v319
  %v614 = vpop.f32.mrf.mxu0
  %v615 = vadd.f32 %v99, %v614
  %v616 = vpop.f32.mrf.mxu0
  %v617 = vadd.f32 %v99, %v616
  %618 = vmatmul.bf16.gmra.mxu0 %v321
  %v619 = vpop.f32.mrf.mxu0
  %v620 = vadd.f32 %v99, %v619
  %v621 = vpop.f32.mrf.mxu0
  %v622 = vadd.f32 %v99, %v621
  %623 = vmatmul.bf16.gmra.mxu0 %v323
  %v624 = vpop.f32.mrf.mxu0
  %v625 = vadd.f32 %v99, %v624
  %v626 = vpop.f32.mrf.mxu0
  %v627 = vadd.f32 %v99, %v626
  %628 = vmatmul.bf16.gmra.mxu0 %v325
  %v629 = vpop.f32.mrf.mxu0
  %v630 = vadd.f32 %v99, %v629
  %v631 = vpop.f32.mrf.mxu0
  %v632 = vadd.f32 %v99, %v631
  %633 = vmatmul.bf16.gmra.mxu0 %v327
  %v634 = vpop.f32.mrf.mxu0
  %v635 = vadd.f32 %v99, %v634
  %v636 = vpop.f32.mrf.mxu0
  %v637 = vadd.f32 %v99, %v636
  %638 = vmatmul.bf16.gmra.mxu0 %v329
  %v639 = vpop.f32.mrf.mxu0
  %v640 = vadd.f32 %v99, %v639
  %v641 = vpop.f32.mrf.mxu0
  %v642 = vadd.f32 %v99, %v641
  %643 = vmatmul.bf16.gmra.mxu0 %v331
  %v644 = vpop.f32.mrf.mxu0
  %v645 = vadd.f32 %v99, %v644
  %v646 = vpop.f32.mrf.mxu0
  %v647 = vadd.f32 %v99, %v646
  %648 = vmatmul.bf16.gmra.mxu0 %v333
  %v649 = vpop.f32.mrf.mxu0
  %v650 = vadd.f32 %v99, %v649
  %v651 = vpop.f32.mrf.mxu0
  %v652 = vadd.f32 %v99, %v651
  %653 = vmatmul.bf16.gmra.mxu0 %v335
  %v654 = vpop.f32.mrf.mxu0
  %v655 = vadd.f32 %v99, %v654
  %v656 = vpop.f32.mrf.mxu0
  %v657 = vadd.f32 %v99, %v656
  %658 = vmatmul.bf16.gmra.mxu0 %v337
  %v659 = vpop.f32.mrf.mxu0
  %v660 = vadd.f32 %v99, %v659
  %v661 = vpop.f32.mrf.mxu0
  %v662 = vadd.f32 %v99, %v661
  %663 = vmatmul.bf16.gmra.mxu0 %v339
  %v664 = vpop.f32.mrf.mxu0
  %v665 = vadd.f32 %v99, %v664
  %v666 = vpop.f32.mrf.mxu0
  %v667 = vadd.f32 %v99, %v666
  %668 = vmatmul.bf16.gmra.mxu0 %v341
  %v669 = vpop.f32.mrf.mxu0
  %v670 = vadd.f32 %v99, %v669
  %v671 = vpop.f32.mrf.mxu0
  %v672 = vadd.f32 %v99, %v671
  %673 = vmatmul.bf16.gmra.mxu0 %v343
  %v674 = vpop.f32.mrf.mxu0
  %v675 = vadd.f32 %v99, %v674
  %v676 = vpop.f32.mrf.mxu0
  %v677 = vadd.f32 %v99, %v676
  %678 = vmatmul.bf16.gmra.mxu0 %v345
  %v679 = vpop.f32.mrf.mxu0
  %v680 = vadd.f32 %v99, %v679
  %v681 = vpop.f32.mrf.mxu0
  %v682 = vadd.f32 %v99, %v681
  %683 = vmatmul.bf16.gmra.mxu0 %v347
  %v684 = vpop.f32.mrf.mxu0
  %v685 = vadd.f32 %v99, %v684
  %v686 = vpop.f32.mrf.mxu0
  %v687 = vadd.f32 %v99, %v686
  %688 = vmatmul.bf16.gmra.mxu0 %v349
  %v689 = vpop.f32.mrf.mxu0
  %v690 = vadd.f32 %v99, %v689
  %v691 = vpop.f32.mrf.mxu0
  %v692 = vadd.f32 %v99, %v691
  %693 = vmatmul.bf16.gmra.mxu0 %v351
  %v694 = vpop.f32.mrf.mxu0
  %v695 = vadd.f32 %v99, %v694
  %v696 = vpop.f32.mrf.mxu0
  %v697 = vadd.f32 %v99, %v696
  %698 = vmatmul.bf16.gmra.mxu0 %v353
  %v699 = vpop.f32.mrf.mxu0
  %v700 = vadd.f32 %v99, %v699
  %v701 = vpop.f32.mrf.mxu0
  %v702 = vadd.f32 %v99, %v701
  %703 = vmatmul.bf16.gmra.mxu0 %v355
  %v704 = vpop.f32.mrf.mxu0
  %v705 = vadd.f32 %v99, %v704
  %v706 = vpop.f32.mrf.mxu0
  %v707 = vadd.f32 %v99, %v706
  %708 = vdwg.mxu0
  %709 = vmatpush.bf16.msra.mxu0 0
  %710 = vmatpush.bf16.msra.mxu0 0
  %711 = vmatpush.bf16.msra.mxu0 0
  %712 = vmatpush.bf16.msra.mxu0 0
  %713 = vmatpush.bf16.msra.mxu0 0
  %714 = vmatpush.bf16.msra.mxu0 0
  %715 = vmatpush.bf16.msra.mxu0 0
  %716 = vmatpush.bf16.msra.mxu0 %v433
  %717 = vmatmul.bf16.gmra.mxu0 %v445
  %v718 = vpop.f32.mrf.mxu0
  %v719 = vadd.f32 %v550, %v718
  %v720 = vpop.f32.mrf.mxu0
  %v721 = vadd.f32 %v552, %v720
  %722 = vmatmul.bf16.gmra.mxu0 %v448
  %v723 = vpop.f32.mrf.mxu0
  %v724 = vadd.f32 %v555, %v723
  %v725 = vpop.f32.mrf.mxu0
  %v726 = vadd.f32 %v557, %v725
  %727 = vmatmul.bf16.gmra.mxu0 %v451
  %v728 = vpop.f32.mrf.mxu0
  %v729 = vadd.f32 %v560, %v728
  %v730 = vpop.f32.mrf.mxu0
  %v731 = vadd.f32 %v562, %v730
  %732 = vmatmul.bf16.gmra.mxu0 %v454
  %v733 = vpop.f32.mrf.mxu0
  %v734 = vadd.f32 %v565, %v733
  %v735 = vpop.f32.mrf.mxu0
  %v736 = vadd.f32 %v567, %v735
  %737 = vmatmul.bf16.gmra.mxu0 %v457
  %v738 = vpop.f32.mrf.mxu0
  %v739 = vadd.f32 %v570, %v738
  %v740 = vpop.f32.mrf.mxu0
  %v741 = vadd.f32 %v572, %v740
  %742 = vmatmul.bf16.gmra.mxu0 %v460
  %v743 = vpop.f32.mrf.mxu0
  %v744 = vadd.f32 %v575, %v743
  %v745 = vpop.f32.mrf.mxu0
  %v746 = vadd.f32 %v577, %v745
  %747 = vmatmul.bf16.gmra.mxu0 %v463
  %v748 = vpop.f32.mrf.mxu0
  %v749 = vadd.f32 %v580, %v748
  %v750 = vpop.f32.mrf.mxu0
  %v751 = vadd.f32 %v582, %v750
  %752 = vmatmul.bf16.gmra.mxu0 %v466
  %v753 = vpop.f32.mrf.mxu0
  %v754 = vadd.f32 %v585, %v753
  %v755 = vpop.f32.mrf.mxu0
  %v756 = vadd.f32 %v587, %v755
  %757 = vmatmul.bf16.gmra.mxu0 %v469
  %v758 = vpop.f32.mrf.mxu0
  %v759 = vadd.f32 %v590, %v758
  %v760 = vpop.f32.mrf.mxu0
  %v761 = vadd.f32 %v592, %v760
  %762 = vmatmul.bf16.gmra.mxu0 %v472
  %v763 = vpop.f32.mrf.mxu0
  %v764 = vadd.f32 %v595, %v763
  %v765 = vpop.f32.mrf.mxu0
  %v766 = vadd.f32 %v597, %v765
  %767 = vmatmul.bf16.gmra.mxu0 %v475
  %v768 = vpop.f32.mrf.mxu0
  %v769 = vadd.f32 %v600, %v768
  %v770 = vpop.f32.mrf.mxu0
  %v771 = vadd.f32 %v602, %v770
  %772 = vmatmul.bf16.gmra.mxu0 %v478
  %v773 = vpop.f32.mrf.mxu0
  %v774 = vadd.f32 %v605, %v773
  %v775 = vpop.f32.mrf.mxu0
  %v776 = vadd.f32 %v607, %v775
  %777 = vmatmul.bf16.gmra.mxu0 %v481
  %v778 = vpop.f32.mrf.mxu0
  %v779 = vadd.f32 %v610, %v778
  %v780 = vpop.f32.mrf.mxu0
  %v781 = vadd.f32 %v612, %v780
  %782 = vmatmul.bf16.gmra.mxu0 %v484
  %v783 = vpop.f32.mrf.mxu0
  %v784 = vadd.f32 %v615, %v783
  %v785 = vpop.f32.mrf.mxu0
  %v786 = vadd.f32 %v617, %v785
  %787 = vmatmul.bf16.gmra.mxu0 %v487
  %v788 = vpop.f32.mrf.mxu0
  %v789 = vadd.f32 %v620, %v788
  %v790 = vpop.f32.mrf.mxu0
  %v791 = vadd.f32 %v622, %v790
  %792 = vmatmul.bf16.gmra.mxu0 %v490
  %v793 = vpop.f32.mrf.mxu0
  %v794 = vadd.f32 %v625, %v793
  %v795 = vpop.f32.mrf.mxu0
  %v796 = vadd.f32 %v627, %v795
  %797 = vmatmul.bf16.gmra.mxu0 %v493
  %v798 = vpop.f32.mrf.mxu0
  %v799 = vadd.f32 %v630, %v798
  %v800 = vpop.f32.mrf.mxu0
  %v801 = vadd.f32 %v632, %v800
  %802 = vmatmul.bf16.gmra.mxu0 %v496
  %v803 = vpop.f32.mrf.mxu0
  %v804 = vadd.f32 %v635, %v803
  %v805 = vpop.f32.mrf.mxu0
  %v806 = vadd.f32 %v637, %v805
  %807 = vmatmul.bf16.gmra.mxu0 %v499
  %v808 = vpop.f32.mrf.mxu0
  %v809 = vadd.f32 %v640, %v808
  %v810 = vpop.f32.mrf.mxu0
  %v811 = vadd.f32 %v642, %v810
  %812 = vmatmul.bf16.gmra.mxu0 %v502
  %v813 = vpop.f32.mrf.mxu0
  %v814 = vadd.f32 %v645, %v813
  %v815 = vpop.f32.mrf.mxu0
  %v816 = vadd.f32 %v647, %v815
  %817 = vmatmul.bf16.gmra.mxu0 %v505
  %v818 = vpop.f32.mrf.mxu0
  %v819 = vadd.f32 %v650, %v818
  %v820 = vpop.f32.mrf.mxu0
  %v821 = vadd.f32 %v652, %v820
  %822 = vmatmul.bf16.gmra.mxu0 %v508
  %v823 = vpop.f32.mrf.mxu0
  %v824 = vadd.f32 %v655, %v823
  %v825 = vpop.f32.mrf.mxu0
  %v826 = vadd.f32 %v657, %v825
  %827 = vmatmul.bf16.gmra.mxu0 %v511
  %v828 = vpop.f32.mrf.mxu0
  %v829 = vadd.f32 %v660, %v828
  %v830 = vpop.f32.mrf.mxu0
  %v831 = vadd.f32 %v662, %v830
  %832 = vmatmul.bf16.gmra.mxu0 %v514
  %v833 = vpop.f32.mrf.mxu0
  %v834 = vadd.f32 %v665, %v833
  %v835 = vpop.f32.mrf.mxu0
  %v836 = vadd.f32 %v667, %v835
  %837 = vmatmul.bf16.gmra.mxu0 %v517
  %v838 = vpop.f32.mrf.mxu0
  %v839 = vadd.f32 %v670, %v838
  %v840 = vpop.f32.mrf.mxu0
  %v841 = vadd.f32 %v672, %v840
  %842 = vmatmul.bf16.gmra.mxu0 %v520
  %v843 = vpop.f32.mrf.mxu0
  %v844 = vadd.f32 %v675, %v843
  %v845 = vpop.f32.mrf.mxu0
  %v846 = vadd.f32 %v677, %v845
  %847 = vmatmul.bf16.gmra.mxu0 %v523
  %v848 = vpop.f32.mrf.mxu0
  %v849 = vadd.f32 %v680, %v848
  %v850 = vpop.f32.mrf.mxu0
  %v851 = vadd.f32 %v682, %v850
  %852 = vmatmul.bf16.gmra.mxu0 %v526
  %v853 = vpop.f32.mrf.mxu0
  %v854 = vadd.f32 %v685, %v853
  %v855 = vpop.f32.mrf.mxu0
  %v856 = vadd.f32 %v687, %v855
  %857 = vmatmul.bf16.gmra.mxu0 %v529
  %v858 = vpop.f32.mrf.mxu0
  %v859 = vadd.f32 %v690, %v858
  %v860 = vpop.f32.mrf.mxu0
  %v861 = vadd.f32 %v692, %v860
  %862 = vmatmul.bf16.gmra.mxu0 %v532
  %v863 = vpop.f32.mrf.mxu0
  %v864 = vadd.f32 %v695, %v863
  %v865 = vpop.f32.mrf.mxu0
  %v866 = vadd.f32 %v697, %v865
  %867 = vmatmul.bf16.gmra.mxu0 %v535
  %v868 = vpop.f32.mrf.mxu0
  %v869 = vadd.f32 %v700, %v868
  %v870 = vpop.f32.mrf.mxu0
  %v871 = vadd.f32 %v702, %v870
  %872 = vmatmul.bf16.gmra.mxu0 %v538
  %v873 = vpop.f32.mrf.mxu0
  %v874 = vadd.f32 %v705, %v873
  %v875 = vpop.f32.mrf.mxu0
  %v876 = vadd.f32 %v707, %v875
  %877 = vdwg.mxu0
  %878 = vst.msk [vmem:[%s3] sm:$0xff] %vm443, %v719
  %879 = vst.msk [vmem:[%s3 + $0x8] sm:$0xff] %vm443, %v721
  %880 = vst.msk [vmem:[%s3 + $0x10] sm:$0xff] %vm443, %v724
  %881 = vst.msk [vmem:[%s3 + $0x18] sm:$0xff] %vm443, %v726
  %882 = vst.msk [vmem:[%s3 + $0x20] sm:$0xff] %vm443, %v729
  %883 = vst.msk [vmem:[%s3 + $0x28] sm:$0xff] %vm443, %v731
  %884 = vst.msk [vmem:[%s3 + $0x30] sm:$0xff] %vm443, %v734
  %885 = vst.msk [vmem:[%s3 + $0x38] sm:$0xff] %vm443, %v736
  %886 = vst.msk [vmem:[%s3 + $0x40] sm:$0xff] %vm443, %v739
  %887 = vst.msk [vmem:[%s3 + $0x48] sm:$0xff] %vm443, %v741
  %888 = vst.msk [vmem:[%s3 + $0x50] sm:$0xff] %vm443, %v744
  %889 = vst.msk [vmem:[%s3 + $0x58] sm:$0xff] %vm443, %v746
  %890 = vst.msk [vmem:[%s3 + $0x60] sm:$0xff] %vm443, %v749
  %891 = vst.msk [vmem:[%s3 + $0x68] sm:$0xff] %vm443, %v751
  %892 = vst.msk [vmem:[%s3 + $0x70] sm:$0xff] %vm443, %v754
  %893 = vst.msk [vmem:[%s3 + $0x78] sm:$0xff] %vm443, %v756
  %894 = vst.msk [vmem:[%s3 + $0x80] sm:$0xff] %vm443, %v759
  %895 = vst.msk [vmem:[%s3 + $0x88] sm:$0xff] %vm443, %v761
  %896 = vst.msk [vmem:[%s3 + $0x90] sm:$0xff] %vm443, %v764
  %897 = vst.msk [vmem:[%s3 + $0x98] sm:$0xff] %vm443, %v766
  %898 = vst.msk [vmem:[%s3 + $0xa0] sm:$0xff] %vm443, %v769
  %899 = vst.msk [vmem:[%s3 + $0xa8] sm:$0xff] %vm443, %v771
  %900 = vst.msk [vmem:[%s3 + $0xb0] sm:$0xff] %vm443, %v774
  %901 = vst.msk [vmem:[%s3 + $0xb8] sm:$0xff] %vm443, %v776
  %902 = vst.msk [vmem:[%s3 + $0xc0] sm:$0xff] %vm443, %v779
  %903 = vst.msk [vmem:[%s3 + $0xc8] sm:$0xff] %vm443, %v781
  %904 = vst.msk [vmem:[%s3 + $0xd0] sm:$0xff] %vm443, %v784
  %905 = vst.msk [vmem:[%s3 + $0xd8] sm:$0xff] %vm443, %v786
  %906 = vst.msk [vmem:[%s3 + $0xe0] sm:$0xff] %vm443, %v789
  %907 = vst.msk [vmem:[%s3 + $0xe8] sm:$0xff] %vm443, %v791
  %908 = vst.msk [vmem:[%s3 + $0xf0] sm:$0xff] %vm443, %v794
  %909 = vst.msk [vmem:[%s3 + $0xf8] sm:$0xff] %vm443, %v796
  %910 = vst.msk [vmem:[%s3 + $0x100] sm:$0xff] %vm443, %v799
  %911 = vst.msk [vmem:[%s3 + $0x108] sm:$0xff] %vm443, %v801
  %912 = vst.msk [vmem:[%s3 + $0x110] sm:$0xff] %vm443, %v804
  %913 = vst.msk [vmem:[%s3 + $0x118] sm:$0xff] %vm443, %v806
  %914 = vst.msk [vmem:[%s3 + $0x120] sm:$0xff] %vm443, %v809
  %915 = vst.msk [vmem:[%s3 + $0x128] sm:$0xff] %vm443, %v811
  %916 = vst.msk [vmem:[%s3 + $0x130] sm:$0xff] %vm443, %v814
  %917 = vst.msk [vmem:[%s3 + $0x138] sm:$0xff] %vm443, %v816
  %918 = vst.msk [vmem:[%s3 + $0x140] sm:$0xff] %vm443, %v819
  %919 = vst.msk [vmem:[%s3 + $0x148] sm:$0xff] %vm443, %v821
  %920 = vst.msk [vmem:[%s3 + $0x150] sm:$0xff] %vm443, %v824
  %921 = vst.msk [vmem:[%s3 + $0x158] sm:$0xff] %vm443, %v826
  %922 = vst.msk [vmem:[%s3 + $0x160] sm:$0xff] %vm443, %v829
  %923 = vst.msk [vmem:[%s3 + $0x168] sm:$0xff] %vm443, %v831
  %924 = vst.msk [vmem:[%s3 + $0x170] sm:$0xff] %vm443, %v834
  %925 = vst.msk [vmem:[%s3 + $0x178] sm:$0xff] %vm443, %v836
  %926 = vst.msk [vmem:[%s3 + $0x180] sm:$0xff] %vm443, %v839
  %927 = vst.msk [vmem:[%s3 + $0x188] sm:$0xff] %vm443, %v841
  %928 = vst.msk [vmem:[%s3 + $0x190] sm:$0xff] %vm443, %v844
  %929 = vst.msk [vmem:[%s3 + $0x198] sm:$0xff] %vm443, %v846
  %930 = vst.msk [vmem:[%s3 + $0x1a0] sm:$0xff] %vm443, %v849
  %931 = vst.msk [vmem:[%s3 + $0x1a8] sm:$0xff] %vm443, %v851
  %932 = vst.msk [vmem:[%s3 + $0x1b0] sm:$0xff] %vm443, %v854
  %933 = vst.msk [vmem:[%s3 + $0x1b8] sm:$0xff] %vm443, %v856
  %934 = vst.msk [vmem:[%s3 + $0x1c0] sm:$0xff] %vm443, %v859
  %935 = vst.msk [vmem:[%s3 + $0x1c8] sm:$0xff] %vm443, %v861
  %936 = vst.msk [vmem:[%s3 + $0x1d0] sm:$0xff] %vm443, %v864
  %937 = vst.msk [vmem:[%s3 + $0x1d8] sm:$0xff] %vm443, %v866
  %938 = vst.msk [vmem:[%s3 + $0x1e0] sm:$0xff] %vm443, %v869
  %939 = vst.msk [vmem:[%s3 + $0x1e8] sm:$0xff] %vm443, %v871
  %940 = vst.msk [vmem:[%s3 + $0x1f0] sm:$0xff] %vm443, %v874
  %941 = vst.msk [vmem:[%s3 + $0x1f8] sm:$0xff] %vm443, %v876
  // Predicated region
  $region14: #{kfcos_net.20} parent=0 // pred_check
    _
  $region15: #{kfcos_net.20} parent=0 // pred_check_branch
    %943 = sbr.rel (0) target = $region17
  $region16: #{kfcos_net.20} parent=0 // pred_region
    _
  $region17: #{kfcos_net.20} parent=0 // pred_fallthru
    _
  // Predicated region
  $region18: #{kfcos_net.20} parent=0 // pred_check
    _
  $region19: #{kfcos_net.20} parent=0 // pred_check_branch
    %945 = sbr.rel (0) target = $region21
  $region20: #{kfcos_net.20} parent=0 // pred_region
    _
  $region21: #{kfcos_net.20} parent=0 // pred_fallthru
    _

// kernel: kfcos_net.25
$region0: #{kfcos_net.25}
  #allocation0 [shape = 'u32[]', space=smem, size = 0x4, offset = 0x4, fixed_abs, tag = 'smem constant byte address 0x4 - core index']
  #allocation1 [shape = 'u32[72,128]{1,0:T(1,128)}', space=vmem, size = 0x9000, scoped, tag = 'internal scratch']
  #allocation2 [shape = 's32[1]{0}', space=sflag, size = 0x4, scoped, tag = 'scoped memory for kfcos_net.25']
  #allocation3 [shape = 'u8[512]{0}', space=smem, size = 0x200, scoped, tag = 'prefetched SMEM operand 0']
  %s0 = inlined_call_operand.vmem [shape: s32[6], index: 0, kind: input, shape index: {}]
  %s1 = inlined_call_operand.vmem [shape: bf16[1536,144], index: 1, kind: input, shape index: {}]
  %s2 = inlined_call_operand.vmem [shape: bf16[5,144,32], index: 2, kind: input, shape index: {}]
  %s3 = inlined_call_operand.vmem [shape: f32[5,1,32], index: 3, kind: input, shape index: {}]
  %s4 = inlined_call_operand.vmem [shape: bf16[5,32,128], index: 4, kind: input, shape index: {}]
  %s5 = inlined_call_operand.vmem [shape: f32[5,1,128], index: 5, kind: input, shape index: {}]
  %s6 = inlined_call_operand.vmem [shape: f32[1536,128], index: 6, kind: output, shape index: {}]
  %s7 = sld [smem:[#allocation0]]
  $region53: #{kfcos_net.25} parent=0
    _
  %s9 = ssub.s32 1, %s7
  %s10 = scalar_select 0, %s9, %s7
  %s12 = sshll.u32 %s0, 4
  %s13 = int_to_ptr.vmem [resolvable:$true] %s12
  %15 = dma.vmem_to_smem %s13, 16, [#allocation3], [#allocation2]
  %17 = dma.done [#allocation2], 16
  %18 = sfence
  loop: start=0, step=1, limit=8
  $region2: #{kfcos_net.25} parent=0 // loop_pre_header
    _
  $region3: #{kfcos_net.25} parent=0 // loop_header
    %s20 = sphi 0, %s24
    %p21 = scmp.ge.s32.totalorder %s20, 8
    %s30 = sphi 0, %s32
    %s33 = sphi 0, %s30
    %s34 = sphi 0, %s33
    %s50 = sphi 0, %s34
    %s58 = sphi 0, %s60
    %s61 = sphi 0, %s58
    %s62 = sphi 0, %s61
    %s78 = sphi 0, %s62
    %s86 = sphi 0, %s88
    %s89 = sphi 0, %s86
    %s90 = sphi 0, %s89
    %s106 = sphi 0, %s90
    %s114 = sphi 0, %s116
    %s117 = sphi 0, %s114
    %s118 = sphi 0, %s117
    %s134 = sphi 0, %s118
    %s142 = sphi 0, %s144
    %s145 = sphi 0, %s142
    %s146 = sphi 0, %s145
    %s162 = sphi 0, %s146
    %s168 = sphi 0, %s170
    %s171 = sphi 0, %s168
    %s172 = sphi 0, %s171
    %s188 = sphi 0, %s172
  $region4: #{kfcos_net.25} parent=0 // loop_header_branch
    %23 = sbr.rel (%p21) target = $region8
  $region5: #{kfcos_net.25} parent=0 // loop_body
    %s25 = ssub.s32 %s20, 1
    %s26 = ssub.s32 %s20, 2
    %s27 = sadd.s32 %s20, 1
    %s28 = ssub.s32 %s20, %s27
    %p29 = scmp.eq.s32.totalorder %s28, 0
    %s31 = sadd.s32 %s30, 1
    %s32 = scalar_select %p29, %s30, %s31
    %p35 = pneg %p29
    %p36 = scmp.eq.s32.totalorder %s20, 5
    %p37 = por %p35, %p36
    %p38 = scmp.ne.s32.totalorder %s30, %s33
    %p39 = scmp.eq.s32.totalorder %s20, 0
    %p40 = por %p38, %p39
    %p41 = scmp.ne.s32.totalorder %s30, %s33
    %p42 = scmp.eq.s32.totalorder %s25, 5
    %p43 = por %p41, %p42
    %p44 = scmp.ne.s32.totalorder %s33, %s34
    %p45 = scmp.eq.s32.totalorder %s25, 0
    %p46 = por %p44, %p45
    %p47 = scmp.ne.s32.totalorder %s33, %s34
    %p48 = scmp.eq.s32.totalorder %s26, 5
    %p49 = por %p47, %p48
    %p51 = scmp.ne.s32.totalorder %s34, %s50
    %p52 = scmp.eq.s32.totalorder %s26, 0
    %p53 = por %p51, %p52
    %s54 = sld [smem:[#allocation3 + %s20]]
    %s55 = sld [smem:[#allocation3 + %s27]]
    %s56 = ssub.s32 %s54, %s55
    %p57 = scmp.eq.s32.totalorder %s56, 0
    %s59 = sadd.s32 %s58, 1
    %s60 = scalar_select %p57, %s58, %s59
    %p63 = pneg %p57
    %p64 = scmp.eq.s32.totalorder %s20, 5
    %p65 = por %p63, %p64
    %p66 = scmp.ne.s32.totalorder %s58, %s61
    %p67 = scmp.eq.s32.totalorder %s20, 0
    %p68 = por %p66, %p67
    %p69 = scmp.ne.s32.totalorder %s58, %s61
    %p70 = scmp.eq.s32.totalorder %s25, 5
    %p71 = por %p69, %p70
    %p72 = scmp.ne.s32.totalorder %s61, %s62
    %p73 = scmp.eq.s32.totalorder %s25, 0
    %p74 = por %p72, %p73
    %p75 = scmp.ne.s32.totalorder %s61, %s62
    %p76 = scmp.eq.s32.totalorder %s26, 5
    %p77 = por %p75, %p76
    %p79 = scmp.ne.s32.totalorder %s62, %s78
    %p80 = scmp.eq.s32.totalorder %s26, 0
    %p81 = por %p79, %p80
    %s82 = sld [smem:[#allocation3 + %s20]]
    %s83 = sld [smem:[#allocation3 + %s27]]
    %s84 = ssub.s32 %s82, %s83
    %p85 = scmp.eq.s32.totalorder %s84, 0
    %s87 = sadd.s32 %s86, 1
    %s88 = scalar_select %p85, %s86, %s87
    %p91 = pneg %p85
    %p92 = scmp.eq.s32.totalorder %s20, 5
    %p93 = por %p91, %p92
    %p94 = scmp.ne.s32.totalorder %s86, %s89
    %p95 = scmp.eq.s32.totalorder %s20, 0
    %p96 = por %p94, %p95
    %p97 = scmp.ne.s32.totalorder %s86, %s89
    %p98 = scmp.eq.s32.totalorder %s25, 5
    %p99 = por %p97, %p98
    %p100 = scmp.ne.s32.totalorder %s89, %s90
    %p101 = scmp.eq.s32.totalorder %s25, 0
    %p102 = por %p100, %p101
    %p103 = scmp.ne.s32.totalorder %s89, %s90
    %p104 = scmp.eq.s32.totalorder %s26, 5
    %p105 = por %p103, %p104
    %p107 = scmp.ne.s32.totalorder %s90, %s106
    %p108 = scmp.eq.s32.totalorder %s26, 0
    %p109 = por %p107, %p108
    %s110 = sld [smem:[#allocation3 + %s20]]
    %s111 = sld [smem:[#allocation3 + %s27]]
    %s112 = ssub.s32 %s110, %s111
    %p113 = scmp.eq.s32.totalorder %s112, 0
    %s115 = sadd.s32 %s114, 1
    %s116 = scalar_select %p113, %s114, %s115
    %p119 = pneg %p113
    %p120 = scmp.eq.s32.totalorder %s20, 5
    %p121 = por %p119, %p120
    %p122 = scmp.ne.s32.totalorder %s114, %s117
    %p123 = scmp.eq.s32.totalorder %s20, 0
    %p124 = por %p122, %p123
    %p125 = scmp.ne.s32.totalorder %s114, %s117
    %p126 = scmp.eq.s32.totalorder %s25, 5
    %p127 = por %p125, %p126
    %p128 = scmp.ne.s32.totalorder %s117, %s118
    %p129 = scmp.eq.s32.totalorder %s25, 0
    %p130 = por %p128, %p129
    %p131 = scmp.ne.s32.totalorder %s117, %s118
    %p132 = scmp.eq.s32.totalorder %s26, 5
    %p133 = por %p131, %p132
    %p135 = scmp.ne.s32.totalorder %s118, %s134
    %p136 = scmp.eq.s32.totalorder %s26, 0
    %p137 = por %p135, %p136
    %s138 = sld [smem:[#allocation3 + %s20]]
    %s139 = sld [smem:[#allocation3 + %s27]]
    %s140 = ssub.s32 %s138, %s139
    %p141 = scmp.eq.s32.totalorder %s140, 0
    %s143 = sadd.s32 %s142, 1
    %s144 = scalar_select %p141, %s142, %s143
    %p147 = pneg %p141
    %p148 = scmp.eq.s32.totalorder %s20, 5
    %p149 = por %p147, %p148
    %p150 = scmp.ne.s32.totalorder %s142, %s145
    %p151 = scmp.eq.s32.totalorder %s20, 0
    %p152 = por %p150, %p151
    %p153 = scmp.ne.s32.totalorder %s142, %s145
    %p154 = scmp.eq.s32.totalorder %s25, 5
    %p155 = por %p153, %p154
    %p156 = scmp.ne.s32.totalorder %s145, %s146
    %p157 = scmp.eq.s32.totalorder %s25, 0
    %p158 = por %p156, %p157
    %p159 = scmp.ne.s32.totalorder %s145, %s146
    %p160 = scmp.eq.s32.totalorder %s26, 5
    %p161 = por %p159, %p160
    %p163 = scmp.ne.s32.totalorder %s146, %s162
    %p164 = scmp.eq.s32.totalorder %s26, 0
    %p165 = por %p163, %p164
    %s166 = ssub.s32 %s20, %s27
    %p167 = scmp.eq.s32.totalorder %s166, 0
    %s169 = sadd.s32 %s168, 1
    %s170 = scalar_select %p167, %s168, %s169
    %p173 = pneg %p167
    %p174 = scmp.eq.s32.totalorder %s20, 5
    %p175 = por %p173, %p174
    %p176 = scmp.ne.s32.totalorder %s168, %s171
    %p177 = scmp.eq.s32.totalorder %s20, 0
    %p178 = por %p176, %p177
    %p179 = scmp.ne.s32.totalorder %s168, %s171
    %p180 = scmp.eq.s32.totalorder %s25, 5
    %p181 = por %p179, %p180
    %p182 = scmp.ne.s32.totalorder %s171, %s172
    %p183 = scmp.eq.s32.totalorder %s25, 0
    %p184 = por %p182, %p183
    %p185 = scmp.ne.s32.totalorder %s171, %s172
    %p186 = scmp.eq.s32.totalorder %s26, 5
    %p187 = por %p185, %p186
    %p189 = scmp.ne.s32.totalorder %s172, %s188
    %p190 = scmp.eq.s32.totalorder %s26, 0
    %p191 = por %p189, %p190
    %p192 = scmp.le.s32.totalorder 1, %s20
    %p193 = scmp.lt.s32.totalorder %s20, 7
    %p194 = pnand %p192, %p193
    %p195 = pneg %p194
    // Predicated region
    $region9: #{kfcos_net.25} parent=5 // pred_check
      _
    $region10: #{kfcos_net.25} parent=5 // pred_check_branch
      %197 = sbr.rel (%p194) target = $region12
    $region11: #{kfcos_net.25} parent=5 // pred_region
      %s198 = ssub.s32 %s20, 1
    $region12: #{kfcos_net.25} parent=5 // pred_fallthru
      _
    %p199 = scmp.lt.s32.totalorder %s20, 6
    // Predicated region
    $region13: #{kfcos_net.25} parent=5 // pred_check
      %p200 = pneg %p199
    $region14: #{kfcos_net.25} parent=5 // pred_check_branch
      %202 = sbr.rel (%p200) target = $region16
    $region15: #{kfcos_net.25} parent=5 // pred_region
      // Predicated region
      $region17: #{kfcos_net.25} parent=15 // pred_check
        %p203 = pneg %p40
      $region18: #{kfcos_net.25} parent=15 // pred_check_branch
        %205 = sbr.rel (%p203) target = $region20
      $region19: #{kfcos_net.25} parent=15 // pred_region
        %s206 = smul.u32 32, %s20
        %p207 = scmp.lt.s32.totalorder %s206, 191
        %s208 = scalar_select %p207, %s206, 191
        %s209 = smul.addr %s208, 2
        %s210 = smul.addr %s209, 4
        %s211 = scalar_lea.vmem %s1, %s210
        %s212 = smul.u32 32, %s20
      $region20: #{kfcos_net.25} parent=15 // pred_fallthru
        _
      // Predicated region
      $region21: #{kfcos_net.25} parent=15 // pred_check
        %p213 = pneg %p68
      $region22: #{kfcos_net.25} parent=15 // pred_check_branch
        %215 = sbr.rel (%p213) target = $region24
      $region23: #{kfcos_net.25} parent=15 // pred_region
        %s216 = sld [smem:[#allocation3 + %s20]]
        %p217 = scmp.lt.s32.totalorder %s216, 4
        %s218 = scalar_select %p217, %s216, 4
        %s219 = smul.addr %s218, 18
        %s220 = smul.addr %s219, 4
        %s221 = scalar_lea.vmem %s2, %s220
        %s222 = sld [smem:[#allocation3 + %s20]]
      $region24: #{kfcos_net.25} parent=15 // pred_fallthru
        _
      // Predicated region
      $region25: #{kfcos_net.25} parent=15 // pred_check
        %p223 = pneg %p96
      $region26: #{kfcos_net.25} parent=15 // pred_check_branch
        %225 = sbr.rel (%p223) target = $region28
      $region27: #{kfcos_net.25} parent=15 // pred_region
        %s226 = sld [smem:[#allocation3 + %s20]]
        %p227 = scmp.lt.s32.totalorder %s226, 4
        %s228 = scalar_select %p227, %s226, 4
        %s229 = scalar_lea.vmem %s3, %s228
        %s230 = sld [smem:[#allocation3 + %s20]]
      $region28: #{kfcos_net.25} parent=15 // pred_fallthru
        _
      // Predicated region
      $region29: #{kfcos_net.25} parent=15 // pred_check
        %p231 = pneg %p124
      $region30: #{kfcos_net.25} parent=15 // pred_check_branch
        %233 = sbr.rel (%p231) target = $region32
      $region31: #{kfcos_net.25} parent=15 // pred_region
        %s234 = sld [smem:[#allocation3 + %s20]]
        %p235 = scmp.lt.s32.totalorder %s234, 4
        %s236 = scalar_select %p235, %s234, 4
        %s237 = smul.addr %s236, 4
        %s238 = smul.addr %s237, 4
        %s239 = scalar_lea.vmem %s4, %s238
        %s240 = sld [smem:[#allocation3 + %s20]]
      $region32: #{kfcos_net.25} parent=15 // pred_fallthru
        _
      // Predicated region
      $region33: #{kfcos_net.25} parent=15 // pred_check
        %p241 = pneg %p152
      $region34: #{kfcos_net.25} parent=15 // pred_check_branch
        %243 = sbr.rel (%p241) target = $region36
      $region35: #{kfcos_net.25} parent=15 // pred_region
        %s244 = sld [smem:[#allocation3 + %s20]]
        %p245 = scmp.lt.s32.totalorder %s244, 4
        %s246 = scalar_select %p245, %s244, 4
        %s247 = scalar_lea.vmem %s5, %s246
        %s248 = sld [smem:[#allocation3 + %s20]]
      $region36: #{kfcos_net.25} parent=15 // pred_fallthru
        _
    $region16: #{kfcos_net.25} parent=5 // pred_fallthru
      _
    %p249 = scmp.le.s32.totalorder 1, %s20
    %p250 = scmp.lt.s32.totalorder %s20, 7
    %p251 = pnand %p249, %p250
    %p252 = pneg %p251
    // Predicated region
    $region37: #{kfcos_net.25} parent=5 // pred_check
      _
    $region38: #{kfcos_net.25} parent=5 // pred_check_branch
      %254 = sbr.rel (%p251) target = $region40
    $region39: #{kfcos_net.25} parent=5 // pred_region
      %s255 = ssub.s32 %s20, 1
      %s256 = smul.u32 32, %s25
      %p257 = scmp.lt.s32.totalorder %s256, 191
      %s258 = scalar_select %p257, %s256, 191
      %s259 = smul.addr %s258, 2
      %s260 = smul.addr %s259, 4
      %s261 = scalar_lea.vmem %s1, %s260
      %p262 = pneg %p46
      %p263 = pneg %p43
      %s264 = sld [smem:[#allocation3 + %s25]]
      %p265 = scmp.lt.s32.totalorder %s264, 4
      %s266 = scalar_select %p265, %s264, 4
      %s267 = smul.addr %s266, 18
      %s268 = smul.addr %s267, 4
      %s269 = scalar_lea.vmem %s2, %s268
      %p270 = pneg %p74
      %p271 = pneg %p71
      %s272 = sld [smem:[#allocation3 + %s25]]
      %p273 = scmp.lt.s32.totalorder %s272, 4
      %s274 = scalar_select %p273, %s272, 4
      %s275 = scalar_lea.vmem %s3, %s274
      %p276 = pneg %p102
      %p277 = pneg %p99
      %s278 = sld [smem:[#allocation3 + %s25]]
      %p279 = scmp.lt.s32.totalorder %s278, 4
      %s280 = scalar_select %p279, %s278, 4
      %s281 = smul.addr %s280, 4
      %s282 = smul.addr %s281, 4
      %s283 = scalar_lea.vmem %s4, %s282
      %p284 = pneg %p130
      %p285 = pneg %p127
      %s286 = sld [smem:[#allocation3 + %s25]]
      %p287 = scmp.lt.s32.totalorder %s286, 4
      %s288 = scalar_select %p287, %s286, 4
      %s289 = scalar_lea.vmem %s5, %s288
      %p290 = pneg %p158
      %p291 = pneg %p155
      %p292 = pneg %p184
      %p293 = pneg %p181
      %s294 = smul.u32 32, %s25
      %p295 = scmp.lt.s32.totalorder %s294, 191
      %s296 = scalar_select %p295, %s294, 191
      %s297 = smul.addr %s296, 8
      %s298 = scalar_lea.vmem %s6, %s297
      %s299 = smul.u32 32, %s25
      %p300 = scmp.lt.s32.totalorder %s299, 191
      %s301 = scalar_select %p300, %s299, 191
      %s302 = smul.addr %s301, 2
      %s303 = smul.addr %s302, 4
      %s304 = scalar_lea.vmem %s1, %s303
      %s305 = smul.u32 32, %s25
      %s306 = sld [smem:[#allocation3 + %s25]]
      %p307 = scmp.lt.s32.totalorder %s306, 4
      %s308 = scalar_select %p307, %s306, 4
      %s309 = smul.addr %s308, 18
      %s310 = smul.addr %s309, 4
      %s311 = scalar_lea.vmem %s2, %s310
      %s312 = sld [smem:[#allocation3 + %s25]]
      %s313 = sld [smem:[#allocation3 + %s25]]
      %p314 = scmp.lt.s32.totalorder %s313, 4
      %s315 = scalar_select %p314, %s313, 4
      %s316 = scalar_lea.vmem %s3, %s315
      %s317 = sld [smem:[#allocation3 + %s25]]
      %s318 = sld [smem:[#allocation3 + %s25]]
      %p319 = scmp.lt.s32.totalorder %s318, 4
      %s320 = scalar_select %p319, %s318, 4
      %s321 = smul.addr %s320, 4
      %s322 = smul.addr %s321, 4
      %s323 = scalar_lea.vmem %s4, %s322
      %s324 = sld [smem:[#allocation3 + %s25]]
      %s325 = sld [smem:[#allocation3 + %s25]]
      %p326 = scmp.lt.s32.totalorder %s325, 4
      %s327 = scalar_select %p326, %s325, 4
      %s328 = scalar_lea.vmem %s5, %s327
      %s329 = sld [smem:[#allocation3 + %s25]]
      %s330 = smul.u32 32, %s25
      %p331 = scmp.lt.s32.totalorder %s330, 191
      %s332 = scalar_select %p331, %s330, 191
      %s333 = smul.addr %s332, 8
      %s334 = scalar_lea.vmem %s6, %s333
      %s335 = smul.u32 32, %s25
      %v337 = vld [vmem:[%s304] sm:$0xff]
      %v338 = vld [vmem:[%s304 + $0x8] sm:$0xff]
      %v339 = vld [vmem:[%s304 + $0x10] sm:$0xff]
      %v340 = vld [vmem:[%s304 + $0x18] sm:$0xff]
      %v341 = vld [vmem:[%s304 + $0x20] sm:$0xff]
      %v342 = vld [vmem:[%s304 + $0x28] sm:$0xff]
      %v343 = vld [vmem:[%s304 + $0x30] sm:$0xff]
      %v344 = vld [vmem:[%s304 + $0x38] sm:$0xff]
      %v345 = vld [vmem:[%s304 + $0x40] sm:$0xff]
      %v346 = vld [vmem:[%s304 + $0x48] sm:$0xff]
      %v347 = vld [vmem:[%s304 + $0x50] sm:$0xff]
      %v348 = vld [vmem:[%s304 + $0x58] sm:$0xff]
      %v349 = vld [vmem:[%s304 + $0x60] sm:$0xff]
      %v350 = vld [vmem:[%s304 + $0x68] sm:$0xff]
      %v351 = vld [vmem:[%s304 + $0x70] sm:$0xff]
      %v352 = vld [vmem:[%s304 + $0x78] sm:$0xff]
      %v353 = vld [vmem:[%s304 + $0x80] sm:$0xff]
      %v354 = vld [vmem:[%s304 + $0x88] sm:$0xff]
      %v355 = vld [vmem:[%s304 + $0x90] sm:$0xff]
      %v356 = vld [vmem:[%s304 + $0x98] sm:$0xff]
      %v357 = vld [vmem:[%s304 + $0xa0] sm:$0xff]
      %v358 = vld [vmem:[%s304 + $0xa8] sm:$0xff]
      %v359 = vld [vmem:[%s304 + $0xb0] sm:$0xff]
      %v360 = vld [vmem:[%s304 + $0xb8] sm:$0xff]
      %v361 = vld [vmem:[%s304 + $0xc0] sm:$0xff]
      %v362 = vld [vmem:[%s304 + $0xc8] sm:$0xff]
      %v363 = vld [vmem:[%s304 + $0xd0] sm:$0xff]
      %v364 = vld [vmem:[%s304 + $0xd8] sm:$0xff]
      %v365 = vld [vmem:[%s304 + $0xe0] sm:$0xff]
      %v366 = vld [vmem:[%s304 + $0xe8] sm:$0xff]
      %v367 = vld [vmem:[%s304 + $0xf0] sm:$0xff]
      %v368 = vld [vmem:[%s304 + $0xf8] sm:$0xff]
      %v369 = vld [vmem:[%s311] sm:$0xf]
      %v370 = vld [vmem:[%s311 + $0x4] sm:$0xf]
      %v371 = vld [vmem:[%s311 + $0x8] sm:$0xf]
      %v372 = vld [vmem:[%s311 + $0xc] sm:$0xf]
      %v373 = vld [vmem:[%s311 + $0x10] sm:$0xf]
      %v374 = vld [vmem:[%s311 + $0x14] sm:$0xf]
      %v375 = vld [vmem:[%s311 + $0x18] sm:$0xf]
      %v376 = vld [vmem:[%s311 + $0x1c] sm:$0xf]
      %v377 = vld [vmem:[%s311 + $0x20] sm:$0xf]
      %v378 = vld [vmem:[%s311 + $0x24] sm:$0xf]
      %v379 = vld [vmem:[%s311 + $0x28] sm:$0xf]
      %v380 = vld [vmem:[%s311 + $0x2c] sm:$0xf]
      %v381 = vld [vmem:[%s311 + $0x30] sm:$0xf]
      %v382 = vld [vmem:[%s311 + $0x34] sm:$0xf]
      %v383 = vld [vmem:[%s311 + $0x38] sm:$0xf]
      %v384 = vld [vmem:[%s311 + $0x3c] sm:$0xf]
      %v385 = vld [vmem:[%s311 + $0x40] sm:$0xf]
      %v386 = vld [vmem:[%s311 + $0x44] sm:$0xf]
      %v387 = vld [vmem:[%s316] sm:$0x1]
      %v389 = vperm.slane %v387, 0
      %v423 = vunpack.c.l.b16 %v337
      %v424 = vunpack.c.h.b16 %v337
      %v425 = vunpack.c.l.b16 %v338
      %v426 = vunpack.c.h.b16 %v338
      %v427 = vunpack.c.l.b16 %v339
      %v428 = vunpack.c.h.b16 %v339
      %v429 = vunpack.c.l.b16 %v340
      %v430 = vunpack.c.h.b16 %v340
      %v431 = vunpack.c.l.b16 %v341
      %v432 = vunpack.c.h.b16 %v341
      %v433 = vunpack.c.l.b16 %v342
      %v434 = vunpack.c.h.b16 %v342
      %v435 = vunpack.c.l.b16 %v343
      %v436 = vunpack.c.h.b16 %v343
      %v437 = vunpack.c.l.b16 %v344
      %v438 = vunpack.c.h.b16 %v344
      %v439 = vunpack.c.l.b16 %v345
      %v440 = vunpack.c.h.b16 %v345
      %v441 = vunpack.c.l.b16 %v346
      %v442 = vunpack.c.h.b16 %v346
      %v443 = vunpack.c.l.b16 %v347
      %v444 = vunpack.c.h.b16 %v347
      %v445 = vunpack.c.l.b16 %v348
      %v446 = vunpack.c.h.b16 %v348
      %v447 = vunpack.c.l.b16 %v349
      %v448 = vunpack.c.h.b16 %v349
      %v449 = vunpack.c.l.b16 %v350
      %v450 = vunpack.c.h.b16 %v350
      %v451 = vunpack.c.l.b16 %v351
      %v452 = vunpack.c.h.b16 %v351
      %v453 = vunpack.c.l.b16 %v352
      %v454 = vunpack.c.h.b16 %v352
      %v455 = vunpack.c.l.b16 %v353
      %v456 = vunpack.c.h.b16 %v353
      %v457 = vunpack.c.l.b16 %v354
      %v458 = vunpack.c.h.b16 %v354
      %v459 = vunpack.c.l.b16 %v355
      %v460 = vunpack.c.h.b16 %v355
      %v461 = vunpack.c.l.b16 %v356
      %v462 = vunpack.c.h.b16 %v356
      %v463 = vunpack.c.l.b16 %v357
      %v464 = vunpack.c.h.b16 %v357
      %v465 = vunpack.c.l.b16 %v358
      %v466 = vunpack.c.h.b16 %v358
      %v467 = vunpack.c.l.b16 %v359
      %v468 = vunpack.c.h.b16 %v359
      %v469 = vunpack.c.l.b16 %v360
      %v470 = vunpack.c.h.b16 %v360
      %v471 = vunpack.c.l.b16 %v361
      %v472 = vunpack.c.h.b16 %v361
      %v473 = vunpack.c.l.b16 %v362
      %v474 = vunpack.c.h.b16 %v362
      %v475 = vunpack.c.l.b16 %v363
      %v476 = vunpack.c.h.b16 %v363
      %v477 = vunpack.c.l.b16 %v364
      %v478 = vunpack.c.h.b16 %v364
      %v479 = vunpack.c.l.b16 %v365
      %v480 = vunpack.c.h.b16 %v365
      %v481 = vunpack.c.l.b16 %v366
      %v482 = vunpack.c.h.b16 %v366
      %v483 = vunpack.c.l.b16 %v367
      %v484 = vunpack.c.h.b16 %v367
      %v485 = vunpack.c.l.b16 %v368
      %v486 = vunpack.c.h.b16 %v368
      %v487 = vpack.c.b16 %v425, %v423
      %v488 = vpack.c.b16 %v426, %v424
      %v489 = vpack.c.b16 %v429, %v427
      %v490 = vpack.c.b16 %v430, %v428
      %v491 = vpack.c.b16 %v433, %v431
      %v492 = vpack.c.b16 %v434, %v432
      %v493 = vpack.c.b16 %v437, %v435
      %v494 = vpack.c.b16 %v438, %v436
      %v495 = vpack.c.b16 %v441, %v439
      %v496 = vpack.c.b16 %v442, %v440
      %v497 = vpack.c.b16 %v445, %v443
      %v498 = vpack.c.b16 %v446, %v444
      %v499 = vpack.c.b16 %v449, %v447
      %v500 = vpack.c.b16 %v450, %v448
      %v501 = vpack.c.b16 %v453, %v451
      %v502 = vpack.c.b16 %v454, %v452
      %v503 = vpack.c.b16 %v457, %v455
      %v504 = vpack.c.b16 %v458, %v456
      %v505 = vpack.c.b16 %v461, %v459
      %v506 = vpack.c.b16 %v462, %v460
      %v507 = vpack.c.b16 %v465, %v463
      %v508 = vpack.c.b16 %v466, %v464
      %v509 = vpack.c.b16 %v469, %v467
      %v510 = vpack.c.b16 %v470, %v468
      %v511 = vpack.c.b16 %v473, %v471
      %v512 = vpack.c.b16 %v474, %v472
      %v513 = vpack.c.b16 %v477, %v475
      %v514 = vpack.c.b16 %v478, %v476
      %v515 = vpack.c.b16 %v481, %v479
      %v516 = vpack.c.b16 %v482, %v480
      %v517 = vpack.c.b16 %v485, %v483
      %v518 = vpack.c.b16 %v486, %v484
      %v553 = vunpack.c.l.b16 %v369
      %v554 = vunpack.c.l.b16 %v370
      %v555 = vunpack.c.l.b16 %v371
      %v556 = vunpack.c.l.b16 %v372
      %v557 = vunpack.c.l.b16 %v373
      %v558 = vunpack.c.l.b16 %v374
      %v559 = vunpack.c.l.b16 %v375
      %v560 = vunpack.c.l.b16 %v376
      %v561 = vunpack.c.l.b16 %v377
      %v562 = vunpack.c.l.b16 %v378
      %v563 = vunpack.c.l.b16 %v379
      %v564 = vunpack.c.l.b16 %v380
      %v565 = vunpack.c.l.b16 %v381
      %v566 = vunpack.c.l.b16 %v382
      %v567 = vunpack.c.l.b16 %v383
      %v568 = vunpack.c.l.b16 %v384
      %v569 = vunpack.c.l.b16 %v385
      %v570 = vunpack.c.l.b16 %v386
      %v571 = vpack.c.b16 %v554, %v553
      %v572 = vpack.c.b16 %v556, %v555
      %v573 = vpack.c.b16 %v558, %v557
      %v574 = vpack.c.b16 %v560, %v559
      %v575 = vpack.c.b16 %v562, %v561
      %v576 = vpack.c.b16 %v564, %v563
      %v577 = vpack.c.b16 %v566, %v565
      %v578 = vpack.c.b16 %v568, %v567
      %v579 = vpack.c.b16 %v570, %v569
      %vm589 = vcmask 130048
      %v591 = vsel %vm589, %v488, 0
      %v594 = vsel %vm589, %v490, 0
      %v597 = vsel %vm589, %v492, 0
      %v600 = vsel %vm589, %v494, 0
      %v603 = vsel %vm589, %v496, 0
      %v606 = vsel %vm589, %v498, 0
      %v609 = vsel %vm589, %v500, 0
      %v612 = vsel %vm589, %v502, 0
      %v615 = vsel %vm589, %v504, 0
      %v618 = vsel %vm589, %v506, 0
      %v621 = vsel %vm589, %v508, 0
      %v624 = vsel %vm589, %v510, 0
      %v627 = vsel %vm589, %v512, 0
      %v630 = vsel %vm589, %v514, 0
      %v633 = vsel %vm589, %v516, 0
      %v636 = vsel %vm589, %v518, 0
      %638 = vmatpush.bf16.msra.mxu0 %v578
      %639 = vmatpush.bf16.msra.mxu0 %v577
      %640 = vmatpush.bf16.msra.mxu0 %v576
      %641 = vmatpush.bf16.msra.mxu0 %v575
      %642 = vmatpush.bf16.msra.mxu0 %v574
      %643 = vmatpush.bf16.msra.mxu0 %v573
      %644 = vmatpush.bf16.msra.mxu0 %v572
      %645 = vmatpush.bf16.msra.mxu0 %v571
      %646 = vmatmul.bf16.gmra.mxu0 %v487
      %v647 = vpop.f32.mrf.mxu0
      %v648 = vadd.f32 %v389, %v647
      %v649 = vpop.f32.mrf.mxu0
      %v650 = vadd.f32 %v389, %v649
      %651 = vmatmul.bf16.gmra.mxu0 %v489
      %v652 = vpop.f32.mrf.mxu0
      %v653 = vadd.f32 %v389, %v652
      %v654 = vpop.f32.mrf.mxu0
      %v655 = vadd.f32 %v389, %v654
      %656 = vmatmul.bf16.gmra.mxu0 %v491
      %v657 = vpop.f32.mrf.mxu0
      %v658 = vadd.f32 %v389, %v657
      %v659 = vpop.f32.mrf.mxu0
      %v660 = vadd.f32 %v389, %v659
      %661 = vmatmul.bf16.gmra.mxu0 %v493
      %v662 = vpop.f32.mrf.mxu0
      %v663 = vadd.f32 %v389, %v662
      %v664 = vpop.f32.mrf.mxu0
      %v665 = vadd.f32 %v389, %v664
      %666 = vmatmul.bf16.gmra.mxu0 %v495
      %v667 = vpop.f32.mrf.mxu0
      %v668 = vadd.f32 %v389, %v667
      %v669 = vpop.f32.mrf.mxu0
      %v670 = vadd.f32 %v389, %v669
      %671 = vmatmul.bf16.gmra.mxu0 %v497
      %v672 = vpop.f32.mrf.mxu0
      %v673 = vadd.f32 %v389, %v672
      %v674 = vpop.f32.mrf.mxu0
      %v675 = vadd.f32 %v389, %v674
      %676 = vmatmul.bf16.gmra.mxu0 %v499
      %v677 = vpop.f32.mrf.mxu0
      %v678 = vadd.f32 %v389, %v677
      %v679 = vpop.f32.mrf.mxu0
      %v680 = vadd.f32 %v389, %v679
      %681 = vmatmul.bf16.gmra.mxu0 %v501
      %v682 = vpop.f32.mrf.mxu0
      %v683 = vadd.f32 %v389, %v682
      %v684 = vpop.f32.mrf.mxu0
      %v685 = vadd.f32 %v389, %v684
      %686 = vmatmul.bf16.gmra.mxu0 %v503
      %v687 = vpop.f32.mrf.mxu0
      %v688 = vadd.f32 %v389, %v687
      %v689 = vpop.f32.mrf.mxu0
      %v690 = vadd.f32 %v389, %v689
      %691 = vmatmul.bf16.gmra.mxu0 %v505
      %v692 = vpop.f32.mrf.mxu0
      %v693 = vadd.f32 %v389, %v692
      %v694 = vpop.f32.mrf.mxu0
      %v695 = vadd.f32 %v389, %v694
      %696 = vmatmul.bf16.gmra.mxu0 %v507
      %v697 = vpop.f32.mrf.mxu0
      %v698 = vadd.f32 %v389, %v697
      %v699 = vpop.f32.mrf.mxu0
      %v700 = vadd.f32 %v389, %v699
      %701 = vmatmul.bf16.gmra.mxu0 %v509
      %v702 = vpop.f32.mrf.mxu0
      %v703 = vadd.f32 %v389, %v702
      %v704 = vpop.f32.mrf.mxu0
      %v705 = vadd.f32 %v389, %v704
      %706 = vmatmul.bf16.gmra.mxu0 %v511
      %v707 = vpop.f32.mrf.mxu0
      %v708 = vadd.f32 %v389, %v707
      %v709 = vpop.f32.mrf.mxu0
      %v710 = vadd.f32 %v389, %v709
      %711 = vmatmul.bf16.gmra.mxu0 %v513
      %v712 = vpop.f32.mrf.mxu0
      %v713 = vadd.f32 %v389, %v712
      %v714 = vpop.f32.mrf.mxu0
      %v715 = vadd.f32 %v389, %v714
      %716 = vmatmul.bf16.gmra.mxu0 %v515
      %v717 = vpop.f32.mrf.mxu0
      %v718 = vadd.f32 %v389, %v717
      %v719 = vpop.f32.mrf.mxu0
      %v720 = vadd.f32 %v389, %v719
      %721 = vmatmul.bf16.gmra.mxu0 %v517
      %v722 = vpop.f32.mrf.mxu0
      %v723 = vadd.f32 %v389, %v722
      %v724 = vpop.f32.mrf.mxu0
      %v725 = vadd.f32 %v389, %v724
      %726 = vdwg.mxu0
      %727 = vmatpush.bf16.msra.mxu0 0
      %728 = vmatpush.bf16.msra.mxu0 0
      %729 = vmatpush.bf16.msra.mxu0 0
      %730 = vmatpush.bf16.msra.mxu0 0
      %731 = vmatpush.bf16.msra.mxu0 0
      %732 = vmatpush.bf16.msra.mxu0 0
      %733 = vmatpush.bf16.msra.mxu0 0
      %734 = vmatpush.bf16.msra.mxu0 %v579
      %735 = vmatmul.bf16.gmra.mxu0 %v591
      %v736 = vpop.f32.mrf.mxu0
      %v737 = vadd.f32 %v648, %v736
      %v738 = vpop.f32.mrf.mxu0
      %v739 = vadd.f32 %v650, %v738
      %740 = vmatmul.bf16.gmra.mxu0 %v594
      %v741 = vpop.f32.mrf.mxu0
      %v742 = vadd.f32 %v653, %v741
      %v743 = vpop.f32.mrf.mxu0
      %v744 = vadd.f32 %v655, %v743
      %745 = vmatmul.bf16.gmra.mxu0 %v597
      %v746 = vpop.f32.mrf.mxu0
      %v747 = vadd.f32 %v658, %v746
      %v748 = vpop.f32.mrf.mxu0
      %v749 = vadd.f32 %v660, %v748
      %750 = vmatmul.bf16.gmra.mxu0 %v600
      %v751 = vpop.f32.mrf.mxu0
      %v752 = vadd.f32 %v663, %v751
      %v753 = vpop.f32.mrf.mxu0
      %v754 = vadd.f32 %v665, %v753
      %755 = vmatmul.bf16.gmra.mxu0 %v603
      %v756 = vpop.f32.mrf.mxu0
      %v757 = vadd.f32 %v668, %v756
      %v758 = vpop.f32.mrf.mxu0
      %v759 = vadd.f32 %v670, %v758
      %760 = vmatmul.bf16.gmra.mxu0 %v606
      %v761 = vpop.f32.mrf.mxu0
      %v762 = vadd.f32 %v673, %v761
      %v763 = vpop.f32.mrf.mxu0
      %v764 = vadd.f32 %v675, %v763
      %765 = vmatmul.bf16.gmra.mxu0 %v609
      %v766 = vpop.f32.mrf.mxu0
      %v767 = vadd.f32 %v678, %v766
      %v768 = vpop.f32.mrf.mxu0
      %v769 = vadd.f32 %v680, %v768
      %770 = vmatmul.bf16.gmra.mxu0 %v612
      %v771 = vpop.f32.mrf.mxu0
      %v772 = vadd.f32 %v683, %v771
      %v773 = vpop.f32.mrf.mxu0
      %v774 = vadd.f32 %v685, %v773
      %775 = vmatmul.bf16.gmra.mxu0 %v615
      %v776 = vpop.f32.mrf.mxu0
      %v777 = vadd.f32 %v688, %v776
      %v778 = vpop.f32.mrf.mxu0
      %v779 = vadd.f32 %v690, %v778
      %780 = vmatmul.bf16.gmra.mxu0 %v618
      %v781 = vpop.f32.mrf.mxu0
      %v782 = vadd.f32 %v693, %v781
      %v783 = vpop.f32.mrf.mxu0
      %v784 = vadd.f32 %v695, %v783
      %785 = vmatmul.bf16.gmra.mxu0 %v621
      %v786 = vpop.f32.mrf.mxu0
      %v787 = vadd.f32 %v698, %v786
      %v788 = vpop.f32.mrf.mxu0
      %v789 = vadd.f32 %v700, %v788
      %790 = vmatmul.bf16.gmra.mxu0 %v624
      %v791 = vpop.f32.mrf.mxu0
      %v792 = vadd.f32 %v703, %v791
      %v793 = vpop.f32.mrf.mxu0
      %v794 = vadd.f32 %v705, %v793
      %795 = vmatmul.bf16.gmra.mxu0 %v627
      %v796 = vpop.f32.mrf.mxu0
      %v797 = vadd.f32 %v708, %v796
      %v798 = vpop.f32.mrf.mxu0
      %v799 = vadd.f32 %v710, %v798
      %800 = vmatmul.bf16.gmra.mxu0 %v630
      %v801 = vpop.f32.mrf.mxu0
      %v802 = vadd.f32 %v713, %v801
      %v803 = vpop.f32.mrf.mxu0
      %v804 = vadd.f32 %v715, %v803
      %805 = vmatmul.bf16.gmra.mxu0 %v633
      %v806 = vpop.f32.mrf.mxu0
      %v807 = vadd.f32 %v718, %v806
      %v808 = vpop.f32.mrf.mxu0
      %v809 = vadd.f32 %v720, %v808
      %810 = vmatmul.bf16.gmra.mxu0 %v636
      %v811 = vpop.f32.mrf.mxu0
      %v812 = vadd.f32 %v723, %v811
      %v813 = vpop.f32.mrf.mxu0
      %v814 = vadd.f32 %v725, %v813
      %815 = vdwg.mxu0
      %v816 = vmax.f32 %v737, 0.0
      %v817 = vmax.f32 %v739, 0.0
      %v818 = vmax.f32 %v742, 0.0
      %v819 = vmax.f32 %v744, 0.0
      %v820 = vmax.f32 %v747, 0.0
      %v821 = vmax.f32 %v749, 0.0
      %v822 = vmax.f32 %v752, 0.0
      %v823 = vmax.f32 %v754, 0.0
      %v824 = vmax.f32 %v757, 0.0
      %v825 = vmax.f32 %v759, 0.0
      %v826 = vmax.f32 %v762, 0.0
      %v827 = vmax.f32 %v764, 0.0
      %v828 = vmax.f32 %v767, 0.0
      %v829 = vmax.f32 %v769, 0.0
      %v830 = vmax.f32 %v772, 0.0
      %v831 = vmax.f32 %v774, 0.0
      %v832 = vmax.f32 %v777, 0.0
      %v833 = vmax.f32 %v779, 0.0
      %v834 = vmax.f32 %v782, 0.0
      %v835 = vmax.f32 %v784, 0.0
      %v836 = vmax.f32 %v787, 0.0
      %v837 = vmax.f32 %v789, 0.0
      %v838 = vmax.f32 %v792, 0.0
      %v839 = vmax.f32 %v794, 0.0
      %v840 = vmax.f32 %v797, 0.0
      %v841 = vmax.f32 %v799, 0.0
      %v842 = vmax.f32 %v802, 0.0
      %v843 = vmax.f32 %v804, 0.0
      %v844 = vmax.f32 %v807, 0.0
      %v845 = vmax.f32 %v809, 0.0
      %v846 = vmax.f32 %v812, 0.0
      %v847 = vmax.f32 %v814, 0.0
      %v848 = vpack.c.bf16 %v817, %v816
      %v849 = vpack.c.bf16 %v819, %v818
      %v850 = vpack.c.bf16 %v821, %v820
      %v851 = vpack.c.bf16 %v823, %v822
      %v852 = vpack.c.bf16 %v825, %v824
      %v853 = vpack.c.bf16 %v827, %v826
      %v854 = vpack.c.bf16 %v829, %v828
      %v855 = vpack.c.bf16 %v831, %v830
      %v856 = vpack.c.bf16 %v833, %v832
      %v857 = vpack.c.bf16 %v835, %v834
      %v858 = vpack.c.bf16 %v837, %v836
      %v859 = vpack.c.bf16 %v839, %v838
      %v860 = vpack.c.bf16 %v841, %v840
      %v861 = vpack.c.bf16 %v843, %v842
      %v862 = vpack.c.bf16 %v845, %v844
      %v863 = vpack.c.bf16 %v847, %v846
      %v864 = vld [vmem:[%s323] sm:$0xf]
      %v865 = vld [vmem:[%s323 + $0x4] sm:$0xf]
      %v866 = vld [vmem:[%s323 + $0x8] sm:$0xf]
      %v867 = vld [vmem:[%s323 + $0xc] sm:$0xf]
      %v868 = vld [vmem:[%s328] sm:$0x1]
      %v870 = vperm.slane %v868, 0
      %v876 = vunpack.c.l.b16 %v864
      %v877 = vunpack.c.l.b16 %v865
      %v878 = vunpack.c.l.b16 %v866
      %v879 = vunpack.c.l.b16 %v867
      %v880 = vpack.c.b16 %v877, %v876
      %v881 = vpack.c.b16 %v879, %v878
      %vm884 = vcmask 261120
      %v886 = vsel %vm884, %v848, 0
      %v889 = vsel %vm884, %v849, 0
      %v892 = vsel %vm884, %v850, 0
      %v895 = vsel %vm884, %v851, 0
      %v898 = vsel %vm884, %v852, 0
      %v901 = vsel %vm884, %v853, 0
      %v904 = vsel %vm884, %v854, 0
      %v907 = vsel %vm884, %v855, 0
      %v910 = vsel %vm884, %v856, 0
      %v913 = vsel %vm884, %v857, 0
      %v916 = vsel %vm884, %v858, 0
      %v919 = vsel %vm884, %v859, 0
      %v922 = vsel %vm884, %v860, 0
      %v925 = vsel %vm884, %v861, 0
      %v928 = vsel %vm884, %v862, 0
      %v931 = vsel %vm884, %v863, 0
      %933 = vmatpush.bf16.msra.mxu0 0
      %934 = vmatpush.bf16.msra.mxu0 0
      %935 = vmatpush.bf16.msra.mxu0 0
      %936 = vmatpush.bf16.msra.mxu0 0
      %937 = vmatpush.bf16.msra.mxu0 0
      %938 = vmatpush.bf16.msra.mxu0 0
      %939 = vmatpush.bf16.msra.mxu0 %v881
      %940 = vmatpush.bf16.msra.mxu0 %v880
      %941 = vmatmul.bf16.gmra.mxu0 %v886
      %v942 = vpop.f32.mrf.mxu0
      %v943 = vadd.f32 %v870, %v942
      %v944 = vpop.f32.mrf.mxu0
      %v945 = vadd.f32 %v870, %v944
      %946 = vmatmul.bf16.gmra.mxu0 %v889
      %v947 = vpop.f32.mrf.mxu0
      %v948 = vadd.f32 %v870, %v947
      %v949 = vpop.f32.mrf.mxu0
      %v950 = vadd.f32 %v870, %v949
      %951 = vmatmul.bf16.gmra.mxu0 %v892
      %v952 = vpop.f32.mrf.mxu0
      %v953 = vadd.f32 %v870, %v952
      %v954 = vpop.f32.mrf.mxu0
      %v955 = vadd.f32 %v870, %v954
      %956 = vmatmul.bf16.gmra.mxu0 %v895
      %v957 = vpop.f32.mrf.mxu0
      %v958 = vadd.f32 %v870, %v957
      %v959 = vpop.f32.mrf.mxu0
      %v960 = vadd.f32 %v870, %v959
      %961 = vmatmul.bf16.gmra.mxu0 %v898
      %v962 = vpop.f32.mrf.mxu0
      %v963 = vadd.f32 %v870, %v962
      %v964 = vpop.f32.mrf.mxu0
      %v965 = vadd.f32 %v870, %v964
      %966 = vmatmul.bf16.gmra.mxu0 %v901
      %v967 = vpop.f32.mrf.mxu0
      %v968 = vadd.f32 %v870, %v967
      %v969 = vpop.f32.mrf.mxu0
      %v970 = vadd.f32 %v870, %v969
      %971 = vmatmul.bf16.gmra.mxu0 %v904
      %v972 = vpop.f32.mrf.mxu0
      %v973 = vadd.f32 %v870, %v972
      %v974 = vpop.f32.mrf.mxu0
      %v975 = vadd.f32 %v870, %v974
      %976 = vmatmul.bf16.gmra.mxu0 %v907
      %v977 = vpop.f32.mrf.mxu0
      %v978 = vadd.f32 %v870, %v977
      %v979 = vpop.f32.mrf.mxu0
      %v980 = vadd.f32 %v870, %v979
      %981 = vmatmul.bf16.gmra.mxu0 %v910
      %v982 = vpop.f32.mrf.mxu0
      %v983 = vadd.f32 %v870, %v982
      %v984 = vpop.f32.mrf.mxu0
      %v985 = vadd.f32 %v870, %v984
      %986 = vmatmul.bf16.gmra.mxu0 %v913
      %v987 = vpop.f32.mrf.mxu0
      %v988 = vadd.f32 %v870, %v987
      %v989 = vpop.f32.mrf.mxu0
      %v990 = vadd.f32 %v870, %v989
      %991 = vmatmul.bf16.gmra.mxu0 %v916
      %v992 = vpop.f32.mrf.mxu0
      %v993 = vadd.f32 %v870, %v992
      %v994 = vpop.f32.mrf.mxu0
      %v995 = vadd.f32 %v870, %v994
      %996 = vmatmul.bf16.gmra.mxu0 %v919
      %v997 = vpop.f32.mrf.mxu0
      %v998 = vadd.f32 %v870, %v997
      %v999 = vpop.f32.mrf.mxu0
      %v1000 = vadd.f32 %v870, %v999
      %1001 = vmatmul.bf16.gmra.mxu0 %v922
      %v1002 = vpop.f32.mrf.mxu0
      %v1003 = vadd.f32 %v870, %v1002
      %v1004 = vpop.f32.mrf.mxu0
      %v1005 = vadd.f32 %v870, %v1004
      %1006 = vmatmul.bf16.gmra.mxu0 %v925
      %v1007 = vpop.f32.mrf.mxu0
      %v1008 = vadd.f32 %v870, %v1007
      %v1009 = vpop.f32.mrf.mxu0
      %v1010 = vadd.f32 %v870, %v1009
      %1011 = vmatmul.bf16.gmra.mxu0 %v928
      %v1012 = vpop.f32.mrf.mxu0
      %v1013 = vadd.f32 %v870, %v1012
      %v1014 = vpop.f32.mrf.mxu0
      %v1015 = vadd.f32 %v870, %v1014
      %1016 = vmatmul.bf16.gmra.mxu0 %v931
      %v1017 = vpop.f32.mrf.mxu0
      %v1018 = vadd.f32 %v870, %v1017
      %v1019 = vpop.f32.mrf.mxu0
      %v1020 = vadd.f32 %v870, %v1019
      %1021 = vdwg.mxu0
      %1022 = vst [vmem:[%s334] sm:$0xff] %v943
      %1023 = vst [vmem:[%s334 + $0x8] sm:$0xff] %v945
      %1024 = vst [vmem:[%s334 + $0x10] sm:$0xff] %v948
      %1025 = vst [vmem:[%s334 + $0x18] sm:$0xff] %v950
      %1026 = vst [vmem:[%s334 + $0x20] sm:$0xff] %v953
      %1027 = vst [vmem:[%s334 + $0x28] sm:$0xff] %v955
      %1028 = vst [vmem:[%s334 + $0x30] sm:$0xff] %v958
      %1029 = vst [vmem:[%s334 + $0x38] sm:$0xff] %v960
      %1030 = vst [vmem:[%s334 + $0x40] sm:$0xff] %v963
      %1031 = vst [vmem:[%s334 + $0x48] sm:$0xff] %v965
      %1032 = vst [vmem:[%s334 + $0x50] sm:$0xff] %v968
      %1033 = vst [vmem:[%s334 + $0x58] sm:$0xff] %v970
      %1034 = vst [vmem:[%s334 + $0x60] sm:$0xff] %v973
      %1035 = vst [vmem:[%s334 + $0x68] sm:$0xff] %v975
      %1036 = vst [vmem:[%s334 + $0x70] sm:$0xff] %v978
      %1037 = vst [vmem:[%s334 + $0x78] sm:$0xff] %v980
      %1038 = vst [vmem:[%s334 + $0x80] sm:$0xff] %v983
      %1039 = vst [vmem:[%s334 + $0x88] sm:$0xff] %v985
      %1040 = vst [vmem:[%s334 + $0x90] sm:$0xff] %v988
      %1041 = vst [vmem:[%s334 + $0x98] sm:$0xff] %v990
      %1042 = vst [vmem:[%s334 + $0xa0] sm:$0xff] %v993
      %1043 = vst [vmem:[%s334 + $0xa8] sm:$0xff] %v995
      %1044 = vst [vmem:[%s334 + $0xb0] sm:$0xff] %v998
      %1045 = vst [vmem:[%s334 + $0xb8] sm:$0xff] %v1000
      %1046 = vst [vmem:[%s334 + $0xc0] sm:$0xff] %v1003
      %1047 = vst [vmem:[%s334 + $0xc8] sm:$0xff] %v1005
      %1048 = vst [vmem:[%s334 + $0xd0] sm:$0xff] %v1008
      %1049 = vst [vmem:[%s334 + $0xd8] sm:$0xff] %v1010
      %1050 = vst [vmem:[%s334 + $0xe0] sm:$0xff] %v1013
      %1051 = vst [vmem:[%s334 + $0xe8] sm:$0xff] %v1015
      %1052 = vst [vmem:[%s334 + $0xf0] sm:$0xff] %v1018
      %1053 = vst [vmem:[%s334 + $0xf8] sm:$0xff] %v1020
      %s1054 = smul.u32 32, %s25
      %p1055 = scmp.lt.s32.totalorder %s1054, 191
      %s1056 = scalar_select %p1055, %s1054, 191
      %s1057 = smul.addr %s1056, 8
      %s1058 = scalar_lea.vmem %s6, %s1057
      // Predicated region
      $region41: #{kfcos_net.25} parent=39 // pred_check
        %p1059 = pneg %p181
      $region42: #{kfcos_net.25} parent=39 // pred_check_branch
        %1061 = sbr.rel (%p1059) target = $region44
      $region43: #{kfcos_net.25} parent=39 // pred_region
        %s1062 = smul.u32 32, %s25
      $region44: #{kfcos_net.25} parent=39 // pred_fallthru
        _
    $region40: #{kfcos_net.25} parent=5 // pred_fallthru
      _
    %p1063 = scmp.le.s32.totalorder 2, %s20
    // Predicated region
    $region45: #{kfcos_net.25} parent=5 // pred_check
      %p1064 = pneg %p1063
    $region46: #{kfcos_net.25} parent=5 // pred_check_branch
      %1066 = sbr.rel (%p1064) target = $region48
    $region47: #{kfcos_net.25} parent=5 // pred_region
      %s1067 = ssub.s32 %s20, 2
      // Predicated region
      $region49: #{kfcos_net.25} parent=47 // pred_check
        %p1068 = pneg %p187
      $region50: #{kfcos_net.25} parent=47 // pred_check_branch
        %1070 = sbr.rel (%p1068) target = $region52
      $region51: #{kfcos_net.25} parent=47 // pred_region
        %s1071 = smul.u32 32, %s26
        %p1072 = scmp.lt.s32.totalorder %s1071, 191
        %s1073 = scalar_select %p1072, %s1071, 191
        %s1074 = smul.addr %s1073, 8
        %s1075 = scalar_lea.vmem %s6, %s1074
      $region52: #{kfcos_net.25} parent=47 // pred_fallthru
        _
    $region48: #{kfcos_net.25} parent=5 // pred_fallthru
      _
  $region6: #{kfcos_net.25} parent=0 // loop_footer
    %s24 = sadd.s32 1, %s20
  $region7: #{kfcos_net.25} parent=0 // loop_footer_branch
    %19 = sbr.rel target = $region3
  $region8: #{kfcos_net.25} parent=0 // loop_exit
    _

</llo_original>
